<compile_context>
chip_gen: v7x
topology: tpu7x:2x2x1
jax: 0.10.0
libtpu: 0.0.40
codegen_flags: <defaults>
</compile_context>

<pallas_src>
import jax
import jax.numpy as jnp
from jax.experimental import pallas as pl
from jax.experimental.pallas import tpu as pltpu

HIDDEN = 8
IN_FEAT = 11


def _lstm_stack_kernel(x_ref, wih1_ref, whh1_ref, b1_ref,
                       w2_ref, b2_ref, wfc_ref, bfc_ref,
                       out_ref, xproj_ref):
    H = HIDDEN
    T, B, F = x_ref.shape
    dt = whh1_ref.dtype          # dot-operand dtype (f32, or bf16 on v6e/v7x)

    whh1 = whh1_ref[...]
    w2 = w2_ref[...]
    b2 = b2_ref[...]

    # --- Hoisted layer-1 input projection (off the serial recurrence) -------
    # One (T*B, F) @ (F, 4H) matmul; result parked in VMEM scratch so it does
    # not occupy vregs across the unrolled time loop.
    x2d = x_ref[...].reshape(T * B, F)
    xproj_ref[...] = (
        jnp.dot(x2d.astype(dt), wih1_ref[...],
                preferred_element_type=jnp.float32)
        + b1_ref[...])

    def gates_to_hc(gates, c):
        # Single full-width sigmoid.  The g-gate columns of the packed weights
        # and biases were pre-scaled by 2, so tanh(z) == 2*sigmoid(2z) - 1 is
        # recovered with a VALU fixup only (no full-width tanh on the EUP).
        sig = jax.nn.sigmoid(gates)
        i_g = sig[:, 0 * H:1 * H]
        f_g = sig[:, 1 * H:2 * H]
        g_g = 2.0 * sig[:, 2 * H:3 * H] - 1.0
        o_g = sig[:, 3 * H:4 * H]
        c_new = f_g * c + i_g * g_g
        h_new = o_g * jnp.tanh(c_new)
        return h_new, c_new

    def step(t, h1, c1, h2, c2):
        # Layer 1: only the recurrent (B,8)@(8,32) dot stays on the chain.
        g1 = xproj_ref[t * B:(t + 1) * B, :] + jnp.dot(
            h1.astype(dt), whh1, preferred_element_type=jnp.float32)
        h1, c1 = gates_to_hc(g1, c1)
        # Layer 2: single fused (B,16)@(16,32) dot (W_ih2/W_hh2 stacked).
        hcat = jnp.concatenate([h1, h2], axis=-1)
        g2 = jnp.dot(hcat.astype(dt), w2,
                     preferred_element_type=jnp.float32) + b2
        h2, c2 = gates_to_hc(g2, c2)
        return h1, c1, h2, c2

    zeros = jnp.zeros((B, H), jnp.float32)
    h1 = c1 = h2 = c2 = zeros

    # T is small and static: full static unroll (scheduler can interleave
    # cell1(t+1) with cell2(t); all xproj reads are static slices).
    for t in range(T):
        h1, c1, h2, c2 = step(t, h1, c1, h2, c2)

    # Bonus step on input[4] (the PyTorch forward re-runs both cells on it).
    h1, c1, h2, c2 = step(4, h1, c1, h2, c2)

    # Linear(8 -> 1) head on the VPU (+ one lane reduce); an MXU dot with N=1
    # would be pure push/pop latency.
    out_ref[...] = (jnp.sum(h2 * wfc_ref[...], axis=-1, keepdims=True)
                    + bfc_ref[...])


def _pick_block_b(batch, target=64):
    """Largest multiple-of-8 divisor of `batch` <= target (full batch otherwise).

    target=64 keeps the four (B,8) states + (B,32) gates inside the 64-vreg
    file (no spills in the unrolled loop); on 1-TC chips (v5e/v6e) extra grid
    steps are pure overhead, so we only tile to control vreg pressure.
    """
    if batch % 8 != 0:
        return batch
    best = 8
    for bb in range(8, min(batch, target) + 1, 8):
        if batch % bb == 0:
            best = bb
    return best


def _cost_estimate(T, B):
    H = HIDDEN
    steps = T + 1
    flops = (2 * T * B * IN_FEAT * 4 * H                 # hoisted x projection
             + steps * 2 * B * H * 4 * H                 # h1 @ W_hh1
             + steps * 2 * B * (2 * H) * 4 * H           # [h1|h2] @ W2
             + steps * B * 14 * H                        # gate elementwise
             + 2 * B * H)                                # fc head
    transcendentals = steps * B * (4 * H + H)            # sigmoid(4H)+tanh(H)
    bytes_accessed = 4 * (T * B * IN_FEAT + B            # x in, out
                          + IN_FEAT * 4 * H + H * 4 * H  # weights
                          + 2 * H * 4 * H + 2 * 4 * H + H + 1)
    return pl.CostEstimate(flops=int(flops),
                           transcendentals=int(transcendentals),
                           bytes_accessed=int(bytes_accessed))


def model3_pallas(x, packed_params, *, block_b=None):
    """x: (seq, batch, 11) float32. Returns (batch, 1) float32."""
    (wih1, whh1, b1, w2, b2, wfc, bfc) = packed_params
    T, B, F = x.shape
    assert F == IN_FEAT, F
    assert T >= 5, "forward reads input[4]; need seq_len >= 5"
    if block_b is None:
        block_b = _pick_block_b(B)
    assert B % block_b == 0, (B, block_b)
    # (8,128) BlockSpec rule: sub-batch blocks must be sublane-aligned.
    assert block_b % 8 == 0 or block_b == B, (B, block_b)

    const = lambda i: (0, 0)   # weights: same block every grid step (resident)

    return pl.pallas_call(
        _lstm_stack_kernel,
        out_shape=jax.ShapeDtypeStruct((B, 1), jnp.float32),
        grid=(B // block_b,),
        in_specs=[
            pl.BlockSpec((T, block_b, F), lambda i: (0, i, 0)),
            pl.BlockSpec(wih1.shape, const),   # (11, 32)
            pl.BlockSpec(whh1.shape, const),   # (8, 32)
            pl.BlockSpec(b1.shape, const),     # (1, 32)
            pl.BlockSpec(w2.shape, const),     # (16, 32) = [W_ih2; W_hh2]
            pl.BlockSpec(b2.shape, const),     # (1, 32)
            pl.BlockSpec(wfc.shape, const),    # (1, 8)  VPU head row
            pl.BlockSpec(bfc.shape, const),    # (1, 1)
        ],
        out_specs=pl.BlockSpec((block_b, 1), lambda i: (i, 0)),
        scratch_shapes=[pltpu.VMEM((T * block_b, 4 * HIDDEN), jnp.float32)],
        compiler_params=pltpu.CompilerParams(
            dimension_semantics=("parallel",)),  # batch axis; TODO(synk): CORE_PARALLEL on v7x
        cost_estimate=_cost_estimate(T, block_b * (B // block_b)),
    )(x, wih1, whh1, b1, w2, b2, wfc, bfc)


def init_raw_params(key):
    """Torch-style LSTMCell/Linear params, uniform(-1/sqrt(H), 1/sqrt(H))."""
    k = 1.0 / jnp.sqrt(jnp.float32(HIDDEN))
    ks = jax.random.split(key, 10)

    def u(kk, shape):
        return jax.random.uniform(kk, shape, jnp.float32, -k, k)

    w_ih1 = u(ks[0], (4 * HIDDEN, IN_FEAT))
    w_hh1 = u(ks[1], (4 * HIDDEN, HIDDEN))
    b_ih1 = u(ks[2], (4 * HIDDEN,))
    b_hh1 = u(ks[3], (4 * HIDDEN,))
    w_ih2 = u(ks[4], (4 * HIDDEN, HIDDEN))
    w_hh2 = u(ks[5], (4 * HIDDEN, HIDDEN))
    b_ih2 = u(ks[6], (4 * HIDDEN,))
    b_hh2 = u(ks[7], (4 * HIDDEN,))
    w_fc = u(ks[8], (1, HIDDEN))
    b_fc = u(ks[9], (1,))
    return (w_ih1, w_hh1, b_ih1, b_hh1, w_ih2, w_hh2, b_ih2, b_hh2, w_fc, b_fc)


def pack_params(raw, dot_dtype=jnp.float32):
    """Kernel layout: x @ W, biases folded, layer-2 weights stacked, g-gate
    columns pre-scaled by 2 (tanh-via-sigmoid identity).  `dot_dtype=bf16`
    casts only the MXU weight operands (use on v6e/v7x; keep f32 on v5e)."""
    (w_ih1, w_hh1, b_ih1, b_hh1, w_ih2, w_hh2, b_ih2, b_hh2, w_fc, b_fc) = raw
    H = HIDDEN

    def scale_g(a):  # multiply the g-gate block (last-axis cols 2H:3H) by 2
        return a.at[..., 2 * H:3 * H].multiply(2.0)

    wih1 = scale_g(w_ih1.T)                                    # (11, 32)
    whh1 = scale_g(w_hh1.T)                                    # (8, 32)
    b1 = scale_g(b_ih1 + b_hh1).reshape(1, 4 * H)              # (1, 32)
    w2 = scale_g(jnp.concatenate([w_ih2.T, w_hh2.T], axis=0))  # (16, 32)
    b2 = scale_g(b_ih2 + b_hh2).reshape(1, 4 * H)              # (1, 32)
    wfc = w_fc                                                 # (1, 8)
    bfc = b_fc.reshape(1, 1)                                   # (1, 1)
    return (wih1.astype(dot_dtype), whh1.astype(dot_dtype), b1,
            w2.astype(dot_dtype), b2, wfc, bfc)


def model3_ref(x, raw):
    """Pure-JAX reference with torch semantics on the raw (unpacked) params."""
    (w_ih1, w_hh1, b_ih1, b_hh1, w_ih2, w_hh2, b_ih2, b_hh2, w_fc, b_fc) = raw
    H = HIDDEN
    B = x.shape[1]

    def cell(xt, h, c, wih, whh, bih, bhh):
        g = xt @ wih.T + h @ whh.T + bih + bhh
        i_g = jax.nn.sigmoid(g[:, 0 * H:1 * H])
        f_g = jax.nn.sigmoid(g[:, 1 * H:2 * H])
        g_g = jnp.tanh(g[:, 2 * H:3 * H])
        o_g = jax.nn.sigmoid(g[:, 3 * H:4 * H])
        c_new = f_g * c + i_g * g_g
        return o_g * jnp.tanh(c_new), c_new

    h1 = c1 = h2 = c2 = jnp.zeros((B, H), jnp.float32)
    for t in range(x.shape[0]):
        h1, c1 = cell(x[t], h1, c1, w_ih1, w_hh1, b_ih1, b_hh1)
        h2, c2 = cell(h1, h2, c2, w_ih2, w_hh2, b_ih2, b_hh2)
    h1, c1 = cell(x[4], h1, c1, w_ih1, w_hh1, b_ih1, b_hh1)
    h2, c2 = cell(h1, h2, c2, w_ih2, w_hh2, b_ih2, b_hh2)
    return h2 @ w_fc.T + b_fc


if __name__ == "__main__":
    key = jax.random.PRNGKey(0)
    k_param, k_x = jax.random.split(key)

    SEQ, BATCH = 8, 16                 # seq must be >= 5 (forward reads input[4])
    x = jax.random.normal(k_x, (SEQ, BATCH, IN_FEAT), jnp.float32)
    raw = init_raw_params(k_param)
    ref = model3_ref(x, raw)

    # f32 dot operands (default; required on v5e).
    packed = pack_params(raw)
    out_full = jax.block_until_ready(model3_pallas(x, packed))              # grid=(1,)
    out_grid = jax.block_until_ready(model3_pallas(x, packed, block_b=8))   # grid=(2,) tiled-path check

    assert out_full.shape == (BATCH, 1), out_full.shape
    assert out_grid.shape == (BATCH, 1), out_grid.shape
    assert jnp.allclose(out_full, ref, atol=1e-4, rtol=1e-4), (out_full, ref)
    assert jnp.allclose(out_grid, ref, atol=1e-4, rtol=1e-4), (out_grid, ref)

    # bf16 dot operands (bf16-native MXU on v6e/v7x); gate math stays f32.
    packed_bf16 = pack_params(raw, dot_dtype=jnp.bfloat16)
    out_bf16 = jax.block_until_ready(model3_pallas(x, packed_bf16))
    assert jnp.allclose(out_bf16, ref, atol=5e-2, rtol=5e-2), (out_bf16, ref)

    print("KERNEL_OK")
</pallas_src>

<mosaic_0001>
module attributes {stable_mosaic.version = 11 : i64} {
  func.func @_lstm_stack_kernel(%arg0: i32, %arg1: memref<8x16x11xf32, #tpu.memory_space<vmem>>, %arg2: memref<11x32xf32, #tpu.memory_space<vmem>>, %arg3: memref<8x32xf32, #tpu.memory_space<vmem>>, %arg4: memref<1x32xf32, #tpu.memory_space<vmem>>, %arg5: memref<16x32xf32, #tpu.memory_space<vmem>>, %arg6: memref<1x32xf32, #tpu.memory_space<vmem>>, %arg7: memref<1x8xf32, #tpu.memory_space<vmem>>, %arg8: memref<1x1xf32, #tpu.memory_space<vmem>>, %arg9: memref<16x1xf32, #tpu.memory_space<vmem>>, %arg10: memref<128x32xf32, #tpu.memory_space<vmem>>) attributes {dimension_semantics = [#tpu.dimension_semantics<parallel>], iteration_bounds = array<i64: 1>, scalar_prefetch = 0 : i64, scratch_operands = 1 : i64, tpu.core_type = #tpu.core_type<tc>, window_params = [{transform_indices = @transform_0, window_bounds = array<i64: 8, 16, 11>}, {pipeline_mode = #tpu.pipeline_mode<synchronous>, transform_indices = @transform_1, window_bounds = array<i64: 11, 32>}, {pipeline_mode = #tpu.pipeline_mode<synchronous>, transform_indices = @transform_2, window_bounds = array<i64: 8, 32>}, {pipeline_mode = #tpu.pipeline_mode<synchronous>, transform_indices = @transform_3, window_bounds = array<i64: 1, 32>}, {pipeline_mode = #tpu.pipeline_mode<synchronous>, transform_indices = @transform_4, window_bounds = array<i64: 16, 32>}, {pipeline_mode = #tpu.pipeline_mode<synchronous>, transform_indices = @transform_5, window_bounds = array<i64: 1, 32>}, {pipeline_mode = #tpu.pipeline_mode<synchronous>, transform_indices = @transform_6, window_bounds = array<i64: 1, 8>}, {pipeline_mode = #tpu.pipeline_mode<synchronous>, transform_indices = @transform_7, window_bounds = array<i64: 1, 1>}, {transform_indices = @transform_8, window_bounds = array<i64: 16, 1>}]} {
    %c0 = arith.constant 0 : index
    %c0_0 = arith.constant 0 : index
    %0 = vector.load %arg3[%c0, %c0_0] : memref<8x32xf32, #tpu.memory_space<vmem>>, vector<8x32xf32>
    %c0_1 = arith.constant 0 : index
    %c0_2 = arith.constant 0 : index
    %1 = vector.load %arg5[%c0_1, %c0_2] : memref<16x32xf32, #tpu.memory_space<vmem>>, vector<16x32xf32>
    %c0_3 = arith.constant 0 : index
    %c0_4 = arith.constant 0 : index
    %2 = vector.load %arg6[%c0_3, %c0_4] : memref<1x32xf32, #tpu.memory_space<vmem>>, vector<1x32xf32>
    %c0_5 = arith.constant 0 : index
    %c0_6 = arith.constant 0 : index
    %c0_7 = arith.constant 0 : index
    %3 = vector.load %arg1[%c0_5, %c0_6, %c0_7] : memref<8x16x11xf32, #tpu.memory_space<vmem>>, vector<8x16x11xf32>
    %4 = vector.shape_cast %3 : vector<8x16x11xf32> to vector<128x11xf32>
    %c0_8 = arith.constant 0 : index
    %c0_9 = arith.constant 0 : index
    %5 = vector.load %arg2[%c0_8, %c0_9] : memref<11x32xf32, #tpu.memory_space<vmem>>, vector<11x32xf32>
    %cst = arith.constant dense<0.000000e+00> : vector<128x32xf32>
    %6 = tpu.matmul %4, %5, %cst {dimension_numbers = #tpu.dot_dimension_numbers<[1], [0], [0], [1], [0, 0, 1, 1], [], []>} : vector<128x11xf32>, vector<11x32xf32>, vector<128x32xf32> -> vector<128x32xf32>
    %c0_10 = arith.constant 0 : index
    %c0_11 = arith.constant 0 : index
    %7 = vector.load %arg4[%c0_10, %c0_11] : memref<1x32xf32, #tpu.memory_space<vmem>>, vector<1x32xf32>
    %8 = vector.broadcast %7 : vector<1x32xf32> to vector<128x32xf32>
    %9 = arith.addf %6, %8 : vector<128x32xf32>
    %c0_12 = arith.constant 0 : index
    %c0_13 = arith.constant 0 : index
    %10 = vector.load %arg10[%c0_12, %c0_13] : memref<128x32xf32, #tpu.memory_space<vmem>>, vector<128x32xf32>
    tpu.vector_store %arg10[%c0_12, %c0_13], %9 {strides = array<i32>} : memref<128x32xf32, #tpu.memory_space<vmem>>, vector<128x32xf32>,
    %cst_14 = arith.constant 0.000000e+00 : f32
    %11 = vector.broadcast %cst_14 : f32 to vector<16x8xf32>
    %c0_15 = arith.constant 0 : index
    %c0_16 = arith.constant 0 : index
    %12 = vector.load %arg10[%c0_15, %c0_16] : memref<128x32xf32, #tpu.memory_space<vmem>>, vector<16x32xf32>
    %cst_17 = arith.constant dense<0.000000e+00> : vector<16x32xf32>
    %13 = tpu.matmul %11, %0, %cst_17 {dimension_numbers = #tpu.dot_dimension_numbers<[1], [0], [0], [1], [0, 0, 1, 1], [], []>} : vector<16x8xf32>, vector<8x32xf32>, vector<16x32xf32> -> vector<16x32xf32>
    %14 = arith.addf %12, %13 : vector<16x32xf32>
    %15 = arith.negf %14 : vector<16x32xf32>
    %16 = math.exp %15 : vector<16x32xf32>
    %cst_18 = arith.constant 1.000000e+00 : f32
    %17 = vector.broadcast %cst_18 : f32 to vector<16x32xf32>
    %18 = arith.addf %17, %16 : vector<16x32xf32>
    %19 = arith.divf %17, %18 : vector<16x32xf32>
    %20 = vector.extract_strided_slice %19 {offsets = [0, 0], sizes = [16, 8], strides = [1, 1]} : vector<16x32xf32> to vector<16x8xf32>
    %21 = vector.extract_strided_slice %19 {offsets = [0, 8], sizes = [16, 8], strides = [1, 1]} : vector<16x32xf32> to vector<16x8xf32>
    %22 = vector.extract_strided_slice %19 {offsets = [0, 16], sizes = [16, 8], strides = [1, 1]} : vector<16x32xf32> to vector<16x8xf32>
    %cst_19 = arith.constant 2.000000e+00 : f32
    %23 = vector.broadcast %cst_19 : f32 to vector<16x8xf32>
    %24 = arith.mulf %23, %22 : vector<16x8xf32>
    %cst_20 = arith.constant 1.000000e+00 : f32
    %25 = vector.broadcast %cst_20 : f32 to vector<16x8xf32>
    %26 = arith.subf %24, %25 : vector<16x8xf32>
    %27 = vector.extract_strided_slice %19 {offsets = [0, 24], sizes = [16, 8], strides = [1, 1]} : vector<16x32xf32> to vector<16x8xf32>
    %28 = arith.mulf %21, %11 : vector<16x8xf32>
    %29 = arith.mulf %20, %26 : vector<16x8xf32>
    %30 = arith.addf %28, %29 : vector<16x8xf32>
    %31 = math.tanh %30 : vector<16x8xf32>
    %32 = arith.mulf %27, %31 : vector<16x8xf32>
    %33 = tpu.concatenate %32, %11 in 1 : vector<16x8xf32>, vector<16x8xf32> -> vector<16x16xf32>
    %cst_21 = arith.constant dense<0.000000e+00> : vector<16x32xf32>
    %34 = tpu.matmul %33, %1, %cst_21 {dimension_numbers = #tpu.dot_dimension_numbers<[1], [0], [0], [1], [0, 0, 1, 1], [], []>} : vector<16x16xf32>, vector<16x32xf32>, vector<16x32xf32> -> vector<16x32xf32>
    %35 = vector.broadcast %2 : vector<1x32xf32> to vector<16x32xf32>
    %36 = arith.addf %34, %35 : vector<16x32xf32>
    %37 = arith.negf %36 : vector<16x32xf32>
    %38 = math.exp %37 : vector<16x32xf32>
    %cst_22 = arith.constant 1.000000e+00 : f32
    %39 = vector.broadcast %cst_22 : f32 to vector<16x32xf32>
    %40 = arith.addf %39, %38 : vector<16x32xf32>
    %41 = arith.divf %39, %40 : vector<16x32xf32>
    %42 = vector.extract_strided_slice %41 {offsets = [0, 0], sizes = [16, 8], strides = [1, 1]} : vector<16x32xf32> to vector<16x8xf32>
    %43 = vector.extract_strided_slice %41 {offsets = [0, 8], sizes = [16, 8], strides = [1, 1]} : vector<16x32xf32> to vector<16x8xf32>
    %44 = vector.extract_strided_slice %41 {offsets = [0, 16], sizes = [16, 8], strides = [1, 1]} : vector<16x32xf32> to vector<16x8xf32>
    %cst_23 = arith.constant 2.000000e+00 : f32
    %45 = vector.broadcast %cst_23 : f32 to vector<16x8xf32>
    %46 = arith.mulf %45, %44 : vector<16x8xf32>
    %cst_24 = arith.constant 1.000000e+00 : f32
    %47 = vector.broadcast %cst_24 : f32 to vector<16x8xf32>
    %48 = arith.subf %46, %47 : vector<16x8xf32>
    %49 = vector.extract_strided_slice %41 {offsets = [0, 24], sizes = [16, 8], strides = [1, 1]} : vector<16x32xf32> to vector<16x8xf32>
    %50 = arith.mulf %43, %11 : vector<16x8xf32>
    %51 = arith.mulf %42, %48 : vector<16x8xf32>
    %52 = arith.addf %50, %51 : vector<16x8xf32>
    %53 = math.tanh %52 : vector<16x8xf32>
    %54 = arith.mulf %49, %53 : vector<16x8xf32>
    %c16 = arith.constant 16 : index
    %c0_25 = arith.constant 0 : index
    %55 = vector.load %arg10[%c16, %c0_25] : memref<128x32xf32, #tpu.memory_space<vmem>>, vector<16x32xf32>
    %cst_26 = arith.constant dense<0.000000e+00> : vector<16x32xf32>
    %56 = tpu.matmul %32, %0, %cst_26 {dimension_numbers = #tpu.dot_dimension_numbers<[1], [0], [0], [1], [0, 0, 1, 1], [], []>} : vector<16x8xf32>, vector<8x32xf32>, vector<16x32xf32> -> vector<16x32xf32>
    %57 = arith.addf %55, %56 : vector<16x32xf32>
    %58 = arith.negf %57 : vector<16x32xf32>
    %59 = math.exp %58 : vector<16x32xf32>
    %cst_27 = arith.constant 1.000000e+00 : f32
    %60 = vector.broadcast %cst_27 : f32 to vector<16x32xf32>
    %61 = arith.addf %60, %59 : vector<16x32xf32>
    %62 = arith.divf %60, %61 : vector<16x32xf32>
    %63 = vector.extract_strided_slice %62 {offsets = [0, 0], sizes = [16, 8], strides = [1, 1]} : vector<16x32xf32> to vector<16x8xf32>
    %64 = vector.extract_strided_slice %62 {offsets = [0, 8], sizes = [16, 8], strides = [1, 1]} : vector<16x32xf32> to vector<16x8xf32>
    %65 = vector.extract_strided_slice %62 {offsets = [0, 16], sizes = [16, 8], strides = [1, 1]} : vector<16x32xf32> to vector<16x8xf32>
    %cst_28 = arith.constant 2.000000e+00 : f32
    %66 = vector.broadcast %cst_28 : f32 to vector<16x8xf32>
    %67 = arith.mulf %66, %65 : vector<16x8xf32>
    %cst_29 = arith.constant 1.000000e+00 : f32
    %68 = vector.broadcast %cst_29 : f32 to vector<16x8xf32>
    %69 = arith.subf %67, %68 : vector<16x8xf32>
    %70 = vector.extract_strided_slice %62 {offsets = [0, 24], sizes = [16, 8], strides = [1, 1]} : vector<16x32xf32> to vector<16x8xf32>
    %71 = arith.mulf %64, %30 : vector<16x8xf32>
    %72 = arith.mulf %63, %69 : vector<16x8xf32>
    %73 = arith.addf %71, %72 : vector<16x8xf32>
    %74 = math.tanh %73 : vector<16x8xf32>
    %75 = arith.mulf %70, %74 : vector<16x8xf32>
    %76 = tpu.concatenate %75, %54 in 1 : vector<16x8xf32>, vector<16x8xf32> -> vector<16x16xf32>
    %cst_30 = arith.constant dense<0.000000e+00> : vector<16x32xf32>
    %77 = tpu.matmul %76, %1, %cst_30 {dimension_numbers = #tpu.dot_dimension_numbers<[1], [0], [0], [1], [0, 0, 1, 1], [], []>} : vector<16x16xf32>, vector<16x32xf32>, vector<16x32xf32> -> vector<16x32xf32>
    %78 = vector.broadcast %2 : vector<1x32xf32> to vector<16x32xf32>
    %79 = arith.addf %77, %78 : vector<16x32xf32>
    %80 = arith.negf %79 : vector<16x32xf32>
    %81 = math.exp %80 : vector<16x32xf32>
    %cst_31 = arith.constant 1.000000e+00 : f32
    %82 = vector.broadcast %cst_31 : f32 to vector<16x32xf32>
    %83 = arith.addf %82, %81 : vector<16x32xf32>
    %84 = arith.divf %82, %83 : vector<16x32xf32>
    %85 = vector.extract_strided_slice %84 {offsets = [0, 0], sizes = [16, 8], strides = [1, 1]} : vector<16x32xf32> to vector<16x8xf32>
    %86 = vector.extract_strided_slice %84 {offsets = [0, 8], sizes = [16, 8], strides = [1, 1]} : vector<16x32xf32> to vector<16x8xf32>
    %87 = vector.extract_strided_slice %84 {offsets = [0, 16], sizes = [16, 8], strides = [1, 1]} : vector<16x32xf32> to vector<16x8xf32>
    %cst_32 = arith.constant 2.000000e+00 : f32
    %88 = vector.broadcast %cst_32 : f32 to vector<16x8xf32>
    %89 = arith.mulf %88, %87 : vector<16x8xf32>
    %cst_33 = arith.constant 1.000000e+00 : f32
    %90 = vector.broadcast %cst_33 : f32 to vector<16x8xf32>
    %91 = arith.subf %89, %90 : vector<16x8xf32>
    %92 = vector.extract_strided_slice %84 {offsets = [0, 24], sizes = [16, 8], strides = [1, 1]} : vector<16x32xf32> to vector<16x8xf32>
    %93 = arith.mulf %86, %52 : vector<16x8xf32>
    %94 = arith.mulf %85, %91 : vector<16x8xf32>
    %95 = arith.addf %93, %94 : vector<16x8xf32>
    %96 = math.tanh %95 : vector<16x8xf32>
    %97 = arith.mulf %92, %96 : vector<16x8xf32>
    %c32 = arith.constant 32 : index
    %c0_34 = arith.constant 0 : index
    %98 = vector.load %arg10[%c32, %c0_34] : memref<128x32xf32, #tpu.memory_space<vmem>>, vector<16x32xf32>
    %cst_35 = arith.constant dense<0.000000e+00> : vector<16x32xf32>
    %99 = tpu.matmul %75, %0, %cst_35 {dimension_numbers = #tpu.dot_dimension_numbers<[1], [0], [0], [1], [0, 0, 1, 1], [], []>} : vector<16x8xf32>, vector<8x32xf32>, vector<16x32xf32> -> vector<16x32xf32>
    %100 = arith.addf %98, %99 : vector<16x32xf32>
    %101 = arith.negf %100 : vector<16x32xf32>
    %102 = math.exp %101 : vector<16x32xf32>
    %cst_36 = arith.constant 1.000000e+00 : f32
    %103 = vector.broadcast %cst_36 : f32 to vector<16x32xf32>
    %104 = arith.addf %103, %102 : vector<16x32xf32>
    %105 = arith.divf %103, %104 : vector<16x32xf32>
    %106 = vector.extract_strided_slice %105 {offsets = [0, 0], sizes = [16, 8], strides = [1, 1]} : vector<16x32xf32> to vector<16x8xf32>
    %107 = vector.extract_strided_slice %105 {offsets = [0, 8], sizes = [16, 8], strides = [1, 1]} : vector<16x32xf32> to vector<16x8xf32>
    %108 = vector.extract_strided_slice %105 {offsets = [0, 16], sizes = [16, 8], strides = [1, 1]} : vector<16x32xf32> to vector<16x8xf32>
    %cst_37 = arith.constant 2.000000e+00 : f32
    %109 = vector.broadcast %cst_37 : f32 to vector<16x8xf32>
    %110 = arith.mulf %109, %108 : vector<16x8xf32>
    %cst_38 = arith.constant 1.000000e+00 : f32
    %111 = vector.broadcast %cst_38 : f32 to vector<16x8xf32>
    %112 = arith.subf %110, %111 : vector<16x8xf32>
    %113 = vector.extract_strided_slice %105 {offsets = [0, 24], sizes = [16, 8], strides = [1, 1]} : vector<16x32xf32> to vector<16x8xf32>
    %114 = arith.mulf %107, %73 : vector<16x8xf32>
    %115 = arith.mulf %106, %112 : vector<16x8xf32>
    %116 = arith.addf %114, %115 : vector<16x8xf32>
    %117 = math.tanh %116 : vector<16x8xf32>
    %118 = arith.mulf %113, %117 : vector<16x8xf32>
    %119 = tpu.concatenate %118, %97 in 1 : vector<16x8xf32>, vector<16x8xf32> -> vector<16x16xf32>
    %cst_39 = arith.constant dense<0.000000e+00> : vector<16x32xf32>
    %120 = tpu.matmul %119, %1, %cst_39 {dimension_numbers = #tpu.dot_dimension_numbers<[1], [0], [0], [1], [0, 0, 1, 1], [], []>} : vector<16x16xf32>, vector<16x32xf32>, vector<16x32xf32> -> vector<16x32xf32>
    %121 = vector.broadcast %2 : vector<1x32xf32> to vector<16x32xf32>
    %122 = arith.addf %120, %121 : vector<16x32xf32>
    %123 = arith.negf %122 : vector<16x32xf32>
    %124 = math.exp %123 : vector<16x32xf32>
    %cst_40 = arith.constant 1.000000e+00 : f32
    %125 = vector.broadcast %cst_40 : f32 to vector<16x32xf32>
    %126 = arith.addf %125, %124 : vector<16x32xf32>
    %127 = arith.divf %125, %126 : vector<16x32xf32>
    %128 = vector.extract_strided_slice %127 {offsets = [0, 0], sizes = [16, 8], strides = [1, 1]} : vector<16x32xf32> to vector<16x8xf32>
    %129 = vector.extract_strided_slice %127 {offsets = [0, 8], sizes = [16, 8], strides = [1, 1]} : vector<16x32xf32> to vector<16x8xf32>
    %130 = vector.extract_strided_slice %127 {offsets = [0, 16], sizes = [16, 8], strides = [1, 1]} : vector<16x32xf32> to vector<16x8xf32>
    %cst_41 = arith.constant 2.000000e+00 : f32
    %131 = vector.broadcast %cst_41 : f32 to vector<16x8xf32>
    %132 = arith.mulf %131, %130 : vector<16x8xf32>
    %cst_42 = arith.constant 1.000000e+00 : f32
    %133 = vector.broadcast %cst_42 : f32 to vector<16x8xf32>
    %134 = arith.subf %132, %133 : vector<16x8xf32>
    %135 = vector.extract_strided_slice %127 {offsets = [0, 24], sizes = [16, 8], strides = [1, 1]} : vector<16x32xf32> to vector<16x8xf32>
    %136 = arith.mulf %129, %95 : vector<16x8xf32>
    %137 = arith.mulf %128, %134 : vector<16x8xf32>
    %138 = arith.addf %136, %137 : vector<16x8xf32>
    %139 = math.tanh %138 : vector<16x8xf32>
    %140 = arith.mulf %135, %139 : vector<16x8xf32>
    %c48 = arith.constant 48 : index
    %c0_43 = arith.constant 0 : index
    %141 = vector.load %arg10[%c48, %c0_43] : memref<128x32xf32, #tpu.memory_space<vmem>>, vector<16x32xf32>
    %cst_44 = arith.constant dense<0.000000e+00> : vector<16x32xf32>
    %142 = tpu.matmul %118, %0, %cst_44 {dimension_numbers = #tpu.dot_dimension_numbers<[1], [0], [0], [1], [0, 0, 1, 1], [], []>} : vector<16x8xf32>, vector<8x32xf32>, vector<16x32xf32> -> vector<16x32xf32>
    %143 = arith.addf %141, %142 : vector<16x32xf32>
    %144 = arith.negf %143 : vector<16x32xf32>
    %145 = math.exp %144 : vector<16x32xf32>
    %cst_45 = arith.constant 1.000000e+00 : f32
    %146 = vector.broadcast %cst_45 : f32 to vector<16x32xf32>
    %147 = arith.addf %146, %145 : vector<16x32xf32>
    %148 = arith.divf %146, %147 : vector<16x32xf32>
    %149 = vector.extract_strided_slice %148 {offsets = [0, 0], sizes = [16, 8], strides = [1, 1]} : vector<16x32xf32> to vector<16x8xf32>
    %150 = vector.extract_strided_slice %148 {offsets = [0, 8], sizes = [16, 8], strides = [1, 1]} : vector<16x32xf32> to vector<16x8xf32>
    %151 = vector.extract_strided_slice %148 {offsets = [0, 16], sizes = [16, 8], strides = [1, 1]} : vector<16x32xf32> to vector<16x8xf32>
    %cst_46 = arith.constant 2.000000e+00 : f32
    %152 = vector.broadcast %cst_46 : f32 to vector<16x8xf32>
    %153 = arith.mulf %152, %151 : vector<16x8xf32>
    %cst_47 = arith.constant 1.000000e+00 : f32
    %154 = vector.broadcast %cst_47 : f32 to vector<16x8xf32>
    %155 = arith.subf %153, %154 : vector<16x8xf32>
    %156 = vector.extract_strided_slice %148 {offsets = [0, 24], sizes = [16, 8], strides = [1, 1]} : vector<16x32xf32> to vector<16x8xf32>
    %157 = arith.mulf %150, %116 : vector<16x8xf32>
    %158 = arith.mulf %149, %155 : vector<16x8xf32>
    %159 = arith.addf %157, %158 : vector<16x8xf32>
    %160 = math.tanh %159 : vector<16x8xf32>
    %161 = arith.mulf %156, %160 : vector<16x8xf32>
    %162 = tpu.concatenate %161, %140 in 1 : vector<16x8xf32>, vector<16x8xf32> -> vector<16x16xf32>
    %cst_48 = arith.constant dense<0.000000e+00> : vector<16x32xf32>
    %163 = tpu.matmul %162, %1, %cst_48 {dimension_numbers = #tpu.dot_dimension_numbers<[1], [0], [0], [1], [0, 0, 1, 1], [], []>} : vector<16x16xf32>, vector<16x32xf32>, vector<16x32xf32> -> vector<16x32xf32>
    %164 = vector.broadcast %2 : vector<1x32xf32> to vector<16x32xf32>
    %165 = arith.addf %163, %164 : vector<16x32xf32>
    %166 = arith.negf %165 : vector<16x32xf32>
    %167 = math.exp %166 : vector<16x32xf32>
    %cst_49 = arith.constant 1.000000e+00 : f32
    %168 = vector.broadcast %cst_49 : f32 to vector<16x32xf32>
    %169 = arith.addf %168, %167 : vector<16x32xf32>
    %170 = arith.divf %168, %169 : vector<16x32xf32>
    %171 = vector.extract_strided_slice %170 {offsets = [0, 0], sizes = [16, 8], strides = [1, 1]} : vector<16x32xf32> to vector<16x8xf32>
    %172 = vector.extract_strided_slice %170 {offsets = [0, 8], sizes = [16, 8], strides = [1, 1]} : vector<16x32xf32> to vector<16x8xf32>
    %173 = vector.extract_strided_slice %170 {offsets = [0, 16], sizes = [16, 8], strides = [1, 1]} : vector<16x32xf32> to vector<16x8xf32>
    %cst_50 = arith.constant 2.000000e+00 : f32
    %174 = vector.broadcast %cst_50 : f32 to vector<16x8xf32>
    %175 = arith.mulf %174, %173 : vector<16x8xf32>
    %cst_51 = arith.constant 1.000000e+00 : f32
    %176 = vector.broadcast %cst_51 : f32 to vector<16x8xf32>
    %177 = arith.subf %175, %176 : vector<16x8xf32>
    %178 = vector.extract_strided_slice %170 {offsets = [0, 24], sizes = [16, 8], strides = [1, 1]} : vector<16x32xf32> to vector<16x8xf32>
    %179 = arith.mulf %172, %138 : vector<16x8xf32>
    %180 = arith.mulf %171, %177 : vector<16x8xf32>
    %181 = arith.addf %179, %180 : vector<16x8xf32>
    %182 = math.tanh %181 : vector<16x8xf32>
    %183 = arith.mulf %178, %182 : vector<16x8xf32>
    %c64 = arith.constant 64 : index
    %c0_52 = arith.constant 0 : index
    %184 = vector.load %arg10[%c64, %c0_52] : memref<128x32xf32, #tpu.memory_space<vmem>>, vector<16x32xf32>
    %cst_53 = arith.constant dense<0.000000e+00> : vector<16x32xf32>
    %185 = tpu.matmul %161, %0, %cst_53 {dimension_numbers = #tpu.dot_dimension_numbers<[1], [0], [0], [1], [0, 0, 1, 1], [], []>} : vector<16x8xf32>, vector<8x32xf32>, vector<16x32xf32> -> vector<16x32xf32>
    %186 = arith.addf %184, %185 : vector<16x32xf32>
    %187 = arith.negf %186 : vector<16x32xf32>
    %188 = math.exp %187 : vector<16x32xf32>
    %cst_54 = arith.constant 1.000000e+00 : f32
    %189 = vector.broadcast %cst_54 : f32 to vector<16x32xf32>
    %190 = arith.addf %189, %188 : vector<16x32xf32>
    %191 = arith.divf %189, %190 : vector<16x32xf32>
    %192 = vector.extract_strided_slice %191 {offsets = [0, 0], sizes = [16, 8], strides = [1, 1]} : vector<16x32xf32> to vector<16x8xf32>
    %193 = vector.extract_strided_slice %191 {offsets = [0, 8], sizes = [16, 8], strides = [1, 1]} : vector<16x32xf32> to vector<16x8xf32>
    %194 = vector.extract_strided_slice %191 {offsets = [0, 16], sizes = [16, 8], strides = [1, 1]} : vector<16x32xf32> to vector<16x8xf32>
    %cst_55 = arith.constant 2.000000e+00 : f32
    %195 = vector.broadcast %cst_55 : f32 to vector<16x8xf32>
    %196 = arith.mulf %195, %194 : vector<16x8xf32>
    %cst_56 = arith.constant 1.000000e+00 : f32
    %197 = vector.broadcast %cst_56 : f32 to vector<16x8xf32>
    %198 = arith.subf %196, %197 : vector<16x8xf32>
    %199 = vector.extract_strided_slice %191 {offsets = [0, 24], sizes = [16, 8], strides = [1, 1]} : vector<16x32xf32> to vector<16x8xf32>
    %200 = arith.mulf %193, %159 : vector<16x8xf32>
    %201 = arith.mulf %192, %198 : vector<16x8xf32>
    %202 = arith.addf %200, %201 : vector<16x8xf32>
    %203 = math.tanh %202 : vector<16x8xf32>
    %204 = arith.mulf %199, %203 : vector<16x8xf32>
    %205 = tpu.concatenate %204, %183 in 1 : vector<16x8xf32>, vector<16x8xf32> -> vector<16x16xf32>
    %cst_57 = arith.constant dense<0.000000e+00> : vector<16x32xf32>
    %206 = tpu.matmul %205, %1, %cst_57 {dimension_numbers = #tpu.dot_dimension_numbers<[1], [0], [0], [1], [0, 0, 1, 1], [], []>} : vector<16x16xf32>, vector<16x32xf32>, vector<16x32xf32> -> vector<16x32xf32>
    %207 = vector.broadcast %2 : vector<1x32xf32> to vector<16x32xf32>
    %208 = arith.addf %206, %207 : vector<16x32xf32>
    %209 = arith.negf %208 : vector<16x32xf32>
    %210 = math.exp %209 : vector<16x32xf32>
    %cst_58 = arith.constant 1.000000e+00 : f32
    %211 = vector.broadcast %cst_58 : f32 to vector<16x32xf32>
    %212 = arith.addf %211, %210 : vector<16x32xf32>
    %213 = arith.divf %211, %212 : vector<16x32xf32>
    %214 = vector.extract_strided_slice %213 {offsets = [0, 0], sizes = [16, 8], strides = [1, 1]} : vector<16x32xf32> to vector<16x8xf32>
    %215 = vector.extract_strided_slice %213 {offsets = [0, 8], sizes = [16, 8], strides = [1, 1]} : vector<16x32xf32> to vector<16x8xf32>
    %216 = vector.extract_strided_slice %213 {offsets = [0, 16], sizes = [16, 8], strides = [1, 1]} : vector<16x32xf32> to vector<16x8xf32>
    %cst_59 = arith.constant 2.000000e+00 : f32
    %217 = vector.broadcast %cst_59 : f32 to vector<16x8xf32>
    %218 = arith.mulf %217, %216 : vector<16x8xf32>
    %cst_60 = arith.constant 1.000000e+00 : f32
    %219 = vector.broadcast %cst_60 : f32 to vector<16x8xf32>
    %220 = arith.subf %218, %219 : vector<16x8xf32>
    %221 = vector.extract_strided_slice %213 {offsets = [0, 24], sizes = [16, 8], strides = [1, 1]} : vector<16x32xf32> to vector<16x8xf32>
    %222 = arith.mulf %215, %181 : vector<16x8xf32>
    %223 = arith.mulf %214, %220 : vector<16x8xf32>
    %224 = arith.addf %222, %223 : vector<16x8xf32>
    %225 = math.tanh %224 : vector<16x8xf32>
    %226 = arith.mulf %221, %225 : vector<16x8xf32>
    %c80 = arith.constant 80 : index
    %c0_61 = arith.constant 0 : index
    %227 = vector.load %arg10[%c80, %c0_61] : memref<128x32xf32, #tpu.memory_space<vmem>>, vector<16x32xf32>
    %cst_62 = arith.constant dense<0.000000e+00> : vector<16x32xf32>
    %228 = tpu.matmul %204, %0, %cst_62 {dimension_numbers = #tpu.dot_dimension_numbers<[1], [0], [0], [1], [0, 0, 1, 1], [], []>} : vector<16x8xf32>, vector<8x32xf32>, vector<16x32xf32> -> vector<16x32xf32>
    %229 = arith.addf %227, %228 : vector<16x32xf32>
    %230 = arith.negf %229 : vector<16x32xf32>
    %231 = math.exp %230 : vector<16x32xf32>
    %cst_63 = arith.constant 1.000000e+00 : f32
    %232 = vector.broadcast %cst_63 : f32 to vector<16x32xf32>
    %233 = arith.addf %232, %231 : vector<16x32xf32>
    %234 = arith.divf %232, %233 : vector<16x32xf32>
    %235 = vector.extract_strided_slice %234 {offsets = [0, 0], sizes = [16, 8], strides = [1, 1]} : vector<16x32xf32> to vector<16x8xf32>
    %236 = vector.extract_strided_slice %234 {offsets = [0, 8], sizes = [16, 8], strides = [1, 1]} : vector<16x32xf32> to vector<16x8xf32>
    %237 = vector.extract_strided_slice %234 {offsets = [0, 16], sizes = [16, 8], strides = [1, 1]} : vector<16x32xf32> to vector<16x8xf32>
    %cst_64 = arith.constant 2.000000e+00 : f32
    %238 = vector.broadcast %cst_64 : f32 to vector<16x8xf32>
    %239 = arith.mulf %238, %237 : vector<16x8xf32>
    %cst_65 = arith.constant 1.000000e+00 : f32
    %240 = vector.broadcast %cst_65 : f32 to vector<16x8xf32>
    %241 = arith.subf %239, %240 : vector<16x8xf32>
    %242 = vector.extract_strided_slice %234 {offsets = [0, 24], sizes = [16, 8], strides = [1, 1]} : vector<16x32xf32> to vector<16x8xf32>
    %243 = arith.mulf %236, %202 : vector<16x8xf32>
    %244 = arith.mulf %235, %241 : vector<16x8xf32>
    %245 = arith.addf %243, %244 : vector<16x8xf32>
    %246 = math.tanh %245 : vector<16x8xf32>
    %247 = arith.mulf %242, %246 : vector<16x8xf32>
    %248 = tpu.concatenate %247, %226 in 1 : vector<16x8xf32>, vector<16x8xf32> -> vector<16x16xf32>
    %cst_66 = arith.constant dense<0.000000e+00> : vector<16x32xf32>
    %249 = tpu.matmul %248, %1, %cst_66 {dimension_numbers = #tpu.dot_dimension_numbers<[1], [0], [0], [1], [0, 0, 1, 1], [], []>} : vector<16x16xf32>, vector<16x32xf32>, vector<16x32xf32> -> vector<16x32xf32>
    %250 = vector.broadcast %2 : vector<1x32xf32> to vector<16x32xf32>
    %251 = arith.addf %249, %250 : vector<16x32xf32>
    %252 = arith.negf %251 : vector<16x32xf32>
    %253 = math.exp %252 : vector<16x32xf32>
    %cst_67 = arith.constant 1.000000e+00 : f32
    %254 = vector.broadcast %cst_67 : f32 to vector<16x32xf32>
    %255 = arith.addf %254, %253 : vector<16x32xf32>
    %256 = arith.divf %254, %255 : vector<16x32xf32>
    %257 = vector.extract_strided_slice %256 {offsets = [0, 0], sizes = [16, 8], strides = [1, 1]} : vector<16x32xf32> to vector<16x8xf32>
    %258 = vector.extract_strided_slice %256 {offsets = [0, 8], sizes = [16, 8], strides = [1, 1]} : vector<16x32xf32> to vector<16x8xf32>
    %259 = vector.extract_strided_slice %256 {offsets = [0, 16], sizes = [16, 8], strides = [1, 1]} : vector<16x32xf32> to vector<16x8xf32>
    %cst_68 = arith.constant 2.000000e+00 : f32
    %260 = vector.broadcast %cst_68 : f32 to vector<16x8xf32>
    %261 = arith.mulf %260, %259 : vector<16x8xf32>
    %cst_69 = arith.constant 1.000000e+00 : f32
    %262 = vector.broadcast %cst_69 : f32 to vector<16x8xf32>
    %263 = arith.subf %261, %262 : vector<16x8xf32>
    %264 = vector.extract_strided_slice %256 {offsets = [0, 24], sizes = [16, 8], strides = [1, 1]} : vector<16x32xf32> to vector<16x8xf32>
    %265 = arith.mulf %258, %224 : vector<16x8xf32>
    %266 = arith.mulf %257, %263 : vector<16x8xf32>
    %267 = arith.addf %265, %266 : vector<16x8xf32>
    %268 = math.tanh %267 : vector<16x8xf32>
    %269 = arith.mulf %264, %268 : vector<16x8xf32>
    %c96 = arith.constant 96 : index
    %c0_70 = arith.constant 0 : index
    %270 = vector.load %arg10[%c96, %c0_70] : memref<128x32xf32, #tpu.memory_space<vmem>>, vector<16x32xf32>
    %cst_71 = arith.constant dense<0.000000e+00> : vector<16x32xf32>
    %271 = tpu.matmul %247, %0, %cst_71 {dimension_numbers = #tpu.dot_dimension_numbers<[1], [0], [0], [1], [0, 0, 1, 1], [], []>} : vector<16x8xf32>, vector<8x32xf32>, vector<16x32xf32> -> vector<16x32xf32>
    %272 = arith.addf %270, %271 : vector<16x32xf32>
    %273 = arith.negf %272 : vector<16x32xf32>
    %274 = math.exp %273 : vector<16x32xf32>
    %cst_72 = arith.constant 1.000000e+00 : f32
    %275 = vector.broadcast %cst_72 : f32 to vector<16x32xf32>
    %276 = arith.addf %275, %274 : vector<16x32xf32>
    %277 = arith.divf %275, %276 : vector<16x32xf32>
    %278 = vector.extract_strided_slice %277 {offsets = [0, 0], sizes = [16, 8], strides = [1, 1]} : vector<16x32xf32> to vector<16x8xf32>
    %279 = vector.extract_strided_slice %277 {offsets = [0, 8], sizes = [16, 8], strides = [1, 1]} : vector<16x32xf32> to vector<16x8xf32>
    %280 = vector.extract_strided_slice %277 {offsets = [0, 16], sizes = [16, 8], strides = [1, 1]} : vector<16x32xf32> to vector<16x8xf32>
    %cst_73 = arith.constant 2.000000e+00 : f32
    %281 = vector.broadcast %cst_73 : f32 to vector<16x8xf32>
    %282 = arith.mulf %281, %280 : vector<16x8xf32>
    %cst_74 = arith.constant 1.000000e+00 : f32
    %283 = vector.broadcast %cst_74 : f32 to vector<16x8xf32>
    %284 = arith.subf %282, %283 : vector<16x8xf32>
    %285 = vector.extract_strided_slice %277 {offsets = [0, 24], sizes = [16, 8], strides = [1, 1]} : vector<16x32xf32> to vector<16x8xf32>
    %286 = arith.mulf %279, %245 : vector<16x8xf32>
    %287 = arith.mulf %278, %284 : vector<16x8xf32>
    %288 = arith.addf %286, %287 : vector<16x8xf32>
    %289 = math.tanh %288 : vector<16x8xf32>
    %290 = arith.mulf %285, %289 : vector<16x8xf32>
    %291 = tpu.concatenate %290, %269 in 1 : vector<16x8xf32>, vector<16x8xf32> -> vector<16x16xf32>
    %cst_75 = arith.constant dense<0.000000e+00> : vector<16x32xf32>
    %292 = tpu.matmul %291, %1, %cst_75 {dimension_numbers = #tpu.dot_dimension_numbers<[1], [0], [0], [1], [0, 0, 1, 1], [], []>} : vector<16x16xf32>, vector<16x32xf32>, vector<16x32xf32> -> vector<16x32xf32>
    %293 = vector.broadcast %2 : vector<1x32xf32> to vector<16x32xf32>
    %294 = arith.addf %292, %293 : vector<16x32xf32>
    %295 = arith.negf %294 : vector<16x32xf32>
    %296 = math.exp %295 : vector<16x32xf32>
    %cst_76 = arith.constant 1.000000e+00 : f32
    %297 = vector.broadcast %cst_76 : f32 to vector<16x32xf32>
    %298 = arith.addf %297, %296 : vector<16x32xf32>
    %299 = arith.divf %297, %298 : vector<16x32xf32>
    %300 = vector.extract_strided_slice %299 {offsets = [0, 0], sizes = [16, 8], strides = [1, 1]} : vector<16x32xf32> to vector<16x8xf32>
    %301 = vector.extract_strided_slice %299 {offsets = [0, 8], sizes = [16, 8], strides = [1, 1]} : vector<16x32xf32> to vector<16x8xf32>
    %302 = vector.extract_strided_slice %299 {offsets = [0, 16], sizes = [16, 8], strides = [1, 1]} : vector<16x32xf32> to vector<16x8xf32>
    %cst_77 = arith.constant 2.000000e+00 : f32
    %303 = vector.broadcast %cst_77 : f32 to vector<16x8xf32>
    %304 = arith.mulf %303, %302 : vector<16x8xf32>
    %cst_78 = arith.constant 1.000000e+00 : f32
    %305 = vector.broadcast %cst_78 : f32 to vector<16x8xf32>
    %306 = arith.subf %304, %305 : vector<16x8xf32>
    %307 = vector.extract_strided_slice %299 {offsets = [0, 24], sizes = [16, 8], strides = [1, 1]} : vector<16x32xf32> to vector<16x8xf32>
    %308 = arith.mulf %301, %267 : vector<16x8xf32>
    %309 = arith.mulf %300, %306 : vector<16x8xf32>
    %310 = arith.addf %308, %309 : vector<16x8xf32>
    %311 = math.tanh %310 : vector<16x8xf32>
    %312 = arith.mulf %307, %311 : vector<16x8xf32>
    %c112 = arith.constant 112 : index
    %c0_79 = arith.constant 0 : index
    %313 = vector.load %arg10[%c112, %c0_79] : memref<128x32xf32, #tpu.memory_space<vmem>>, vector<16x32xf32>
    %cst_80 = arith.constant dense<0.000000e+00> : vector<16x32xf32>
    %314 = tpu.matmul %290, %0, %cst_80 {dimension_numbers = #tpu.dot_dimension_numbers<[1], [0], [0], [1], [0, 0, 1, 1], [], []>} : vector<16x8xf32>, vector<8x32xf32>, vector<16x32xf32> -> vector<16x32xf32>
    %315 = arith.addf %313, %314 : vector<16x32xf32>
    %316 = arith.negf %315 : vector<16x32xf32>
    %317 = math.exp %316 : vector<16x32xf32>
    %cst_81 = arith.constant 1.000000e+00 : f32
    %318 = vector.broadcast %cst_81 : f32 to vector<16x32xf32>
    %319 = arith.addf %318, %317 : vector<16x32xf32>
    %320 = arith.divf %318, %319 : vector<16x32xf32>
    %321 = vector.extract_strided_slice %320 {offsets = [0, 0], sizes = [16, 8], strides = [1, 1]} : vector<16x32xf32> to vector<16x8xf32>
    %322 = vector.extract_strided_slice %320 {offsets = [0, 8], sizes = [16, 8], strides = [1, 1]} : vector<16x32xf32> to vector<16x8xf32>
    %323 = vector.extract_strided_slice %320 {offsets = [0, 16], sizes = [16, 8], strides = [1, 1]} : vector<16x32xf32> to vector<16x8xf32>
    %cst_82 = arith.constant 2.000000e+00 : f32
    %324 = vector.broadcast %cst_82 : f32 to vector<16x8xf32>
    %325 = arith.mulf %324, %323 : vector<16x8xf32>
    %cst_83 = arith.constant 1.000000e+00 : f32
    %326 = vector.broadcast %cst_83 : f32 to vector<16x8xf32>
    %327 = arith.subf %325, %326 : vector<16x8xf32>
    %328 = vector.extract_strided_slice %320 {offsets = [0, 24], sizes = [16, 8], strides = [1, 1]} : vector<16x32xf32> to vector<16x8xf32>
    %329 = arith.mulf %322, %288 : vector<16x8xf32>
    %330 = arith.mulf %321, %327 : vector<16x8xf32>
    %331 = arith.addf %329, %330 : vector<16x8xf32>
    %332 = math.tanh %331 : vector<16x8xf32>
    %333 = arith.mulf %328, %332 : vector<16x8xf32>
    %334 = tpu.concatenate %333, %312 in 1 : vector<16x8xf32>, vector<16x8xf32> -> vector<16x16xf32>
    %cst_84 = arith.constant dense<0.000000e+00> : vector<16x32xf32>
    %335 = tpu.matmul %334, %1, %cst_84 {dimension_numbers = #tpu.dot_dimension_numbers<[1], [0], [0], [1], [0, 0, 1, 1], [], []>} : vector<16x16xf32>, vector<16x32xf32>, vector<16x32xf32> -> vector<16x32xf32>
    %336 = vector.broadcast %2 : vector<1x32xf32> to vector<16x32xf32>
    %337 = arith.addf %335, %336 : vector<16x32xf32>
    %338 = arith.negf %337 : vector<16x32xf32>
    %339 = math.exp %338 : vector<16x32xf32>
    %cst_85 = arith.constant 1.000000e+00 : f32
    %340 = vector.broadcast %cst_85 : f32 to vector<16x32xf32>
    %341 = arith.addf %340, %339 : vector<16x32xf32>
    %342 = arith.divf %340, %341 : vector<16x32xf32>
    %343 = vector.extract_strided_slice %342 {offsets = [0, 0], sizes = [16, 8], strides = [1, 1]} : vector<16x32xf32> to vector<16x8xf32>
    %344 = vector.extract_strided_slice %342 {offsets = [0, 8], sizes = [16, 8], strides = [1, 1]} : vector<16x32xf32> to vector<16x8xf32>
    %345 = vector.extract_strided_slice %342 {offsets = [0, 16], sizes = [16, 8], strides = [1, 1]} : vector<16x32xf32> to vector<16x8xf32>
    %cst_86 = arith.constant 2.000000e+00 : f32
    %346 = vector.broadcast %cst_86 : f32 to vector<16x8xf32>
    %347 = arith.mulf %346, %345 : vector<16x8xf32>
    %cst_87 = arith.constant 1.000000e+00 : f32
    %348 = vector.broadcast %cst_87 : f32 to vector<16x8xf32>
    %349 = arith.subf %347, %348 : vector<16x8xf32>
    %350 = vector.extract_strided_slice %342 {offsets = [0, 24], sizes = [16, 8], strides = [1, 1]} : vector<16x32xf32> to vector<16x8xf32>
    %351 = arith.mulf %344, %310 : vector<16x8xf32>
    %352 = arith.mulf %343, %349 : vector<16x8xf32>
    %353 = arith.addf %351, %352 : vector<16x8xf32>
    %354 = math.tanh %353 : vector<16x8xf32>
    %355 = arith.mulf %350, %354 : vector<16x8xf32>
    %c64_88 = arith.constant 64 : index
    %c0_89 = arith.constant 0 : index
    %356 = vector.load %arg10[%c64_88, %c0_89] : memref<128x32xf32, #tpu.memory_space<vmem>>, vector<16x32xf32>
    %cst_90 = arith.constant dense<0.000000e+00> : vector<16x32xf32>
    %357 = tpu.matmul %333, %0, %cst_90 {dimension_numbers = #tpu.dot_dimension_numbers<[1], [0], [0], [1], [0, 0, 1, 1], [], []>} : vector<16x8xf32>, vector<8x32xf32>, vector<16x32xf32> -> vector<16x32xf32>
    %358 = arith.addf %356, %357 : vector<16x32xf32>
    %359 = arith.negf %358 : vector<16x32xf32>
    %360 = math.exp %359 : vector<16x32xf32>
    %cst_91 = arith.constant 1.000000e+00 : f32
    %361 = vector.broadcast %cst_91 : f32 to vector<16x32xf32>
    %362 = arith.addf %361, %360 : vector<16x32xf32>
    %363 = arith.divf %361, %362 : vector<16x32xf32>
    %364 = vector.extract_strided_slice %363 {offsets = [0, 0], sizes = [16, 8], strides = [1, 1]} : vector<16x32xf32> to vector<16x8xf32>
    %365 = vector.extract_strided_slice %363 {offsets = [0, 8], sizes = [16, 8], strides = [1, 1]} : vector<16x32xf32> to vector<16x8xf32>
    %366 = vector.extract_strided_slice %363 {offsets = [0, 16], sizes = [16, 8], strides = [1, 1]} : vector<16x32xf32> to vector<16x8xf32>
    %cst_92 = arith.constant 2.000000e+00 : f32
    %367 = vector.broadcast %cst_92 : f32 to vector<16x8xf32>
    %368 = arith.mulf %367, %366 : vector<16x8xf32>
    %cst_93 = arith.constant 1.000000e+00 : f32
    %369 = vector.broadcast %cst_93 : f32 to vector<16x8xf32>
    %370 = arith.subf %368, %369 : vector<16x8xf32>
    %371 = vector.extract_strided_slice %363 {offsets = [0, 24], sizes = [16, 8], strides = [1, 1]} : vector<16x32xf32> to vector<16x8xf32>
    %372 = arith.mulf %365, %331 : vector<16x8xf32>
    %373 = arith.mulf %364, %370 : vector<16x8xf32>
    %374 = arith.addf %372, %373 : vector<16x8xf32>
    %375 = math.tanh %374 : vector<16x8xf32>
    %376 = arith.mulf %371, %375 : vector<16x8xf32>
    %377 = tpu.concatenate %376, %355 in 1 : vector<16x8xf32>, vector<16x8xf32> -> vector<16x16xf32>
    %cst_94 = arith.constant dense<0.000000e+00> : vector<16x32xf32>
    %378 = tpu.matmul %377, %1, %cst_94 {dimension_numbers = #tpu.dot_dimension_numbers<[1], [0], [0], [1], [0, 0, 1, 1], [], []>} : vector<16x16xf32>, vector<16x32xf32>, vector<16x32xf32> -> vector<16x32xf32>
    %379 = vector.broadcast %2 : vector<1x32xf32> to vector<16x32xf32>
    %380 = arith.addf %378, %379 : vector<16x32xf32>
    %381 = arith.negf %380 : vector<16x32xf32>
    %382 = math.exp %381 : vector<16x32xf32>
    %cst_95 = arith.constant 1.000000e+00 : f32
    %383 = vector.broadcast %cst_95 : f32 to vector<16x32xf32>
    %384 = arith.addf %383, %382 : vector<16x32xf32>
    %385 = arith.divf %383, %384 : vector<16x32xf32>
    %386 = vector.extract_strided_slice %385 {offsets = [0, 0], sizes = [16, 8], strides = [1, 1]} : vector<16x32xf32> to vector<16x8xf32>
    %387 = vector.extract_strided_slice %385 {offsets = [0, 8], sizes = [16, 8], strides = [1, 1]} : vector<16x32xf32> to vector<16x8xf32>
    %388 = vector.extract_strided_slice %385 {offsets = [0, 16], sizes = [16, 8], strides = [1, 1]} : vector<16x32xf32> to vector<16x8xf32>
    %cst_96 = arith.constant 2.000000e+00 : f32
    %389 = vector.broadcast %cst_96 : f32 to vector<16x8xf32>
    %390 = arith.mulf %389, %388 : vector<16x8xf32>
    %cst_97 = arith.constant 1.000000e+00 : f32
    %391 = vector.broadcast %cst_97 : f32 to vector<16x8xf32>
    %392 = arith.subf %390, %391 : vector<16x8xf32>
    %393 = vector.extract_strided_slice %385 {offsets = [0, 24], sizes = [16, 8], strides = [1, 1]} : vector<16x32xf32> to vector<16x8xf32>
    %394 = arith.mulf %387, %353 : vector<16x8xf32>
    %395 = arith.mulf %386, %392 : vector<16x8xf32>
    %396 = arith.addf %394, %395 : vector<16x8xf32>
    %397 = math.tanh %396 : vector<16x8xf32>
    %398 = arith.mulf %393, %397 : vector<16x8xf32>
    %c0_98 = arith.constant 0 : index
    %c0_99 = arith.constant 0 : index
    %399 = vector.load %arg7[%c0_98, %c0_99] : memref<1x8xf32, #tpu.memory_space<vmem>>, vector<1x8xf32>
    %400 = vector.broadcast %399 : vector<1x8xf32> to vector<16x8xf32>
    %401 = arith.mulf %398, %400 : vector<16x8xf32>
    %cst_100 = arith.constant dense<0.000000e+00> : vector<16xf32>
    %402 = vector.multi_reduction <add>, %401, %cst_100 [1] : vector<16x8xf32> to vector<16xf32>
    %403 = vector.shape_cast %402 : vector<16xf32> to vector<16x1xf32>
    %c0_101 = arith.constant 0 : index
    %c0_102 = arith.constant 0 : index
    %404 = vector.load %arg8[%c0_101, %c0_102] : memref<1x1xf32, #tpu.memory_space<vmem>>, vector<1x1xf32>
    %405 = vector.broadcast %404 : vector<1x1xf32> to vector<16x1xf32>
    %406 = arith.addf %403, %405 : vector<16x1xf32>
    %c0_103 = arith.constant 0 : index
    %c0_104 = arith.constant 0 : index
    %407 = vector.load %arg9[%c0_103, %c0_104] : memref<16x1xf32, #tpu.memory_space<vmem>>, vector<16x1xf32>
    tpu.vector_store %arg9[%c0_103, %c0_104], %406 {strides = array<i32>} : memref<16x1xf32, #tpu.memory_space<vmem>>, vector<16x1xf32>,
    return
  }
  func.func @transform_0(%arg0: i32) -> (i32, i32, i32) {
    %c0_i32 = arith.constant 0 : i32
    %c0_i32_0 = arith.constant 0 : i32
    %c0_i32_1 = arith.constant 0 : i32
    return %c0_i32, %arg0, %c0_i32_0 : i32, i32, i32
  }
  func.func @transform_1(%arg0: i32) -> (i32, i32) {
    %c0_i32 = arith.constant 0 : i32
    %c0_i32_0 = arith.constant 0 : i32
    %c0_i32_1 = arith.constant 0 : i32
    return %c0_i32, %c0_i32_0 : i32, i32
  }
  func.func @transform_2(%arg0: i32) -> (i32, i32) {
    %c0_i32 = arith.constant 0 : i32
    %c0_i32_0 = arith.constant 0 : i32
    %c0_i32_1 = arith.constant 0 : i32
    return %c0_i32, %c0_i32_0 : i32, i32
  }
  func.func @transform_3(%arg0: i32) -> (i32, i32) {
    %c0_i32 = arith.constant 0 : i32
    %c0_i32_0 = arith.constant 0 : i32
    %c0_i32_1 = arith.constant 0 : i32
    return %c0_i32, %c0_i32_0 : i32, i32
  }
  func.func @transform_4(%arg0: i32) -> (i32, i32) {
    %c0_i32 = arith.constant 0 : i32
    %c0_i32_0 = arith.constant 0 : i32
    %c0_i32_1 = arith.constant 0 : i32
    return %c0_i32, %c0_i32_0 : i32, i32
  }
  func.func @transform_5(%arg0: i32) -> (i32, i32) {
    %c0_i32 = arith.constant 0 : i32
    %c0_i32_0 = arith.constant 0 : i32
    %c0_i32_1 = arith.constant 0 : i32
    return %c0_i32, %c0_i32_0 : i32, i32
  }
  func.func @transform_6(%arg0: i32) -> (i32, i32) {
    %c0_i32 = arith.constant 0 : i32
    %c0_i32_0 = arith.constant 0 : i32
    %c0_i32_1 = arith.constant 0 : i32
    return %c0_i32, %c0_i32_0 : i32, i32
  }
  func.func @transform_7(%arg0: i32) -> (i32, i32) {
    %c0_i32 = arith.constant 0 : i32
    %c0_i32_0 = arith.constant 0 : i32
    %c0_i32_1 = arith.constant 0 : i32
    return %c0_i32, %c0_i32_0 : i32, i32
  }
  func.func @transform_8(%arg0: i32) -> (i32, i32) {
    %c0_i32 = arith.constant 0 : i32
    %c0_i32_0 = arith.constant 0 : i32
    return %arg0, %c0_i32 : i32, i32
  }
}

</mosaic_0001>

<llo_original>
// kernel: tpu_custom_call.1
$region0: #{tpu_custom_call.1}
  #allocation0 [shape = 'u32[]', space=smem, size = 0x4, offset = 0x4, fixed_abs, tag = 'smem constant byte address 0x4 - core index']
  #allocation1 [shape = 'u32[144,128]{1,0:T(1,128)}', space=vmem, size = 0x12000, scoped, tag = 'internal scratch']
  #allocation2 [shape = 'f32[128,32]{1,0:T(8,128)}', space=vmem, size = 0x10000, scoped, tag = 'scratch operand']
  #allocation3 [shape = 'f32[1,1]{1,0:T(1,128)S(1)}', space=vmem, size = 0x200, scoped, tag = 'scoped memory for tpu_custom_call.1']
  %s0 = inlined_call_operand.vmem [shape: f32[8,16,11], index: 0, kind: input, shape index: {}]
  %s1 = inlined_call_operand.vmem [shape: f32[11,32], index: 1, kind: input, shape index: {}]
  %s2 = inlined_call_operand.vmem [shape: f32[8,32], index: 2, kind: input, shape index: {}]
  %s3 = inlined_call_operand.vmem [shape: f32[1,32], index: 3, kind: input, shape index: {}]
  %s4 = inlined_call_operand.vmem [shape: f32[16,32], index: 4, kind: input, shape index: {}]
  %s5 = inlined_call_operand.vmem [shape: f32[1,32], index: 5, kind: input, shape index: {}]
  %s6 = inlined_call_operand.vmem [shape: f32[1,8], index: 6, kind: input, shape index: {}]
  %s7 = inlined_call_operand.<no memory space> [shape: f32[1,1], index: 7, kind: input, shape index: {}]
  %s8 = inlined_call_operand.vmem [shape: f32[16,1], index: 8, kind: output, shape index: {}]
  %s9 = sld [smem:[#allocation0]]
  $region42: #{tpu_custom_call.1} parent=0
    _
  %s11 = ssub.s32 1, %s9
  %s12 = scalar_select 0, %s11, %s9
  %v13 = vstv %s7
  %14 = vst [vmem:[#allocation3] sm:$0x1] %v13
  // Predicated region
  $region2: #{tpu_custom_call.1} parent=0 // pred_check
    _
  $region3: #{tpu_custom_call.1} parent=0 // pred_check_branch
    %16 = sbr.rel (0) target = $region5
  $region4: #{tpu_custom_call.1} parent=0 // pred_region
    _
  $region5: #{tpu_custom_call.1} parent=0 // pred_fallthru
    _
  // Predicated region
  $region6: #{tpu_custom_call.1} parent=0 // pred_check
    _
  $region7: #{tpu_custom_call.1} parent=0 // pred_check_branch
    %18 = sbr.rel (0) target = $region9
  $region8: #{tpu_custom_call.1} parent=0 // pred_region
    _
  $region9: #{tpu_custom_call.1} parent=0 // pred_fallthru
    _
  // Predicated region
  $region10: #{tpu_custom_call.1} parent=0 // pred_check
    _
  $region11: #{tpu_custom_call.1} parent=0 // pred_check_branch
    %20 = sbr.rel (0) target = $region13
  $region12: #{tpu_custom_call.1} parent=0 // pred_region
    _
  $region13: #{tpu_custom_call.1} parent=0 // pred_fallthru
    _
  // Predicated region
  $region14: #{tpu_custom_call.1} parent=0 // pred_check
    _
  $region15: #{tpu_custom_call.1} parent=0 // pred_check_branch
    %22 = sbr.rel (0) target = $region17
  $region16: #{tpu_custom_call.1} parent=0 // pred_region
    _
  $region17: #{tpu_custom_call.1} parent=0 // pred_fallthru
    _
  // Predicated region
  $region18: #{tpu_custom_call.1} parent=0 // pred_check
    _
  $region19: #{tpu_custom_call.1} parent=0 // pred_check_branch
    %24 = sbr.rel (0) target = $region21
  $region20: #{tpu_custom_call.1} parent=0 // pred_region
    _
  $region21: #{tpu_custom_call.1} parent=0 // pred_fallthru
    _
  // Predicated region
  $region22: #{tpu_custom_call.1} parent=0 // pred_check
    _
  $region23: #{tpu_custom_call.1} parent=0 // pred_check_branch
    %26 = sbr.rel (0) target = $region25
  $region24: #{tpu_custom_call.1} parent=0 // pred_region
    _
  $region25: #{tpu_custom_call.1} parent=0 // pred_fallthru
    _
  // Predicated region
  $region26: #{tpu_custom_call.1} parent=0 // pred_check
    _
  $region27: #{tpu_custom_call.1} parent=0 // pred_check_branch
    %28 = sbr.rel (0) target = $region29
  $region28: #{tpu_custom_call.1} parent=0 // pred_region
    _
  $region29: #{tpu_custom_call.1} parent=0 // pred_fallthru
    _
  // Predicated region
  $region30: #{tpu_custom_call.1} parent=0 // pred_check
    _
  $region31: #{tpu_custom_call.1} parent=0 // pred_check_branch
    %30 = sbr.rel (0) target = $region33
  $region32: #{tpu_custom_call.1} parent=0 // pred_region
    _
  $region33: #{tpu_custom_call.1} parent=0 // pred_fallthru
    _
  %v31 = vld [vmem:[%s2] sm:$0xff]
  %v32 = vld [vmem:[%s4] sm:$0xff]
  %v33 = vld [vmem:[%s4 + $0x8] sm:$0xff]
  %v34 = vld [vmem:[%s5] sm:$0x1]
  %v35 = vld [vmem:[%s0] sm:$0xff]
  %v36 = vld [vmem:[%s0 + $0x8] sm:$0xff]
  %v37 = vld [vmem:[%s0 + $0x10] sm:$0xff]
  %v38 = vld [vmem:[%s0 + $0x18] sm:$0xff]
  %v39 = vld [vmem:[%s0 + $0x20] sm:$0xff]
  %v40 = vld [vmem:[%s0 + $0x28] sm:$0xff]
  %v41 = vld [vmem:[%s0 + $0x30] sm:$0xff]
  %v42 = vld [vmem:[%s0 + $0x38] sm:$0xff]
  %v43 = vld [vmem:[%s0 + $0x40] sm:$0xff]
  %v44 = vld [vmem:[%s0 + $0x48] sm:$0xff]
  %v45 = vld [vmem:[%s0 + $0x50] sm:$0xff]
  %v46 = vld [vmem:[%s0 + $0x58] sm:$0xff]
  %v47 = vld [vmem:[%s0 + $0x60] sm:$0xff]
  %v48 = vld [vmem:[%s0 + $0x68] sm:$0xff]
  %v49 = vld [vmem:[%s0 + $0x70] sm:$0xff]
  %v50 = vld [vmem:[%s0 + $0x78] sm:$0xff]
  %v51 = vld [vmem:[%s1] sm:$0xff]
  %v52 = vld [vmem:[%s1 + $0x8] sm:$0x7]
  %v53 = vld [vmem:[%s3] sm:$0x1]
  %v55 = vlaneseq
  %v56 = vshrl.u32 %v55, 7
  %v57 = vsub.s32 0, %v56
  %v58 = vrot.slane %v53, %v57
  %vm60 = vcmask 89088
  %v62 = vsel %vm60, %v35, 0
  %v65 = vsel %vm60, %v36, 0
  %v68 = vsel %vm60, %v37, 0
  %v71 = vsel %vm60, %v38, 0
  %v74 = vsel %vm60, %v39, 0
  %v77 = vsel %vm60, %v40, 0
  %v80 = vsel %vm60, %v41, 0
  %v83 = vsel %vm60, %v42, 0
  %v86 = vsel %vm60, %v43, 0
  %v89 = vsel %vm60, %v44, 0
  %v92 = vsel %vm60, %v45, 0
  %v95 = vsel %vm60, %v46, 0
  %v98 = vsel %vm60, %v47, 0
  %v101 = vsel %vm60, %v48, 0
  %v104 = vsel %vm60, %v49, 0
  %v107 = vsel %vm60, %v50, 0
  %vm109 = vcmask 1042432
  %v111 = vsel %vm109, %v52, 0
  %113 = vmatprep.subr.mxu0 0.0
  %114 = vmatpush1.msra.mxu0 %v51
  %115 = vmatprep.subr.mxu0 0.0
  %116 = vmatpush1.msra.mxu0 %v111
  %117 = vmatprep.subr.mxu0 0.0
  %118 = vmatpush1.msra.mxu0 0.0
  %119 = vmatprep.subr.mxu0 0.0
  %120 = vmatpush1.msra.mxu0 0.0
  %121 = vmatprep.subr.mxu0 0.0
  %122 = vmatpush1.msra.mxu0 0.0
  %123 = vmatprep.subr.mxu0 0.0
  %124 = vmatpush1.msra.mxu0 0.0
  %125 = vmatprep.subr.mxu0 0.0
  %126 = vmatpush1.msra.mxu0 0.0
  %127 = vmatprep.subr.mxu0 0.0
  %128 = vmatpush1.msra.mxu0 0.0
  %129 = vmatprep.subr.mxu0 0.0
  %130 = vmatpush1.msra.mxu0 0.0
  %131 = vmatprep.subr.mxu0 0.0
  %132 = vmatpush1.msra.mxu0 0.0
  %133 = vmatprep.subr.mxu0 0.0
  %134 = vmatpush1.msra.mxu0 0.0
  %135 = vmatprep.subr.mxu0 0.0
  %136 = vmatpush1.msra.mxu0 0.0
  %137 = vmatprep.subr.mxu0 0.0
  %138 = vmatpush1.msra.mxu0 0.0
  %139 = vmatprep.subr.mxu0 0.0
  %140 = vmatpush1.msra.mxu0 0.0
  %141 = vmatprep.subr.mxu0 0.0
  %142 = vmatpush1.msra.mxu0 0.0
  %143 = vmatprep.subr.mxu0 0.0
  %144 = vmatpush1.msra.mxu0 0.0
  %145 = vmatprep.subr.mxu0 0.0
  %146 = vmatpush1.msra.mxu0 0.0
  %147 = vmatprep.subr.mxu0 0.0
  %148 = vmatpush1.msra.mxu0 0.0
  %149 = vmatprep.subr.mxu0 0.0
  %150 = vmatpush1.msra.mxu0 0.0
  %151 = vmatprep.subr.mxu0 0.0
  %152 = vmatpush1.msra.mxu0 0.0
  %153 = vmatprep.subr.mxu0 0.0
  %154 = vmatpush1.msra.mxu0 0.0
  %155 = vmatprep.subr.mxu0 0.0
  %156 = vmatpush1.msra.mxu0 0.0
  %157 = vmatprep.subr.mxu0 0.0
  %158 = vmatpush1.msra.mxu0 0.0
  %159 = vmatprep.subr.mxu0 0.0
  %160 = vmatpush1.msra.mxu0 0.0
  %161 = vmatprep.subr.mxu0 0.0
  %162 = vmatpush1.msra.mxu0 0.0
  %163 = vmatprep.subr.mxu0 0.0
  %164 = vmatpush1.msra.mxu0 0.0
  %165 = vmatprep.subr.mxu0 0.0
  %166 = vmatpush1.msra.mxu0 0.0
  %167 = vmatprep.subr.mxu0 0.0
  %168 = vmatpush1.msra.mxu0 0.0
  %169 = vmatprep.subr.mxu0 0.0
  %170 = vmatpush1.msra.mxu0 0.0
  %171 = vmatprep.subr.mxu0 0.0
  %172 = vmatpush1.msra.mxu0 0.0
  %173 = vmatprep.subr.mxu0 0.0
  %174 = vmatpush1.msra.mxu0 0.0
  %175 = vmatprep.subr.mxu0 0.0
  %176 = vmatpush1.msra.mxu0 0.0
  %177 = vmatprep.mubr.f32.mxu0 0.0
  %178 = vmatmul.mubr.f32.gmra.mrb[0].mxu0 %v62
  %v179 = vpop.f32.mrb[0].mxu0
  %v180 = vadd.f32 %v58, %v179
  %v181 = vpop.f32.mrb[0].mxu0
  %182 = vmatprep.mubr.f32.mxu0 0.0
  %183 = vmatmul.mubr.f32.gmra.mrb[0].mxu0 %v65
  %v184 = vpop.f32.mrb[0].mxu0
  %v185 = vadd.f32 %v58, %v184
  %v186 = vpop.f32.mrb[0].mxu0
  %187 = vmatprep.mubr.f32.mxu0 0.0
  %188 = vmatmul.mubr.f32.gmra.mrb[0].mxu0 %v68
  %v189 = vpop.f32.mrb[0].mxu0
  %v190 = vadd.f32 %v58, %v189
  %v191 = vpop.f32.mrb[0].mxu0
  %192 = vmatprep.mubr.f32.mxu0 0.0
  %193 = vmatmul.mubr.f32.gmra.mrb[0].mxu0 %v71
  %v194 = vpop.f32.mrb[0].mxu0
  %v195 = vadd.f32 %v58, %v194
  %v196 = vpop.f32.mrb[0].mxu0
  %197 = vmatprep.mubr.f32.mxu0 0.0
  %198 = vmatmul.mubr.f32.gmra.mrb[0].mxu0 %v74
  %v199 = vpop.f32.mrb[0].mxu0
  %v200 = vadd.f32 %v58, %v199
  %v201 = vpop.f32.mrb[0].mxu0
  %202 = vmatprep.mubr.f32.mxu0 0.0
  %203 = vmatmul.mubr.f32.gmra.mrb[0].mxu0 %v77
  %v204 = vpop.f32.mrb[0].mxu0
  %v205 = vadd.f32 %v58, %v204
  %v206 = vpop.f32.mrb[0].mxu0
  %207 = vmatprep.mubr.f32.mxu0 0.0
  %208 = vmatmul.mubr.f32.gmra.mrb[0].mxu0 %v80
  %v209 = vpop.f32.mrb[0].mxu0
  %v210 = vadd.f32 %v58, %v209
  %v211 = vpop.f32.mrb[0].mxu0
  %212 = vmatprep.mubr.f32.mxu0 0.0
  %213 = vmatmul.mubr.f32.gmra.mrb[0].mxu0 %v83
  %v214 = vpop.f32.mrb[0].mxu0
  %v215 = vadd.f32 %v58, %v214
  %v216 = vpop.f32.mrb[0].mxu0
  %217 = vmatprep.mubr.f32.mxu0 0.0
  %218 = vmatmul.mubr.f32.gmra.mrb[0].mxu0 %v86
  %v219 = vpop.f32.mrb[0].mxu0
  %v220 = vadd.f32 %v58, %v219
  %v221 = vpop.f32.mrb[0].mxu0
  %222 = vmatprep.mubr.f32.mxu0 0.0
  %223 = vmatmul.mubr.f32.gmra.mrb[0].mxu0 %v89
  %v224 = vpop.f32.mrb[0].mxu0
  %v225 = vadd.f32 %v58, %v224
  %v226 = vpop.f32.mrb[0].mxu0
  %227 = vmatprep.mubr.f32.mxu0 0.0
  %228 = vmatmul.mubr.f32.gmra.mrb[0].mxu0 %v92
  %v229 = vpop.f32.mrb[0].mxu0
  %v230 = vadd.f32 %v58, %v229
  %v231 = vpop.f32.mrb[0].mxu0
  %232 = vmatprep.mubr.f32.mxu0 0.0
  %233 = vmatmul.mubr.f32.gmra.mrb[0].mxu0 %v95
  %v234 = vpop.f32.mrb[0].mxu0
  %v235 = vadd.f32 %v58, %v234
  %v236 = vpop.f32.mrb[0].mxu0
  %237 = vmatprep.mubr.f32.mxu0 0.0
  %238 = vmatmul.mubr.f32.gmra.mrb[0].mxu0 %v98
  %v239 = vpop.f32.mrb[0].mxu0
  %v240 = vadd.f32 %v58, %v239
  %v241 = vpop.f32.mrb[0].mxu0
  %242 = vmatprep.mubr.f32.mxu0 0.0
  %243 = vmatmul.mubr.f32.gmra.mrb[0].mxu0 %v101
  %v244 = vpop.f32.mrb[0].mxu0
  %v245 = vadd.f32 %v58, %v244
  %v246 = vpop.f32.mrb[0].mxu0
  %247 = vmatprep.mubr.f32.mxu0 0.0
  %248 = vmatmul.mubr.f32.gmra.mrb[0].mxu0 %v104
  %v249 = vpop.f32.mrb[0].mxu0
  %v250 = vadd.f32 %v58, %v249
  %v251 = vpop.f32.mrb[0].mxu0
  %252 = vmatprep.mubr.f32.mxu0 0.0
  %253 = vmatmul.mubr.f32.gmra.mrb[0].mxu0 %v107
  %v254 = vpop.f32.mrb[0].mxu0
  %v255 = vadd.f32 %v58, %v254
  %v256 = vpop.f32.mrb[0].mxu0
  %257 = vdwg.mxu0
  %vm258 = vcmask 261120
  %259 = vst.msk [vmem:[#allocation2] sm:$0xff] %vm258, %v180
  %260 = vst.msk [vmem:[#allocation2 + $0x8] sm:$0xff] %vm258, %v185
  %261 = vst.msk [vmem:[#allocation2 + $0x10] sm:$0xff] %vm258, %v190
  %262 = vst.msk [vmem:[#allocation2 + $0x18] sm:$0xff] %vm258, %v195
  %263 = vst.msk [vmem:[#allocation2 + $0x20] sm:$0xff] %vm258, %v200
  %264 = vst.msk [vmem:[#allocation2 + $0x28] sm:$0xff] %vm258, %v205
  %265 = vst.msk [vmem:[#allocation2 + $0x30] sm:$0xff] %vm258, %v210
  %266 = vst.msk [vmem:[#allocation2 + $0x38] sm:$0xff] %vm258, %v215
  %267 = vst.msk [vmem:[#allocation2 + $0x40] sm:$0xff] %vm258, %v220
  %268 = vst.msk [vmem:[#allocation2 + $0x48] sm:$0xff] %vm258, %v225
  %269 = vst.msk [vmem:[#allocation2 + $0x50] sm:$0xff] %vm258, %v230
  %270 = vst.msk [vmem:[#allocation2 + $0x58] sm:$0xff] %vm258, %v235
  %271 = vst.msk [vmem:[#allocation2 + $0x60] sm:$0xff] %vm258, %v240
  %272 = vst.msk [vmem:[#allocation2 + $0x68] sm:$0xff] %vm258, %v245
  %273 = vst.msk [vmem:[#allocation2 + $0x70] sm:$0xff] %vm258, %v250
  %274 = vst.msk [vmem:[#allocation2 + $0x78] sm:$0xff] %vm258, %v255
  %v275 = vld [vmem:[#allocation2] sm:$0xff]
  %v276 = vld [vmem:[#allocation2 + $0x8] sm:$0xff]
  %vm277 = vcmask 64512
  %v279 = vsel %vm277, 0.0, 0
  %281 = vmatprep.subr.mxu0 0.0
  %282 = vmatpush1.msra.mxu0 %v31
  %283 = vmatprep.subr.mxu0 0.0
  %284 = vmatpush1.msra.mxu0 0.0
  %285 = vmatprep.subr.mxu0 0.0
  %286 = vmatpush1.msra.mxu0 0.0
  %287 = vmatprep.subr.mxu0 0.0
  %288 = vmatpush1.msra.mxu0 0.0
  %289 = vmatprep.subr.mxu0 0.0
  %290 = vmatpush1.msra.mxu0 0.0
  %291 = vmatprep.subr.mxu0 0.0
  %292 = vmatpush1.msra.mxu0 0.0
  %293 = vmatprep.subr.mxu0 0.0
  %294 = vmatpush1.msra.mxu0 0.0
  %295 = vmatprep.subr.mxu0 0.0
  %296 = vmatpush1.msra.mxu0 0.0
  %297 = vmatprep.subr.mxu0 0.0
  %298 = vmatpush1.msra.mxu0 0.0
  %299 = vmatprep.subr.mxu0 0.0
  %300 = vmatpush1.msra.mxu0 0.0
  %301 = vmatprep.subr.mxu0 0.0
  %302 = vmatpush1.msra.mxu0 0.0
  %303 = vmatprep.subr.mxu0 0.0
  %304 = vmatpush1.msra.mxu0 0.0
  %305 = vmatprep.subr.mxu0 0.0
  %306 = vmatpush1.msra.mxu0 0.0
  %307 = vmatprep.subr.mxu0 0.0
  %308 = vmatpush1.msra.mxu0 0.0
  %309 = vmatprep.subr.mxu0 0.0
  %310 = vmatpush1.msra.mxu0 0.0
  %311 = vmatprep.subr.mxu0 0.0
  %312 = vmatpush1.msra.mxu0 0.0
  %313 = vmatprep.subr.mxu0 0.0
  %314 = vmatpush1.msra.mxu0 0.0
  %315 = vmatprep.subr.mxu0 0.0
  %316 = vmatpush1.msra.mxu0 0.0
  %317 = vmatprep.subr.mxu0 0.0
  %318 = vmatpush1.msra.mxu0 0.0
  %319 = vmatprep.subr.mxu0 0.0
  %320 = vmatpush1.msra.mxu0 0.0
  %321 = vmatprep.subr.mxu0 0.0
  %322 = vmatpush1.msra.mxu0 0.0
  %323 = vmatprep.subr.mxu0 0.0
  %324 = vmatpush1.msra.mxu0 0.0
  %325 = vmatprep.subr.mxu0 0.0
  %326 = vmatpush1.msra.mxu0 0.0
  %327 = vmatprep.subr.mxu0 0.0
  %328 = vmatpush1.msra.mxu0 0.0
  %329 = vmatprep.subr.mxu0 0.0
  %330 = vmatpush1.msra.mxu0 0.0
  %331 = vmatprep.subr.mxu0 0.0
  %332 = vmatpush1.msra.mxu0 0.0
  %333 = vmatprep.subr.mxu0 0.0
  %334 = vmatpush1.msra.mxu0 0.0
  %335 = vmatprep.subr.mxu0 0.0
  %336 = vmatpush1.msra.mxu0 0.0
  %337 = vmatprep.subr.mxu0 0.0
  %338 = vmatpush1.msra.mxu0 0.0
  %339 = vmatprep.subr.mxu0 0.0
  %340 = vmatpush1.msra.mxu0 0.0
  %341 = vmatprep.subr.mxu0 0.0
  %342 = vmatpush1.msra.mxu0 0.0
  %343 = vmatprep.subr.mxu0 0.0
  %344 = vmatpush1.msra.mxu0 0.0
  %345 = vmatprep.mubr.f32.mxu0 0.0
  %346 = vmatmul.mubr.f32.gmra.mrb[0].mxu0 %v279
  %v347 = vpop.f32.mrb[0].mxu0
  %v348 = vadd.f32 0.0, %v347
  %v349 = vpop.f32.mrb[0].mxu0
  %350 = vmatprep.mubr.f32.mxu0 0.0
  %351 = vmatmul.mubr.f32.gmra.mrb[0].mxu0 %v279
  %v352 = vpop.f32.mrb[0].mxu0
  %v353 = vadd.f32 0.0, %v352
  %v354 = vpop.f32.mrb[0].mxu0
  %355 = vdwg.mxu0
  %v356 = vadd.f32 %v275, %v348
  %v357 = vadd.f32 %v276, %v353
  %v358 = vxor.u32 %v356, 2147483648
  %v359 = vxor.u32 %v357, 2147483648
  %v360 = vmul.f32 %v358, 1.442695
  %v361 = vpow.pop %v360
  %v362 = vmul.f32 %v359, 1.442695
  %v363 = vpow.pop %v362
  %v364 = vadd.f32 %v361, 1.0
  %v365 = vadd.f32 %v363, 1.0
  %v366 = vrcp.pop %v364
  %v367 = vmul.f32 1.0, %v366
  %v368 = vrcp.pop %v365
  %v369 = vmul.f32 1.0, %v368
  %v370 = vmul.f32 %v367, 2.0
  %v371 = vmul.f32 %v369, 2.0
  %v372 = vsub.f32 %v370, 1.0
  %v373 = vsub.f32 %v371, 1.0
  %v374 = vmul.f32 %v367, 0.0
  %v375 = vmul.f32 %v369, 0.0
  %378 = vrot.lane.b32.xlu0 %v372, 112
  %v379 = vpop.permute.xlu0 %378
  %380 = vrot.lane.b32.xlu0 %v373, 112
  %v381 = vpop.permute.xlu0 %380
  %v384 = vmul.f32 %v367, %v379
  %v385 = vmul.f32 %v369, %v381
  %388 = vrot.lane.b32.xlu0 %v384, 8
  %v389 = vpop.permute.xlu0 %388
  %390 = vrot.lane.b32.xlu0 %v385, 8
  %v391 = vpop.permute.xlu0 %390
  %v394 = vadd.f32 %v374, %v389
  %v395 = vadd.f32 %v375, %v391
  %v396 = vtanh.pop %v394
  %v397 = vtanh.pop %v395
  %400 = vrot.lane.b32.xlu0 %v396, 16
  %v401 = vpop.permute.xlu0 %400
  %402 = vrot.lane.b32.xlu0 %v397, 16
  %v403 = vpop.permute.xlu0 %402
  %v406 = vmul.f32 %v367, %v401
  %v407 = vmul.f32 %v369, %v403
  %410 = vrot.lane.b32.xlu0 %v406, 104
  %v411 = vpop.permute.xlu0 %410
  %412 = vrot.lane.b32.xlu0 %v407, 104
  %v413 = vpop.permute.xlu0 %412
  %v416 = vsel %vm277, %v411, 0.0
  %v417 = vsel %vm277, %v413, 0.0
  %v419 = vlaneseq
  %v420 = vshrl.u32 %v419, 7
  %v421 = vsub.s32 0, %v420
  %v422 = vrot.slane %v34, %v421
  %vm424 = vcmask 130048
  %v426 = vsel %vm424, %v416, 0
  %v429 = vsel %vm424, %v417, 0
  %431 = vmatprep.subr.mxu0 0.0
  %432 = vmatpush1.msra.mxu0 %v32
  %433 = vmatprep.subr.mxu0 0.0
  %434 = vmatpush1.msra.mxu0 %v33
  %435 = vmatprep.subr.mxu0 0.0
  %436 = vmatpush1.msra.mxu0 0.0
  %437 = vmatprep.subr.mxu0 0.0
  %438 = vmatpush1.msra.mxu0 0.0
  %439 = vmatprep.subr.mxu0 0.0
  %440 = vmatpush1.msra.mxu0 0.0
  %441 = vmatprep.subr.mxu0 0.0
  %442 = vmatpush1.msra.mxu0 0.0
  %443 = vmatprep.subr.mxu0 0.0
  %444 = vmatpush1.msra.mxu0 0.0
  %445 = vmatprep.subr.mxu0 0.0
  %446 = vmatpush1.msra.mxu0 0.0
  %447 = vmatprep.subr.mxu0 0.0
  %448 = vmatpush1.msra.mxu0 0.0
  %449 = vmatprep.subr.mxu0 0.0
  %450 = vmatpush1.msra.mxu0 0.0
  %451 = vmatprep.subr.mxu0 0.0
  %452 = vmatpush1.msra.mxu0 0.0
  %453 = vmatprep.subr.mxu0 0.0
  %454 = vmatpush1.msra.mxu0 0.0
  %455 = vmatprep.subr.mxu0 0.0
  %456 = vmatpush1.msra.mxu0 0.0
  %457 = vmatprep.subr.mxu0 0.0
  %458 = vmatpush1.msra.mxu0 0.0
  %459 = vmatprep.subr.mxu0 0.0
  %460 = vmatpush1.msra.mxu0 0.0
  %461 = vmatprep.subr.mxu0 0.0
  %462 = vmatpush1.msra.mxu0 0.0
  %463 = vmatprep.subr.mxu0 0.0
  %464 = vmatpush1.msra.mxu0 0.0
  %465 = vmatprep.subr.mxu0 0.0
  %466 = vmatpush1.msra.mxu0 0.0
  %467 = vmatprep.subr.mxu0 0.0
  %468 = vmatpush1.msra.mxu0 0.0
  %469 = vmatprep.subr.mxu0 0.0
  %470 = vmatpush1.msra.mxu0 0.0
  %471 = vmatprep.subr.mxu0 0.0
  %472 = vmatpush1.msra.mxu0 0.0
  %473 = vmatprep.subr.mxu0 0.0
  %474 = vmatpush1.msra.mxu0 0.0
  %475 = vmatprep.subr.mxu0 0.0
  %476 = vmatpush1.msra.mxu0 0.0
  %477 = vmatprep.subr.mxu0 0.0
  %478 = vmatpush1.msra.mxu0 0.0
  %479 = vmatprep.subr.mxu0 0.0
  %480 = vmatpush1.msra.mxu0 0.0
  %481 = vmatprep.subr.mxu0 0.0
  %482 = vmatpush1.msra.mxu0 0.0
  %483 = vmatprep.subr.mxu0 0.0
  %484 = vmatpush1.msra.mxu0 0.0
  %485 = vmatprep.subr.mxu0 0.0
  %486 = vmatpush1.msra.mxu0 0.0
  %487 = vmatprep.subr.mxu0 0.0
  %488 = vmatpush1.msra.mxu0 0.0
  %489 = vmatprep.subr.mxu0 0.0
  %490 = vmatpush1.msra.mxu0 0.0
  %491 = vmatprep.subr.mxu0 0.0
  %492 = vmatpush1.msra.mxu0 0.0
  %493 = vmatprep.subr.mxu0 0.0
  %494 = vmatpush1.msra.mxu0 0.0
  %495 = vmatprep.mubr.f32.mxu0 0.0
  %496 = vmatmul.mubr.f32.gmra.mrb[0].mxu0 %v426
  %v497 = vpop.f32.mrb[0].mxu0
  %v498 = vadd.f32 %v422, %v497
  %v499 = vpop.f32.mrb[0].mxu0
  %500 = vmatprep.mubr.f32.mxu0 0.0
  %501 = vmatmul.mubr.f32.gmra.mrb[0].mxu0 %v429
  %v502 = vpop.f32.mrb[0].mxu0
  %v503 = vadd.f32 %v422, %v502
  %v504 = vpop.f32.mrb[0].mxu0
  %505 = vdwg.mxu0
  %v506 = vxor.u32 %v498, 2147483648
  %v507 = vxor.u32 %v503, 2147483648
  %v508 = vmul.f32 %v506, 1.442695
  %v509 = vpow.pop %v508
  %v510 = vmul.f32 %v507, 1.442695
  %v511 = vpow.pop %v510
  %v512 = vadd.f32 %v509, 1.0
  %v513 = vadd.f32 %v511, 1.0
  %v514 = vrcp.pop %v512
  %v515 = vmul.f32 1.0, %v514
  %v516 = vrcp.pop %v513
  %v517 = vmul.f32 1.0, %v516
  %v518 = vmul.f32 %v515, 2.0
  %v519 = vmul.f32 %v517, 2.0
  %v520 = vsub.f32 %v518, 1.0
  %v521 = vsub.f32 %v519, 1.0
  %v522 = vmul.f32 %v515, 0.0
  %v523 = vmul.f32 %v517, 0.0
  %526 = vrot.lane.b32.xlu0 %v520, 112
  %v527 = vpop.permute.xlu0 %526
  %528 = vrot.lane.b32.xlu0 %v521, 112
  %v529 = vpop.permute.xlu0 %528
  %v532 = vmul.f32 %v515, %v527
  %v533 = vmul.f32 %v517, %v529
  %536 = vrot.lane.b32.xlu0 %v532, 8
  %v537 = vpop.permute.xlu0 %536
  %538 = vrot.lane.b32.xlu0 %v533, 8
  %v539 = vpop.permute.xlu0 %538
  %v542 = vadd.f32 %v522, %v537
  %v543 = vadd.f32 %v523, %v539
  %v544 = vtanh.pop %v542
  %v545 = vtanh.pop %v543
  %548 = vrot.lane.b32.xlu0 %v544, 16
  %v549 = vpop.permute.xlu0 %548
  %550 = vrot.lane.b32.xlu0 %v545, 16
  %v551 = vpop.permute.xlu0 %550
  %v554 = vmul.f32 %v515, %v549
  %v555 = vmul.f32 %v517, %v551
  %v556 = vld [vmem:[#allocation2 + $0x10] sm:$0xff]
  %v557 = vld [vmem:[#allocation2 + $0x18] sm:$0xff]
  %v558 = vsel %vm277, %v411, 0
  %v560 = vsel %vm277, %v413, 0
  %562 = vmatprep.subr.mxu0 0.0
  %563 = vmatpush1.msra.mxu0 %v31
  %564 = vmatprep.subr.mxu0 0.0
  %565 = vmatpush1.msra.mxu0 0.0
  %566 = vmatprep.subr.mxu0 0.0
  %567 = vmatpush1.msra.mxu0 0.0
  %568 = vmatprep.subr.mxu0 0.0
  %569 = vmatpush1.msra.mxu0 0.0
  %570 = vmatprep.subr.mxu0 0.0
  %571 = vmatpush1.msra.mxu0 0.0
  %572 = vmatprep.subr.mxu0 0.0
  %573 = vmatpush1.msra.mxu0 0.0
  %574 = vmatprep.subr.mxu0 0.0
  %575 = vmatpush1.msra.mxu0 0.0
  %576 = vmatprep.subr.mxu0 0.0
  %577 = vmatpush1.msra.mxu0 0.0
  %578 = vmatprep.subr.mxu0 0.0
  %579 = vmatpush1.msra.mxu0 0.0
  %580 = vmatprep.subr.mxu0 0.0
  %581 = vmatpush1.msra.mxu0 0.0
  %582 = vmatprep.subr.mxu0 0.0
  %583 = vmatpush1.msra.mxu0 0.0
  %584 = vmatprep.subr.mxu0 0.0
  %585 = vmatpush1.msra.mxu0 0.0
  %586 = vmatprep.subr.mxu0 0.0
  %587 = vmatpush1.msra.mxu0 0.0
  %588 = vmatprep.subr.mxu0 0.0
  %589 = vmatpush1.msra.mxu0 0.0
  %590 = vmatprep.subr.mxu0 0.0
  %591 = vmatpush1.msra.mxu0 0.0
  %592 = vmatprep.subr.mxu0 0.0
  %593 = vmatpush1.msra.mxu0 0.0
  %594 = vmatprep.subr.mxu0 0.0
  %595 = vmatpush1.msra.mxu0 0.0
  %596 = vmatprep.subr.mxu0 0.0
  %597 = vmatpush1.msra.mxu0 0.0
  %598 = vmatprep.subr.mxu0 0.0
  %599 = vmatpush1.msra.mxu0 0.0
  %600 = vmatprep.subr.mxu0 0.0
  %601 = vmatpush1.msra.mxu0 0.0
  %602 = vmatprep.subr.mxu0 0.0
  %603 = vmatpush1.msra.mxu0 0.0
  %604 = vmatprep.subr.mxu0 0.0
  %605 = vmatpush1.msra.mxu0 0.0
  %606 = vmatprep.subr.mxu0 0.0
  %607 = vmatpush1.msra.mxu0 0.0
  %608 = vmatprep.subr.mxu0 0.0
  %609 = vmatpush1.msra.mxu0 0.0
  %610 = vmatprep.subr.mxu0 0.0
  %611 = vmatpush1.msra.mxu0 0.0
  %612 = vmatprep.subr.mxu0 0.0
  %613 = vmatpush1.msra.mxu0 0.0
  %614 = vmatprep.subr.mxu0 0.0
  %615 = vmatpush1.msra.mxu0 0.0
  %616 = vmatprep.subr.mxu0 0.0
  %617 = vmatpush1.msra.mxu0 0.0
  %618 = vmatprep.subr.mxu0 0.0
  %619 = vmatpush1.msra.mxu0 0.0
  %620 = vmatprep.subr.mxu0 0.0
  %621 = vmatpush1.msra.mxu0 0.0
  %622 = vmatprep.subr.mxu0 0.0
  %623 = vmatpush1.msra.mxu0 0.0
  %624 = vmatprep.subr.mxu0 0.0
  %625 = vmatpush1.msra.mxu0 0.0
  %626 = vmatprep.mubr.f32.mxu0 0.0
  %627 = vmatmul.mubr.f32.gmra.mrb[0].mxu0 %v558
  %v628 = vpop.f32.mrb[0].mxu0
  %v629 = vadd.f32 0.0, %v628
  %v630 = vpop.f32.mrb[0].mxu0
  %631 = vmatprep.mubr.f32.mxu0 0.0
  %632 = vmatmul.mubr.f32.gmra.mrb[0].mxu0 %v560
  %v633 = vpop.f32.mrb[0].mxu0
  %v634 = vadd.f32 0.0, %v633
  %v635 = vpop.f32.mrb[0].mxu0
  %636 = vdwg.mxu0
  %v637 = vadd.f32 %v556, %v629
  %v638 = vadd.f32 %v557, %v634
  %v639 = vxor.u32 %v637, 2147483648
  %v640 = vxor.u32 %v638, 2147483648
  %v641 = vmul.f32 %v639, 1.442695
  %v642 = vpow.pop %v641
  %v643 = vmul.f32 %v640, 1.442695
  %v644 = vpow.pop %v643
  %v645 = vadd.f32 %v642, 1.0
  %v646 = vadd.f32 %v644, 1.0
  %v647 = vrcp.pop %v645
  %v648 = vmul.f32 1.0, %v647
  %v649 = vrcp.pop %v646
  %v650 = vmul.f32 1.0, %v649
  %v651 = vmul.f32 %v648, 2.0
  %v652 = vmul.f32 %v650, 2.0
  %v653 = vsub.f32 %v651, 1.0
  %v654 = vsub.f32 %v652, 1.0
  %v655 = vmul.f32 %v648, %v394
  %v656 = vmul.f32 %v650, %v395
  %659 = vrot.lane.b32.xlu0 %v653, 112
  %v660 = vpop.permute.xlu0 %659
  %661 = vrot.lane.b32.xlu0 %v654, 112
  %v662 = vpop.permute.xlu0 %661
  %v665 = vmul.f32 %v648, %v660
  %v666 = vmul.f32 %v650, %v662
  %669 = vrot.lane.b32.xlu0 %v665, 8
  %v670 = vpop.permute.xlu0 %669
  %671 = vrot.lane.b32.xlu0 %v666, 8
  %v672 = vpop.permute.xlu0 %671
  %v675 = vadd.f32 %v655, %v670
  %v676 = vadd.f32 %v656, %v672
  %v677 = vtanh.pop %v675
  %v678 = vtanh.pop %v676
  %681 = vrot.lane.b32.xlu0 %v677, 16
  %v682 = vpop.permute.xlu0 %681
  %683 = vrot.lane.b32.xlu0 %v678, 16
  %v684 = vpop.permute.xlu0 %683
  %v687 = vmul.f32 %v648, %v682
  %v688 = vmul.f32 %v650, %v684
  %691 = vrot.lane.b32.xlu0 %v687, 104
  %v692 = vpop.permute.xlu0 %691
  %693 = vrot.lane.b32.xlu0 %v688, 104
  %v694 = vpop.permute.xlu0 %693
  %699 = vrot.lane.b32.xlu0 %v554, 112
  %v700 = vpop.permute.xlu0 %699
  %701 = vrot.lane.b32.xlu0 %v555, 112
  %v702 = vpop.permute.xlu0 %701
  %v705 = vsel %vm277, %v692, %v700
  %v706 = vsel %vm277, %v694, %v702
  %v708 = vsel %vm424, %v705, 0
  %v711 = vsel %vm424, %v706, 0
  %713 = vmatprep.subr.mxu0 0.0
  %714 = vmatpush1.msra.mxu0 %v32
  %715 = vmatprep.subr.mxu0 0.0
  %716 = vmatpush1.msra.mxu0 %v33
  %717 = vmatprep.subr.mxu0 0.0
  %718 = vmatpush1.msra.mxu0 0.0
  %719 = vmatprep.subr.mxu0 0.0
  %720 = vmatpush1.msra.mxu0 0.0
  %721 = vmatprep.subr.mxu0 0.0
  %722 = vmatpush1.msra.mxu0 0.0
  %723 = vmatprep.subr.mxu0 0.0
  %724 = vmatpush1.msra.mxu0 0.0
  %725 = vmatprep.subr.mxu0 0.0
  %726 = vmatpush1.msra.mxu0 0.0
  %727 = vmatprep.subr.mxu0 0.0
  %728 = vmatpush1.msra.mxu0 0.0
  %729 = vmatprep.subr.mxu0 0.0
  %730 = vmatpush1.msra.mxu0 0.0
  %731 = vmatprep.subr.mxu0 0.0
  %732 = vmatpush1.msra.mxu0 0.0
  %733 = vmatprep.subr.mxu0 0.0
  %734 = vmatpush1.msra.mxu0 0.0
  %735 = vmatprep.subr.mxu0 0.0
  %736 = vmatpush1.msra.mxu0 0.0
  %737 = vmatprep.subr.mxu0 0.0
  %738 = vmatpush1.msra.mxu0 0.0
  %739 = vmatprep.subr.mxu0 0.0
  %740 = vmatpush1.msra.mxu0 0.0
  %741 = vmatprep.subr.mxu0 0.0
  %742 = vmatpush1.msra.mxu0 0.0
  %743 = vmatprep.subr.mxu0 0.0
  %744 = vmatpush1.msra.mxu0 0.0
  %745 = vmatprep.subr.mxu0 0.0
  %746 = vmatpush1.msra.mxu0 0.0
  %747 = vmatprep.subr.mxu0 0.0
  %748 = vmatpush1.msra.mxu0 0.0
  %749 = vmatprep.subr.mxu0 0.0
  %750 = vmatpush1.msra.mxu0 0.0
  %751 = vmatprep.subr.mxu0 0.0
  %752 = vmatpush1.msra.mxu0 0.0
  %753 = vmatprep.subr.mxu0 0.0
  %754 = vmatpush1.msra.mxu0 0.0
  %755 = vmatprep.subr.mxu0 0.0
  %756 = vmatpush1.msra.mxu0 0.0
  %757 = vmatprep.subr.mxu0 0.0
  %758 = vmatpush1.msra.mxu0 0.0
  %759 = vmatprep.subr.mxu0 0.0
  %760 = vmatpush1.msra.mxu0 0.0
  %761 = vmatprep.subr.mxu0 0.0
  %762 = vmatpush1.msra.mxu0 0.0
  %763 = vmatprep.subr.mxu0 0.0
  %764 = vmatpush1.msra.mxu0 0.0
  %765 = vmatprep.subr.mxu0 0.0
  %766 = vmatpush1.msra.mxu0 0.0
  %767 = vmatprep.subr.mxu0 0.0
  %768 = vmatpush1.msra.mxu0 0.0
  %769 = vmatprep.subr.mxu0 0.0
  %770 = vmatpush1.msra.mxu0 0.0
  %771 = vmatprep.subr.mxu0 0.0
  %772 = vmatpush1.msra.mxu0 0.0
  %773 = vmatprep.subr.mxu0 0.0
  %774 = vmatpush1.msra.mxu0 0.0
  %775 = vmatprep.subr.mxu0 0.0
  %776 = vmatpush1.msra.mxu0 0.0
  %777 = vmatprep.mubr.f32.mxu0 0.0
  %778 = vmatmul.mubr.f32.gmra.mrb[0].mxu0 %v708
  %v779 = vpop.f32.mrb[0].mxu0
  %v780 = vadd.f32 %v422, %v779
  %v781 = vpop.f32.mrb[0].mxu0
  %782 = vmatprep.mubr.f32.mxu0 0.0
  %783 = vmatmul.mubr.f32.gmra.mrb[0].mxu0 %v711
  %v784 = vpop.f32.mrb[0].mxu0
  %v785 = vadd.f32 %v422, %v784
  %v786 = vpop.f32.mrb[0].mxu0
  %787 = vdwg.mxu0
  %v788 = vxor.u32 %v780, 2147483648
  %v789 = vxor.u32 %v785, 2147483648
  %v790 = vmul.f32 %v788, 1.442695
  %v791 = vpow.pop %v790
  %v792 = vmul.f32 %v789, 1.442695
  %v793 = vpow.pop %v792
  %v794 = vadd.f32 %v791, 1.0
  %v795 = vadd.f32 %v793, 1.0
  %v796 = vrcp.pop %v794
  %v797 = vmul.f32 1.0, %v796
  %v798 = vrcp.pop %v795
  %v799 = vmul.f32 1.0, %v798
  %v800 = vmul.f32 %v797, 2.0
  %v801 = vmul.f32 %v799, 2.0
  %v802 = vsub.f32 %v800, 1.0
  %v803 = vsub.f32 %v801, 1.0
  %v804 = vmul.f32 %v797, %v542
  %v805 = vmul.f32 %v799, %v543
  %808 = vrot.lane.b32.xlu0 %v802, 112
  %v809 = vpop.permute.xlu0 %808
  %810 = vrot.lane.b32.xlu0 %v803, 112
  %v811 = vpop.permute.xlu0 %810
  %v814 = vmul.f32 %v797, %v809
  %v815 = vmul.f32 %v799, %v811
  %818 = vrot.lane.b32.xlu0 %v814, 8
  %v819 = vpop.permute.xlu0 %818
  %820 = vrot.lane.b32.xlu0 %v815, 8
  %v821 = vpop.permute.xlu0 %820
  %v824 = vadd.f32 %v804, %v819
  %v825 = vadd.f32 %v805, %v821
  %v826 = vtanh.pop %v824
  %v827 = vtanh.pop %v825
  %830 = vrot.lane.b32.xlu0 %v826, 16
  %v831 = vpop.permute.xlu0 %830
  %832 = vrot.lane.b32.xlu0 %v827, 16
  %v833 = vpop.permute.xlu0 %832
  %v836 = vmul.f32 %v797, %v831
  %v837 = vmul.f32 %v799, %v833
  %v838 = vld [vmem:[#allocation2 + $0x20] sm:$0xff]
  %v839 = vld [vmem:[#allocation2 + $0x28] sm:$0xff]
  %v840 = vsel %vm277, %v692, 0
  %v842 = vsel %vm277, %v694, 0
  %844 = vmatprep.subr.mxu0 0.0
  %845 = vmatpush1.msra.mxu0 %v31
  %846 = vmatprep.subr.mxu0 0.0
  %847 = vmatpush1.msra.mxu0 0.0
  %848 = vmatprep.subr.mxu0 0.0
  %849 = vmatpush1.msra.mxu0 0.0
  %850 = vmatprep.subr.mxu0 0.0
  %851 = vmatpush1.msra.mxu0 0.0
  %852 = vmatprep.subr.mxu0 0.0
  %853 = vmatpush1.msra.mxu0 0.0
  %854 = vmatprep.subr.mxu0 0.0
  %855 = vmatpush1.msra.mxu0 0.0
  %856 = vmatprep.subr.mxu0 0.0
  %857 = vmatpush1.msra.mxu0 0.0
  %858 = vmatprep.subr.mxu0 0.0
  %859 = vmatpush1.msra.mxu0 0.0
  %860 = vmatprep.subr.mxu0 0.0
  %861 = vmatpush1.msra.mxu0 0.0
  %862 = vmatprep.subr.mxu0 0.0
  %863 = vmatpush1.msra.mxu0 0.0
  %864 = vmatprep.subr.mxu0 0.0
  %865 = vmatpush1.msra.mxu0 0.0
  %866 = vmatprep.subr.mxu0 0.0
  %867 = vmatpush1.msra.mxu0 0.0
  %868 = vmatprep.subr.mxu0 0.0
  %869 = vmatpush1.msra.mxu0 0.0
  %870 = vmatprep.subr.mxu0 0.0
  %871 = vmatpush1.msra.mxu0 0.0
  %872 = vmatprep.subr.mxu0 0.0
  %873 = vmatpush1.msra.mxu0 0.0
  %874 = vmatprep.subr.mxu0 0.0
  %875 = vmatpush1.msra.mxu0 0.0
  %876 = vmatprep.subr.mxu0 0.0
  %877 = vmatpush1.msra.mxu0 0.0
  %878 = vmatprep.subr.mxu0 0.0
  %879 = vmatpush1.msra.mxu0 0.0
  %880 = vmatprep.subr.mxu0 0.0
  %881 = vmatpush1.msra.mxu0 0.0
  %882 = vmatprep.subr.mxu0 0.0
  %883 = vmatpush1.msra.mxu0 0.0
  %884 = vmatprep.subr.mxu0 0.0
  %885 = vmatpush1.msra.mxu0 0.0
  %886 = vmatprep.subr.mxu0 0.0
  %887 = vmatpush1.msra.mxu0 0.0
  %888 = vmatprep.subr.mxu0 0.0
  %889 = vmatpush1.msra.mxu0 0.0
  %890 = vmatprep.subr.mxu0 0.0
  %891 = vmatpush1.msra.mxu0 0.0
  %892 = vmatprep.subr.mxu0 0.0
  %893 = vmatpush1.msra.mxu0 0.0
  %894 = vmatprep.subr.mxu0 0.0
  %895 = vmatpush1.msra.mxu0 0.0
  %896 = vmatprep.subr.mxu0 0.0
  %897 = vmatpush1.msra.mxu0 0.0
  %898 = vmatprep.subr.mxu0 0.0
  %899 = vmatpush1.msra.mxu0 0.0
  %900 = vmatprep.subr.mxu0 0.0
  %901 = vmatpush1.msra.mxu0 0.0
  %902 = vmatprep.subr.mxu0 0.0
  %903 = vmatpush1.msra.mxu0 0.0
  %904 = vmatprep.subr.mxu0 0.0
  %905 = vmatpush1.msra.mxu0 0.0
  %906 = vmatprep.subr.mxu0 0.0
  %907 = vmatpush1.msra.mxu0 0.0
  %908 = vmatprep.mubr.f32.mxu0 0.0
  %909 = vmatmul.mubr.f32.gmra.mrb[0].mxu0 %v840
  %v910 = vpop.f32.mrb[0].mxu0
  %v911 = vadd.f32 0.0, %v910
  %v912 = vpop.f32.mrb[0].mxu0
  %913 = vmatprep.mubr.f32.mxu0 0.0
  %914 = vmatmul.mubr.f32.gmra.mrb[0].mxu0 %v842
  %v915 = vpop.f32.mrb[0].mxu0
  %v916 = vadd.f32 0.0, %v915
  %v917 = vpop.f32.mrb[0].mxu0
  %918 = vdwg.mxu0
  %v919 = vadd.f32 %v838, %v911
  %v920 = vadd.f32 %v839, %v916
  %v921 = vxor.u32 %v919, 2147483648
  %v922 = vxor.u32 %v920, 2147483648
  %v923 = vmul.f32 %v921, 1.442695
  %v924 = vpow.pop %v923
  %v925 = vmul.f32 %v922, 1.442695
  %v926 = vpow.pop %v925
  %v927 = vadd.f32 %v924, 1.0
  %v928 = vadd.f32 %v926, 1.0
  %v929 = vrcp.pop %v927
  %v930 = vmul.f32 1.0, %v929
  %v931 = vrcp.pop %v928
  %v932 = vmul.f32 1.0, %v931
  %v933 = vmul.f32 %v930, 2.0
  %v934 = vmul.f32 %v932, 2.0
  %v935 = vsub.f32 %v933, 1.0
  %v936 = vsub.f32 %v934, 1.0
  %v937 = vmul.f32 %v930, %v675
  %v938 = vmul.f32 %v932, %v676
  %941 = vrot.lane.b32.xlu0 %v935, 112
  %v942 = vpop.permute.xlu0 %941
  %943 = vrot.lane.b32.xlu0 %v936, 112
  %v944 = vpop.permute.xlu0 %943
  %v947 = vmul.f32 %v930, %v942
  %v948 = vmul.f32 %v932, %v944
  %951 = vrot.lane.b32.xlu0 %v947, 8
  %v952 = vpop.permute.xlu0 %951
  %953 = vrot.lane.b32.xlu0 %v948, 8
  %v954 = vpop.permute.xlu0 %953
  %v957 = vadd.f32 %v937, %v952
  %v958 = vadd.f32 %v938, %v954
  %v959 = vtanh.pop %v957
  %v960 = vtanh.pop %v958
  %963 = vrot.lane.b32.xlu0 %v959, 16
  %v964 = vpop.permute.xlu0 %963
  %965 = vrot.lane.b32.xlu0 %v960, 16
  %v966 = vpop.permute.xlu0 %965
  %v969 = vmul.f32 %v930, %v964
  %v970 = vmul.f32 %v932, %v966
  %973 = vrot.lane.b32.xlu0 %v969, 104
  %v974 = vpop.permute.xlu0 %973
  %975 = vrot.lane.b32.xlu0 %v970, 104
  %v976 = vpop.permute.xlu0 %975
  %981 = vrot.lane.b32.xlu0 %v836, 112
  %v982 = vpop.permute.xlu0 %981
  %983 = vrot.lane.b32.xlu0 %v837, 112
  %v984 = vpop.permute.xlu0 %983
  %v987 = vsel %vm277, %v974, %v982
  %v988 = vsel %vm277, %v976, %v984
  %v990 = vsel %vm424, %v987, 0
  %v993 = vsel %vm424, %v988, 0
  %995 = vmatprep.subr.mxu0 0.0
  %996 = vmatpush1.msra.mxu0 %v32
  %997 = vmatprep.subr.mxu0 0.0
  %998 = vmatpush1.msra.mxu0 %v33
  %999 = vmatprep.subr.mxu0 0.0
  %1000 = vmatpush1.msra.mxu0 0.0
  %1001 = vmatprep.subr.mxu0 0.0
  %1002 = vmatpush1.msra.mxu0 0.0
  %1003 = vmatprep.subr.mxu0 0.0
  %1004 = vmatpush1.msra.mxu0 0.0
  %1005 = vmatprep.subr.mxu0 0.0
  %1006 = vmatpush1.msra.mxu0 0.0
  %1007 = vmatprep.subr.mxu0 0.0
  %1008 = vmatpush1.msra.mxu0 0.0
  %1009 = vmatprep.subr.mxu0 0.0
  %1010 = vmatpush1.msra.mxu0 0.0
  %1011 = vmatprep.subr.mxu0 0.0
  %1012 = vmatpush1.msra.mxu0 0.0
  %1013 = vmatprep.subr.mxu0 0.0
  %1014 = vmatpush1.msra.mxu0 0.0
  %1015 = vmatprep.subr.mxu0 0.0
  %1016 = vmatpush1.msra.mxu0 0.0
  %1017 = vmatprep.subr.mxu0 0.0
  %1018 = vmatpush1.msra.mxu0 0.0
  %1019 = vmatprep.subr.mxu0 0.0
  %1020 = vmatpush1.msra.mxu0 0.0
  %1021 = vmatprep.subr.mxu0 0.0
  %1022 = vmatpush1.msra.mxu0 0.0
  %1023 = vmatprep.subr.mxu0 0.0
  %1024 = vmatpush1.msra.mxu0 0.0
  %1025 = vmatprep.subr.mxu0 0.0
  %1026 = vmatpush1.msra.mxu0 0.0
  %1027 = vmatprep.subr.mxu0 0.0
  %1028 = vmatpush1.msra.mxu0 0.0
  %1029 = vmatprep.subr.mxu0 0.0
  %1030 = vmatpush1.msra.mxu0 0.0
  %1031 = vmatprep.subr.mxu0 0.0
  %1032 = vmatpush1.msra.mxu0 0.0
  %1033 = vmatprep.subr.mxu0 0.0
  %1034 = vmatpush1.msra.mxu0 0.0
  %1035 = vmatprep.subr.mxu0 0.0
  %1036 = vmatpush1.msra.mxu0 0.0
  %1037 = vmatprep.subr.mxu0 0.0
  %1038 = vmatpush1.msra.mxu0 0.0
  %1039 = vmatprep.subr.mxu0 0.0
  %1040 = vmatpush1.msra.mxu0 0.0
  %1041 = vmatprep.subr.mxu0 0.0
  %1042 = vmatpush1.msra.mxu0 0.0
  %1043 = vmatprep.subr.mxu0 0.0
  %1044 = vmatpush1.msra.mxu0 0.0
  %1045 = vmatprep.subr.mxu0 0.0
  %1046 = vmatpush1.msra.mxu0 0.0
  %1047 = vmatprep.subr.mxu0 0.0
  %1048 = vmatpush1.msra.mxu0 0.0
  %1049 = vmatprep.subr.mxu0 0.0
  %1050 = vmatpush1.msra.mxu0 0.0
  %1051 = vmatprep.subr.mxu0 0.0
  %1052 = vmatpush1.msra.mxu0 0.0
  %1053 = vmatprep.subr.mxu0 0.0
  %1054 = vmatpush1.msra.mxu0 0.0
  %1055 = vmatprep.subr.mxu0 0.0
  %1056 = vmatpush1.msra.mxu0 0.0
  %1057 = vmatprep.subr.mxu0 0.0
  %1058 = vmatpush1.msra.mxu0 0.0
  %1059 = vmatprep.mubr.f32.mxu0 0.0
  %1060 = vmatmul.mubr.f32.gmra.mrb[0].mxu0 %v990
  %v1061 = vpop.f32.mrb[0].mxu0
  %v1062 = vadd.f32 %v422, %v1061
  %v1063 = vpop.f32.mrb[0].mxu0
  %1064 = vmatprep.mubr.f32.mxu0 0.0
  %1065 = vmatmul.mubr.f32.gmra.mrb[0].mxu0 %v993
  %v1066 = vpop.f32.mrb[0].mxu0
  %v1067 = vadd.f32 %v422, %v1066
  %v1068 = vpop.f32.mrb[0].mxu0
  %1069 = vdwg.mxu0
  %v1070 = vxor.u32 %v1062, 2147483648
  %v1071 = vxor.u32 %v1067, 2147483648
  %v1072 = vmul.f32 %v1070, 1.442695
  %v1073 = vpow.pop %v1072
  %v1074 = vmul.f32 %v1071, 1.442695
  %v1075 = vpow.pop %v1074
  %v1076 = vadd.f32 %v1073, 1.0
  %v1077 = vadd.f32 %v1075, 1.0
  %v1078 = vrcp.pop %v1076
  %v1079 = vmul.f32 1.0, %v1078
  %v1080 = vrcp.pop %v1077
  %v1081 = vmul.f32 1.0, %v1080
  %v1082 = vmul.f32 %v1079, 2.0
  %v1083 = vmul.f32 %v1081, 2.0
  %v1084 = vsub.f32 %v1082, 1.0
  %v1085 = vsub.f32 %v1083, 1.0
  %v1086 = vmul.f32 %v1079, %v824
  %v1087 = vmul.f32 %v1081, %v825
  %1090 = vrot.lane.b32.xlu0 %v1084, 112
  %v1091 = vpop.permute.xlu0 %1090
  %1092 = vrot.lane.b32.xlu0 %v1085, 112
  %v1093 = vpop.permute.xlu0 %1092
  %v1096 = vmul.f32 %v1079, %v1091
  %v1097 = vmul.f32 %v1081, %v1093
  %1100 = vrot.lane.b32.xlu0 %v1096, 8
  %v1101 = vpop.permute.xlu0 %1100
  %1102 = vrot.lane.b32.xlu0 %v1097, 8
  %v1103 = vpop.permute.xlu0 %1102
  %v1106 = vadd.f32 %v1086, %v1101
  %v1107 = vadd.f32 %v1087, %v1103
  %v1108 = vtanh.pop %v1106
  %v1109 = vtanh.pop %v1107
  %1112 = vrot.lane.b32.xlu0 %v1108, 16
  %v1113 = vpop.permute.xlu0 %1112
  %1114 = vrot.lane.b32.xlu0 %v1109, 16
  %v1115 = vpop.permute.xlu0 %1114
  %v1118 = vmul.f32 %v1079, %v1113
  %v1119 = vmul.f32 %v1081, %v1115
  %v1120 = vld [vmem:[#allocation2 + $0x30] sm:$0xff]
  %v1121 = vld [vmem:[#allocation2 + $0x38] sm:$0xff]
  %v1122 = vsel %vm277, %v974, 0
  %v1124 = vsel %vm277, %v976, 0
  %1126 = vmatprep.subr.mxu0 0.0
  %1127 = vmatpush1.msra.mxu0 %v31
  %1128 = vmatprep.subr.mxu0 0.0
  %1129 = vmatpush1.msra.mxu0 0.0
  %1130 = vmatprep.subr.mxu0 0.0
  %1131 = vmatpush1.msra.mxu0 0.0
  %1132 = vmatprep.subr.mxu0 0.0
  %1133 = vmatpush1.msra.mxu0 0.0
  %1134 = vmatprep.subr.mxu0 0.0
  %1135 = vmatpush1.msra.mxu0 0.0
  %1136 = vmatprep.subr.mxu0 0.0
  %1137 = vmatpush1.msra.mxu0 0.0
  %1138 = vmatprep.subr.mxu0 0.0
  %1139 = vmatpush1.msra.mxu0 0.0
  %1140 = vmatprep.subr.mxu0 0.0
  %1141 = vmatpush1.msra.mxu0 0.0
  %1142 = vmatprep.subr.mxu0 0.0
  %1143 = vmatpush1.msra.mxu0 0.0
  %1144 = vmatprep.subr.mxu0 0.0
  %1145 = vmatpush1.msra.mxu0 0.0
  %1146 = vmatprep.subr.mxu0 0.0
  %1147 = vmatpush1.msra.mxu0 0.0
  %1148 = vmatprep.subr.mxu0 0.0
  %1149 = vmatpush1.msra.mxu0 0.0
  %1150 = vmatprep.subr.mxu0 0.0
  %1151 = vmatpush1.msra.mxu0 0.0
  %1152 = vmatprep.subr.mxu0 0.0
  %1153 = vmatpush1.msra.mxu0 0.0
  %1154 = vmatprep.subr.mxu0 0.0
  %1155 = vmatpush1.msra.mxu0 0.0
  %1156 = vmatprep.subr.mxu0 0.0
  %1157 = vmatpush1.msra.mxu0 0.0
  %1158 = vmatprep.subr.mxu0 0.0
  %1159 = vmatpush1.msra.mxu0 0.0
  %1160 = vmatprep.subr.mxu0 0.0
  %1161 = vmatpush1.msra.mxu0 0.0
  %1162 = vmatprep.subr.mxu0 0.0
  %1163 = vmatpush1.msra.mxu0 0.0
  %1164 = vmatprep.subr.mxu0 0.0
  %1165 = vmatpush1.msra.mxu0 0.0
  %1166 = vmatprep.subr.mxu0 0.0
  %1167 = vmatpush1.msra.mxu0 0.0
  %1168 = vmatprep.subr.mxu0 0.0
  %1169 = vmatpush1.msra.mxu0 0.0
  %1170 = vmatprep.subr.mxu0 0.0
  %1171 = vmatpush1.msra.mxu0 0.0
  %1172 = vmatprep.subr.mxu0 0.0
  %1173 = vmatpush1.msra.mxu0 0.0
  %1174 = vmatprep.subr.mxu0 0.0
  %1175 = vmatpush1.msra.mxu0 0.0
  %1176 = vmatprep.subr.mxu0 0.0
  %1177 = vmatpush1.msra.mxu0 0.0
  %1178 = vmatprep.subr.mxu0 0.0
  %1179 = vmatpush1.msra.mxu0 0.0
  %1180 = vmatprep.subr.mxu0 0.0
  %1181 = vmatpush1.msra.mxu0 0.0
  %1182 = vmatprep.subr.mxu0 0.0
  %1183 = vmatpush1.msra.mxu0 0.0
  %1184 = vmatprep.subr.mxu0 0.0
  %1185 = vmatpush1.msra.mxu0 0.0
  %1186 = vmatprep.subr.mxu0 0.0
  %1187 = vmatpush1.msra.mxu0 0.0
  %1188 = vmatprep.subr.mxu0 0.0
  %1189 = vmatpush1.msra.mxu0 0.0
  %1190 = vmatprep.mubr.f32.mxu0 0.0
  %1191 = vmatmul.mubr.f32.gmra.mrb[0].mxu0 %v1122
  %v1192 = vpop.f32.mrb[0].mxu0
  %v1193 = vadd.f32 0.0, %v1192
  %v1194 = vpop.f32.mrb[0].mxu0
  %1195 = vmatprep.mubr.f32.mxu0 0.0
  %1196 = vmatmul.mubr.f32.gmra.mrb[0].mxu0 %v1124
  %v1197 = vpop.f32.mrb[0].mxu0
  %v1198 = vadd.f32 0.0, %v1197
  %v1199 = vpop.f32.mrb[0].mxu0
  %1200 = vdwg.mxu0
  %v1201 = vadd.f32 %v1120, %v1193
  %v1202 = vadd.f32 %v1121, %v1198
  %v1203 = vxor.u32 %v1201, 2147483648
  %v1204 = vxor.u32 %v1202, 2147483648
  %v1205 = vmul.f32 %v1203, 1.442695
  %v1206 = vpow.pop %v1205
  %v1207 = vmul.f32 %v1204, 1.442695
  %v1208 = vpow.pop %v1207
  %v1209 = vadd.f32 %v1206, 1.0
  %v1210 = vadd.f32 %v1208, 1.0
  %v1211 = vrcp.pop %v1209
  %v1212 = vmul.f32 1.0, %v1211
  %v1213 = vrcp.pop %v1210
  %v1214 = vmul.f32 1.0, %v1213
  %v1215 = vmul.f32 %v1212, 2.0
  %v1216 = vmul.f32 %v1214, 2.0
  %v1217 = vsub.f32 %v1215, 1.0
  %v1218 = vsub.f32 %v1216, 1.0
  %v1219 = vmul.f32 %v1212, %v957
  %v1220 = vmul.f32 %v1214, %v958
  %1223 = vrot.lane.b32.xlu0 %v1217, 112
  %v1224 = vpop.permute.xlu0 %1223
  %1225 = vrot.lane.b32.xlu0 %v1218, 112
  %v1226 = vpop.permute.xlu0 %1225
  %v1229 = vmul.f32 %v1212, %v1224
  %v1230 = vmul.f32 %v1214, %v1226
  %1233 = vrot.lane.b32.xlu0 %v1229, 8
  %v1234 = vpop.permute.xlu0 %1233
  %1235 = vrot.lane.b32.xlu0 %v1230, 8
  %v1236 = vpop.permute.xlu0 %1235
  %v1239 = vadd.f32 %v1219, %v1234
  %v1240 = vadd.f32 %v1220, %v1236
  %v1241 = vtanh.pop %v1239
  %v1242 = vtanh.pop %v1240
  %1245 = vrot.lane.b32.xlu0 %v1241, 16
  %v1246 = vpop.permute.xlu0 %1245
  %1247 = vrot.lane.b32.xlu0 %v1242, 16
  %v1248 = vpop.permute.xlu0 %1247
  %v1251 = vmul.f32 %v1212, %v1246
  %v1252 = vmul.f32 %v1214, %v1248
  %1255 = vrot.lane.b32.xlu0 %v1251, 104
  %v1256 = vpop.permute.xlu0 %1255
  %1257 = vrot.lane.b32.xlu0 %v1252, 104
  %v1258 = vpop.permute.xlu0 %1257
  %1263 = vrot.lane.b32.xlu0 %v1118, 112
  %v1264 = vpop.permute.xlu0 %1263
  %1265 = vrot.lane.b32.xlu0 %v1119, 112
  %v1266 = vpop.permute.xlu0 %1265
  %v1269 = vsel %vm277, %v1256, %v1264
  %v1270 = vsel %vm277, %v1258, %v1266
  %v1272 = vsel %vm424, %v1269, 0
  %v1275 = vsel %vm424, %v1270, 0
  %1277 = vmatprep.subr.mxu0 0.0
  %1278 = vmatpush1.msra.mxu0 %v32
  %1279 = vmatprep.subr.mxu0 0.0
  %1280 = vmatpush1.msra.mxu0 %v33
  %1281 = vmatprep.subr.mxu0 0.0
  %1282 = vmatpush1.msra.mxu0 0.0
  %1283 = vmatprep.subr.mxu0 0.0
  %1284 = vmatpush1.msra.mxu0 0.0
  %1285 = vmatprep.subr.mxu0 0.0
  %1286 = vmatpush1.msra.mxu0 0.0
  %1287 = vmatprep.subr.mxu0 0.0
  %1288 = vmatpush1.msra.mxu0 0.0
  %1289 = vmatprep.subr.mxu0 0.0
  %1290 = vmatpush1.msra.mxu0 0.0
  %1291 = vmatprep.subr.mxu0 0.0
  %1292 = vmatpush1.msra.mxu0 0.0
  %1293 = vmatprep.subr.mxu0 0.0
  %1294 = vmatpush1.msra.mxu0 0.0
  %1295 = vmatprep.subr.mxu0 0.0
  %1296 = vmatpush1.msra.mxu0 0.0
  %1297 = vmatprep.subr.mxu0 0.0
  %1298 = vmatpush1.msra.mxu0 0.0
  %1299 = vmatprep.subr.mxu0 0.0
  %1300 = vmatpush1.msra.mxu0 0.0
  %1301 = vmatprep.subr.mxu0 0.0
  %1302 = vmatpush1.msra.mxu0 0.0
  %1303 = vmatprep.subr.mxu0 0.0
  %1304 = vmatpush1.msra.mxu0 0.0
  %1305 = vmatprep.subr.mxu0 0.0
  %1306 = vmatpush1.msra.mxu0 0.0
  %1307 = vmatprep.subr.mxu0 0.0
  %1308 = vmatpush1.msra.mxu0 0.0
  %1309 = vmatprep.subr.mxu0 0.0
  %1310 = vmatpush1.msra.mxu0 0.0
  %1311 = vmatprep.subr.mxu0 0.0
  %1312 = vmatpush1.msra.mxu0 0.0
  %1313 = vmatprep.subr.mxu0 0.0
  %1314 = vmatpush1.msra.mxu0 0.0
  %1315 = vmatprep.subr.mxu0 0.0
  %1316 = vmatpush1.msra.mxu0 0.0
  %1317 = vmatprep.subr.mxu0 0.0
  %1318 = vmatpush1.msra.mxu0 0.0
  %1319 = vmatprep.subr.mxu0 0.0
  %1320 = vmatpush1.msra.mxu0 0.0
  %1321 = vmatprep.subr.mxu0 0.0
  %1322 = vmatpush1.msra.mxu0 0.0
  %1323 = vmatprep.subr.mxu0 0.0
  %1324 = vmatpush1.msra.mxu0 0.0
  %1325 = vmatprep.subr.mxu0 0.0
  %1326 = vmatpush1.msra.mxu0 0.0
  %1327 = vmatprep.subr.mxu0 0.0
  %1328 = vmatpush1.msra.mxu0 0.0
  %1329 = vmatprep.subr.mxu0 0.0
  %1330 = vmatpush1.msra.mxu0 0.0
  %1331 = vmatprep.subr.mxu0 0.0
  %1332 = vmatpush1.msra.mxu0 0.0
  %1333 = vmatprep.subr.mxu0 0.0
  %1334 = vmatpush1.msra.mxu0 0.0
  %1335 = vmatprep.subr.mxu0 0.0
  %1336 = vmatpush1.msra.mxu0 0.0
  %1337 = vmatprep.subr.mxu0 0.0
  %1338 = vmatpush1.msra.mxu0 0.0
  %1339 = vmatprep.subr.mxu0 0.0
  %1340 = vmatpush1.msra.mxu0 0.0
  %1341 = vmatprep.mubr.f32.mxu0 0.0
  %1342 = vmatmul.mubr.f32.gmra.mrb[0].mxu0 %v1272
  %v1343 = vpop.f32.mrb[0].mxu0
  %v1344 = vadd.f32 %v422, %v1343
  %v1345 = vpop.f32.mrb[0].mxu0
  %1346 = vmatprep.mubr.f32.mxu0 0.0
  %1347 = vmatmul.mubr.f32.gmra.mrb[0].mxu0 %v1275
  %v1348 = vpop.f32.mrb[0].mxu0
  %v1349 = vadd.f32 %v422, %v1348
  %v1350 = vpop.f32.mrb[0].mxu0
  %1351 = vdwg.mxu0
  %v1352 = vxor.u32 %v1344, 2147483648
  %v1353 = vxor.u32 %v1349, 2147483648
  %v1354 = vmul.f32 %v1352, 1.442695
  %v1355 = vpow.pop %v1354
  %v1356 = vmul.f32 %v1353, 1.442695
  %v1357 = vpow.pop %v1356
  %v1358 = vadd.f32 %v1355, 1.0
  %v1359 = vadd.f32 %v1357, 1.0
  %v1360 = vrcp.pop %v1358
  %v1361 = vmul.f32 1.0, %v1360
  %v1362 = vrcp.pop %v1359
  %v1363 = vmul.f32 1.0, %v1362
  %v1364 = vmul.f32 %v1361, 2.0
  %v1365 = vmul.f32 %v1363, 2.0
  %v1366 = vsub.f32 %v1364, 1.0
  %v1367 = vsub.f32 %v1365, 1.0
  %v1368 = vmul.f32 %v1361, %v1106
  %v1369 = vmul.f32 %v1363, %v1107
  %1372 = vrot.lane.b32.xlu0 %v1366, 112
  %v1373 = vpop.permute.xlu0 %1372
  %1374 = vrot.lane.b32.xlu0 %v1367, 112
  %v1375 = vpop.permute.xlu0 %1374
  %v1378 = vmul.f32 %v1361, %v1373
  %v1379 = vmul.f32 %v1363, %v1375
  %1382 = vrot.lane.b32.xlu0 %v1378, 8
  %v1383 = vpop.permute.xlu0 %1382
  %1384 = vrot.lane.b32.xlu0 %v1379, 8
  %v1385 = vpop.permute.xlu0 %1384
  %v1388 = vadd.f32 %v1368, %v1383
  %v1389 = vadd.f32 %v1369, %v1385
  %v1390 = vtanh.pop %v1388
  %v1391 = vtanh.pop %v1389
  %1394 = vrot.lane.b32.xlu0 %v1390, 16
  %v1395 = vpop.permute.xlu0 %1394
  %1396 = vrot.lane.b32.xlu0 %v1391, 16
  %v1397 = vpop.permute.xlu0 %1396
  %v1400 = vmul.f32 %v1361, %v1395
  %v1401 = vmul.f32 %v1363, %v1397
  %v1402 = vld [vmem:[#allocation2 + $0x40] sm:$0xff]
  %v1403 = vld [vmem:[#allocation2 + $0x48] sm:$0xff]
  %v1404 = vsel %vm277, %v1256, 0
  %v1406 = vsel %vm277, %v1258, 0
  %1408 = vmatprep.subr.mxu0 0.0
  %1409 = vmatpush1.msra.mxu0 %v31
  %1410 = vmatprep.subr.mxu0 0.0
  %1411 = vmatpush1.msra.mxu0 0.0
  %1412 = vmatprep.subr.mxu0 0.0
  %1413 = vmatpush1.msra.mxu0 0.0
  %1414 = vmatprep.subr.mxu0 0.0
  %1415 = vmatpush1.msra.mxu0 0.0
  %1416 = vmatprep.subr.mxu0 0.0
  %1417 = vmatpush1.msra.mxu0 0.0
  %1418 = vmatprep.subr.mxu0 0.0
  %1419 = vmatpush1.msra.mxu0 0.0
  %1420 = vmatprep.subr.mxu0 0.0
  %1421 = vmatpush1.msra.mxu0 0.0
  %1422 = vmatprep.subr.mxu0 0.0
  %1423 = vmatpush1.msra.mxu0 0.0
  %1424 = vmatprep.subr.mxu0 0.0
  %1425 = vmatpush1.msra.mxu0 0.0
  %1426 = vmatprep.subr.mxu0 0.0
  %1427 = vmatpush1.msra.mxu0 0.0
  %1428 = vmatprep.subr.mxu0 0.0
  %1429 = vmatpush1.msra.mxu0 0.0
  %1430 = vmatprep.subr.mxu0 0.0
  %1431 = vmatpush1.msra.mxu0 0.0
  %1432 = vmatprep.subr.mxu0 0.0
  %1433 = vmatpush1.msra.mxu0 0.0
  %1434 = vmatprep.subr.mxu0 0.0
  %1435 = vmatpush1.msra.mxu0 0.0
  %1436 = vmatprep.subr.mxu0 0.0
  %1437 = vmatpush1.msra.mxu0 0.0
  %1438 = vmatprep.subr.mxu0 0.0
  %1439 = vmatpush1.msra.mxu0 0.0
  %1440 = vmatprep.subr.mxu0 0.0
  %1441 = vmatpush1.msra.mxu0 0.0
  %1442 = vmatprep.subr.mxu0 0.0
  %1443 = vmatpush1.msra.mxu0 0.0
  %1444 = vmatprep.subr.mxu0 0.0
  %1445 = vmatpush1.msra.mxu0 0.0
  %1446 = vmatprep.subr.mxu0 0.0
  %1447 = vmatpush1.msra.mxu0 0.0
  %1448 = vmatprep.subr.mxu0 0.0
  %1449 = vmatpush1.msra.mxu0 0.0
  %1450 = vmatprep.subr.mxu0 0.0
  %1451 = vmatpush1.msra.mxu0 0.0
  %1452 = vmatprep.subr.mxu0 0.0
  %1453 = vmatpush1.msra.mxu0 0.0
  %1454 = vmatprep.subr.mxu0 0.0
  %1455 = vmatpush1.msra.mxu0 0.0
  %1456 = vmatprep.subr.mxu0 0.0
  %1457 = vmatpush1.msra.mxu0 0.0
  %1458 = vmatprep.subr.mxu0 0.0
  %1459 = vmatpush1.msra.mxu0 0.0
  %1460 = vmatprep.subr.mxu0 0.0
  %1461 = vmatpush1.msra.mxu0 0.0
  %1462 = vmatprep.subr.mxu0 0.0
  %1463 = vmatpush1.msra.mxu0 0.0
  %1464 = vmatprep.subr.mxu0 0.0
  %1465 = vmatpush1.msra.mxu0 0.0
  %1466 = vmatprep.subr.mxu0 0.0
  %1467 = vmatpush1.msra.mxu0 0.0
  %1468 = vmatprep.subr.mxu0 0.0
  %1469 = vmatpush1.msra.mxu0 0.0
  %1470 = vmatprep.subr.mxu0 0.0
  %1471 = vmatpush1.msra.mxu0 0.0
  %1472 = vmatprep.mubr.f32.mxu0 0.0
  %1473 = vmatmul.mubr.f32.gmra.mrb[0].mxu0 %v1404
  %v1474 = vpop.f32.mrb[0].mxu0
  %v1475 = vadd.f32 0.0, %v1474
  %v1476 = vpop.f32.mrb[0].mxu0
  %1477 = vmatprep.mubr.f32.mxu0 0.0
  %1478 = vmatmul.mubr.f32.gmra.mrb[0].mxu0 %v1406
  %v1479 = vpop.f32.mrb[0].mxu0
  %v1480 = vadd.f32 0.0, %v1479
  %v1481 = vpop.f32.mrb[0].mxu0
  %1482 = vdwg.mxu0
  %v1483 = vadd.f32 %v1402, %v1475
  %v1484 = vadd.f32 %v1403, %v1480
  %v1485 = vxor.u32 %v1483, 2147483648
  %v1486 = vxor.u32 %v1484, 2147483648
  %v1487 = vmul.f32 %v1485, 1.442695
  %v1488 = vpow.pop %v1487
  %v1489 = vmul.f32 %v1486, 1.442695
  %v1490 = vpow.pop %v1489
  %v1491 = vadd.f32 %v1488, 1.0
  %v1492 = vadd.f32 %v1490, 1.0
  %v1493 = vrcp.pop %v1491
  %v1494 = vmul.f32 1.0, %v1493
  %v1495 = vrcp.pop %v1492
  %v1496 = vmul.f32 1.0, %v1495
  %v1497 = vmul.f32 %v1494, 2.0
  %v1498 = vmul.f32 %v1496, 2.0
  %v1499 = vsub.f32 %v1497, 1.0
  %v1500 = vsub.f32 %v1498, 1.0
  %v1501 = vmul.f32 %v1494, %v1239
  %v1502 = vmul.f32 %v1496, %v1240
  %1505 = vrot.lane.b32.xlu0 %v1499, 112
  %v1506 = vpop.permute.xlu0 %1505
  %1507 = vrot.lane.b32.xlu0 %v1500, 112
  %v1508 = vpop.permute.xlu0 %1507
  %v1511 = vmul.f32 %v1494, %v1506
  %v1512 = vmul.f32 %v1496, %v1508
  %1515 = vrot.lane.b32.xlu0 %v1511, 8
  %v1516 = vpop.permute.xlu0 %1515
  %1517 = vrot.lane.b32.xlu0 %v1512, 8
  %v1518 = vpop.permute.xlu0 %1517
  %v1521 = vadd.f32 %v1501, %v1516
  %v1522 = vadd.f32 %v1502, %v1518
  %v1523 = vtanh.pop %v1521
  %v1524 = vtanh.pop %v1522
  %1527 = vrot.lane.b32.xlu0 %v1523, 16
  %v1528 = vpop.permute.xlu0 %1527
  %1529 = vrot.lane.b32.xlu0 %v1524, 16
  %v1530 = vpop.permute.xlu0 %1529
  %v1533 = vmul.f32 %v1494, %v1528
  %v1534 = vmul.f32 %v1496, %v1530
  %1537 = vrot.lane.b32.xlu0 %v1533, 104
  %v1538 = vpop.permute.xlu0 %1537
  %1539 = vrot.lane.b32.xlu0 %v1534, 104
  %v1540 = vpop.permute.xlu0 %1539
  %1545 = vrot.lane.b32.xlu0 %v1400, 112
  %v1546 = vpop.permute.xlu0 %1545
  %1547 = vrot.lane.b32.xlu0 %v1401, 112
  %v1548 = vpop.permute.xlu0 %1547
  %v1551 = vsel %vm277, %v1538, %v1546
  %v1552 = vsel %vm277, %v1540, %v1548
  %v1554 = vsel %vm424, %v1551, 0
  %v1557 = vsel %vm424, %v1552, 0
  %1559 = vmatprep.subr.mxu0 0.0
  %1560 = vmatpush1.msra.mxu0 %v32
  %1561 = vmatprep.subr.mxu0 0.0
  %1562 = vmatpush1.msra.mxu0 %v33
  %1563 = vmatprep.subr.mxu0 0.0
  %1564 = vmatpush1.msra.mxu0 0.0
  %1565 = vmatprep.subr.mxu0 0.0
  %1566 = vmatpush1.msra.mxu0 0.0
  %1567 = vmatprep.subr.mxu0 0.0
  %1568 = vmatpush1.msra.mxu0 0.0
  %1569 = vmatprep.subr.mxu0 0.0
  %1570 = vmatpush1.msra.mxu0 0.0
  %1571 = vmatprep.subr.mxu0 0.0
  %1572 = vmatpush1.msra.mxu0 0.0
  %1573 = vmatprep.subr.mxu0 0.0
  %1574 = vmatpush1.msra.mxu0 0.0
  %1575 = vmatprep.subr.mxu0 0.0
  %1576 = vmatpush1.msra.mxu0 0.0
  %1577 = vmatprep.subr.mxu0 0.0
  %1578 = vmatpush1.msra.mxu0 0.0
  %1579 = vmatprep.subr.mxu0 0.0
  %1580 = vmatpush1.msra.mxu0 0.0
  %1581 = vmatprep.subr.mxu0 0.0
  %1582 = vmatpush1.msra.mxu0 0.0
  %1583 = vmatprep.subr.mxu0 0.0
  %1584 = vmatpush1.msra.mxu0 0.0
  %1585 = vmatprep.subr.mxu0 0.0
  %1586 = vmatpush1.msra.mxu0 0.0
  %1587 = vmatprep.subr.mxu0 0.0
  %1588 = vmatpush1.msra.mxu0 0.0
  %1589 = vmatprep.subr.mxu0 0.0
  %1590 = vmatpush1.msra.mxu0 0.0
  %1591 = vmatprep.subr.mxu0 0.0
  %1592 = vmatpush1.msra.mxu0 0.0
  %1593 = vmatprep.subr.mxu0 0.0
  %1594 = vmatpush1.msra.mxu0 0.0
  %1595 = vmatprep.subr.mxu0 0.0
  %1596 = vmatpush1.msra.mxu0 0.0
  %1597 = vmatprep.subr.mxu0 0.0
  %1598 = vmatpush1.msra.mxu0 0.0
  %1599 = vmatprep.subr.mxu0 0.0
  %1600 = vmatpush1.msra.mxu0 0.0
  %1601 = vmatprep.subr.mxu0 0.0
  %1602 = vmatpush1.msra.mxu0 0.0
  %1603 = vmatprep.subr.mxu0 0.0
  %1604 = vmatpush1.msra.mxu0 0.0
  %1605 = vmatprep.subr.mxu0 0.0
  %1606 = vmatpush1.msra.mxu0 0.0
  %1607 = vmatprep.subr.mxu0 0.0
  %1608 = vmatpush1.msra.mxu0 0.0
  %1609 = vmatprep.subr.mxu0 0.0
  %1610 = vmatpush1.msra.mxu0 0.0
  %1611 = vmatprep.subr.mxu0 0.0
  %1612 = vmatpush1.msra.mxu0 0.0
  %1613 = vmatprep.subr.mxu0 0.0
  %1614 = vmatpush1.msra.mxu0 0.0
  %1615 = vmatprep.subr.mxu0 0.0
  %1616 = vmatpush1.msra.mxu0 0.0
  %1617 = vmatprep.subr.mxu0 0.0
  %1618 = vmatpush1.msra.mxu0 0.0
  %1619 = vmatprep.subr.mxu0 0.0
  %1620 = vmatpush1.msra.mxu0 0.0
  %1621 = vmatprep.subr.mxu0 0.0
  %1622 = vmatpush1.msra.mxu0 0.0
  %1623 = vmatprep.mubr.f32.mxu0 0.0
  %1624 = vmatmul.mubr.f32.gmra.mrb[0].mxu0 %v1554
  %v1625 = vpop.f32.mrb[0].mxu0
  %v1626 = vadd.f32 %v422, %v1625
  %v1627 = vpop.f32.mrb[0].mxu0
  %1628 = vmatprep.mubr.f32.mxu0 0.0
  %1629 = vmatmul.mubr.f32.gmra.mrb[0].mxu0 %v1557
  %v1630 = vpop.f32.mrb[0].mxu0
  %v1631 = vadd.f32 %v422, %v1630
  %v1632 = vpop.f32.mrb[0].mxu0
  %1633 = vdwg.mxu0
  %v1634 = vxor.u32 %v1626, 2147483648
  %v1635 = vxor.u32 %v1631, 2147483648
  %v1636 = vmul.f32 %v1634, 1.442695
  %v1637 = vpow.pop %v1636
  %v1638 = vmul.f32 %v1635, 1.442695
  %v1639 = vpow.pop %v1638
  %v1640 = vadd.f32 %v1637, 1.0
  %v1641 = vadd.f32 %v1639, 1.0
  %v1642 = vrcp.pop %v1640
  %v1643 = vmul.f32 1.0, %v1642
  %v1644 = vrcp.pop %v1641
  %v1645 = vmul.f32 1.0, %v1644
  %v1646 = vmul.f32 %v1643, 2.0
  %v1647 = vmul.f32 %v1645, 2.0
  %v1648 = vsub.f32 %v1646, 1.0
  %v1649 = vsub.f32 %v1647, 1.0
  %v1650 = vmul.f32 %v1643, %v1388
  %v1651 = vmul.f32 %v1645, %v1389
  %1654 = vrot.lane.b32.xlu0 %v1648, 112
  %v1655 = vpop.permute.xlu0 %1654
  %1656 = vrot.lane.b32.xlu0 %v1649, 112
  %v1657 = vpop.permute.xlu0 %1656
  %v1660 = vmul.f32 %v1643, %v1655
  %v1661 = vmul.f32 %v1645, %v1657
  %1664 = vrot.lane.b32.xlu0 %v1660, 8
  %v1665 = vpop.permute.xlu0 %1664
  %1666 = vrot.lane.b32.xlu0 %v1661, 8
  %v1667 = vpop.permute.xlu0 %1666
  %v1670 = vadd.f32 %v1650, %v1665
  %v1671 = vadd.f32 %v1651, %v1667
  %v1672 = vtanh.pop %v1670
  %v1673 = vtanh.pop %v1671
  %1676 = vrot.lane.b32.xlu0 %v1672, 16
  %v1677 = vpop.permute.xlu0 %1676
  %1678 = vrot.lane.b32.xlu0 %v1673, 16
  %v1679 = vpop.permute.xlu0 %1678
  %v1682 = vmul.f32 %v1643, %v1677
  %v1683 = vmul.f32 %v1645, %v1679
  %v1684 = vld [vmem:[#allocation2 + $0x50] sm:$0xff]
  %v1685 = vld [vmem:[#allocation2 + $0x58] sm:$0xff]
  %v1686 = vsel %vm277, %v1538, 0
  %v1688 = vsel %vm277, %v1540, 0
  %1690 = vmatprep.subr.mxu0 0.0
  %1691 = vmatpush1.msra.mxu0 %v31
  %1692 = vmatprep.subr.mxu0 0.0
  %1693 = vmatpush1.msra.mxu0 0.0
  %1694 = vmatprep.subr.mxu0 0.0
  %1695 = vmatpush1.msra.mxu0 0.0
  %1696 = vmatprep.subr.mxu0 0.0
  %1697 = vmatpush1.msra.mxu0 0.0
  %1698 = vmatprep.subr.mxu0 0.0
  %1699 = vmatpush1.msra.mxu0 0.0
  %1700 = vmatprep.subr.mxu0 0.0
  %1701 = vmatpush1.msra.mxu0 0.0
  %1702 = vmatprep.subr.mxu0 0.0
  %1703 = vmatpush1.msra.mxu0 0.0
  %1704 = vmatprep.subr.mxu0 0.0
  %1705 = vmatpush1.msra.mxu0 0.0
  %1706 = vmatprep.subr.mxu0 0.0
  %1707 = vmatpush1.msra.mxu0 0.0
  %1708 = vmatprep.subr.mxu0 0.0
  %1709 = vmatpush1.msra.mxu0 0.0
  %1710 = vmatprep.subr.mxu0 0.0
  %1711 = vmatpush1.msra.mxu0 0.0
  %1712 = vmatprep.subr.mxu0 0.0
  %1713 = vmatpush1.msra.mxu0 0.0
  %1714 = vmatprep.subr.mxu0 0.0
  %1715 = vmatpush1.msra.mxu0 0.0
  %1716 = vmatprep.subr.mxu0 0.0
  %1717 = vmatpush1.msra.mxu0 0.0
  %1718 = vmatprep.subr.mxu0 0.0
  %1719 = vmatpush1.msra.mxu0 0.0
  %1720 = vmatprep.subr.mxu0 0.0
  %1721 = vmatpush1.msra.mxu0 0.0
  %1722 = vmatprep.subr.mxu0 0.0
  %1723 = vmatpush1.msra.mxu0 0.0
  %1724 = vmatprep.subr.mxu0 0.0
  %1725 = vmatpush1.msra.mxu0 0.0
  %1726 = vmatprep.subr.mxu0 0.0
  %1727 = vmatpush1.msra.mxu0 0.0
  %1728 = vmatprep.subr.mxu0 0.0
  %1729 = vmatpush1.msra.mxu0 0.0
  %1730 = vmatprep.subr.mxu0 0.0
  %1731 = vmatpush1.msra.mxu0 0.0
  %1732 = vmatprep.subr.mxu0 0.0
  %1733 = vmatpush1.msra.mxu0 0.0
  %1734 = vmatprep.subr.mxu0 0.0
  %1735 = vmatpush1.msra.mxu0 0.0
  %1736 = vmatprep.subr.mxu0 0.0
  %1737 = vmatpush1.msra.mxu0 0.0
  %1738 = vmatprep.subr.mxu0 0.0
  %1739 = vmatpush1.msra.mxu0 0.0
  %1740 = vmatprep.subr.mxu0 0.0
  %1741 = vmatpush1.msra.mxu0 0.0
  %1742 = vmatprep.subr.mxu0 0.0
  %1743 = vmatpush1.msra.mxu0 0.0
  %1744 = vmatprep.subr.mxu0 0.0
  %1745 = vmatpush1.msra.mxu0 0.0
  %1746 = vmatprep.subr.mxu0 0.0
  %1747 = vmatpush1.msra.mxu0 0.0
  %1748 = vmatprep.subr.mxu0 0.0
  %1749 = vmatpush1.msra.mxu0 0.0
  %1750 = vmatprep.subr.mxu0 0.0
  %1751 = vmatpush1.msra.mxu0 0.0
  %1752 = vmatprep.subr.mxu0 0.0
  %1753 = vmatpush1.msra.mxu0 0.0
  %1754 = vmatprep.mubr.f32.mxu0 0.0
  %1755 = vmatmul.mubr.f32.gmra.mrb[0].mxu0 %v1686
  %v1756 = vpop.f32.mrb[0].mxu0
  %v1757 = vadd.f32 0.0, %v1756
  %v1758 = vpop.f32.mrb[0].mxu0
  %1759 = vmatprep.mubr.f32.mxu0 0.0
  %1760 = vmatmul.mubr.f32.gmra.mrb[0].mxu0 %v1688
  %v1761 = vpop.f32.mrb[0].mxu0
  %v1762 = vadd.f32 0.0, %v1761
  %v1763 = vpop.f32.mrb[0].mxu0
  %1764 = vdwg.mxu0
  %v1765 = vadd.f32 %v1684, %v1757
  %v1766 = vadd.f32 %v1685, %v1762
  %v1767 = vxor.u32 %v1765, 2147483648
  %v1768 = vxor.u32 %v1766, 2147483648
  %v1769 = vmul.f32 %v1767, 1.442695
  %v1770 = vpow.pop %v1769
  %v1771 = vmul.f32 %v1768, 1.442695
  %v1772 = vpow.pop %v1771
  %v1773 = vadd.f32 %v1770, 1.0
  %v1774 = vadd.f32 %v1772, 1.0
  %v1775 = vrcp.pop %v1773
  %v1776 = vmul.f32 1.0, %v1775
  %v1777 = vrcp.pop %v1774
  %v1778 = vmul.f32 1.0, %v1777
  %v1779 = vmul.f32 %v1776, 2.0
  %v1780 = vmul.f32 %v1778, 2.0
  %v1781 = vsub.f32 %v1779, 1.0
  %v1782 = vsub.f32 %v1780, 1.0
  %v1783 = vmul.f32 %v1776, %v1521
  %v1784 = vmul.f32 %v1778, %v1522
  %1787 = vrot.lane.b32.xlu0 %v1781, 112
  %v1788 = vpop.permute.xlu0 %1787
  %1789 = vrot.lane.b32.xlu0 %v1782, 112
  %v1790 = vpop.permute.xlu0 %1789
  %v1793 = vmul.f32 %v1776, %v1788
  %v1794 = vmul.f32 %v1778, %v1790
  %1797 = vrot.lane.b32.xlu0 %v1793, 8
  %v1798 = vpop.permute.xlu0 %1797
  %1799 = vrot.lane.b32.xlu0 %v1794, 8
  %v1800 = vpop.permute.xlu0 %1799
  %v1803 = vadd.f32 %v1783, %v1798
  %v1804 = vadd.f32 %v1784, %v1800
  %v1805 = vtanh.pop %v1803
  %v1806 = vtanh.pop %v1804
  %1809 = vrot.lane.b32.xlu0 %v1805, 16
  %v1810 = vpop.permute.xlu0 %1809
  %1811 = vrot.lane.b32.xlu0 %v1806, 16
  %v1812 = vpop.permute.xlu0 %1811
  %v1815 = vmul.f32 %v1776, %v1810
  %v1816 = vmul.f32 %v1778, %v1812
  %1819 = vrot.lane.b32.xlu0 %v1815, 104
  %v1820 = vpop.permute.xlu0 %1819
  %1821 = vrot.lane.b32.xlu0 %v1816, 104
  %v1822 = vpop.permute.xlu0 %1821
  %1827 = vrot.lane.b32.xlu0 %v1682, 112
  %v1828 = vpop.permute.xlu0 %1827
  %1829 = vrot.lane.b32.xlu0 %v1683, 112
  %v1830 = vpop.permute.xlu0 %1829
  %v1833 = vsel %vm277, %v1820, %v1828
  %v1834 = vsel %vm277, %v1822, %v1830
  %v1836 = vsel %vm424, %v1833, 0
  %v1839 = vsel %vm424, %v1834, 0
  %1841 = vmatprep.subr.mxu0 0.0
  %1842 = vmatpush1.msra.mxu0 %v32
  %1843 = vmatprep.subr.mxu0 0.0
  %1844 = vmatpush1.msra.mxu0 %v33
  %1845 = vmatprep.subr.mxu0 0.0
  %1846 = vmatpush1.msra.mxu0 0.0
  %1847 = vmatprep.subr.mxu0 0.0
  %1848 = vmatpush1.msra.mxu0 0.0
  %1849 = vmatprep.subr.mxu0 0.0
  %1850 = vmatpush1.msra.mxu0 0.0
  %1851 = vmatprep.subr.mxu0 0.0
  %1852 = vmatpush1.msra.mxu0 0.0
  %1853 = vmatprep.subr.mxu0 0.0
  %1854 = vmatpush1.msra.mxu0 0.0
  %1855 = vmatprep.subr.mxu0 0.0
  %1856 = vmatpush1.msra.mxu0 0.0
  %1857 = vmatprep.subr.mxu0 0.0
  %1858 = vmatpush1.msra.mxu0 0.0
  %1859 = vmatprep.subr.mxu0 0.0
  %1860 = vmatpush1.msra.mxu0 0.0
  %1861 = vmatprep.subr.mxu0 0.0
  %1862 = vmatpush1.msra.mxu0 0.0
  %1863 = vmatprep.subr.mxu0 0.0
  %1864 = vmatpush1.msra.mxu0 0.0
  %1865 = vmatprep.subr.mxu0 0.0
  %1866 = vmatpush1.msra.mxu0 0.0
  %1867 = vmatprep.subr.mxu0 0.0
  %1868 = vmatpush1.msra.mxu0 0.0
  %1869 = vmatprep.subr.mxu0 0.0
  %1870 = vmatpush1.msra.mxu0 0.0
  %1871 = vmatprep.subr.mxu0 0.0
  %1872 = vmatpush1.msra.mxu0 0.0
  %1873 = vmatprep.subr.mxu0 0.0
  %1874 = vmatpush1.msra.mxu0 0.0
  %1875 = vmatprep.subr.mxu0 0.0
  %1876 = vmatpush1.msra.mxu0 0.0
  %1877 = vmatprep.subr.mxu0 0.0
  %1878 = vmatpush1.msra.mxu0 0.0
  %1879 = vmatprep.subr.mxu0 0.0
  %1880 = vmatpush1.msra.mxu0 0.0
  %1881 = vmatprep.subr.mxu0 0.0
  %1882 = vmatpush1.msra.mxu0 0.0
  %1883 = vmatprep.subr.mxu0 0.0
  %1884 = vmatpush1.msra.mxu0 0.0
  %1885 = vmatprep.subr.mxu0 0.0
  %1886 = vmatpush1.msra.mxu0 0.0
  %1887 = vmatprep.subr.mxu0 0.0
  %1888 = vmatpush1.msra.mxu0 0.0
  %1889 = vmatprep.subr.mxu0 0.0
  %1890 = vmatpush1.msra.mxu0 0.0
  %1891 = vmatprep.subr.mxu0 0.0
  %1892 = vmatpush1.msra.mxu0 0.0
  %1893 = vmatprep.subr.mxu0 0.0
  %1894 = vmatpush1.msra.mxu0 0.0
  %1895 = vmatprep.subr.mxu0 0.0
  %1896 = vmatpush1.msra.mxu0 0.0
  %1897 = vmatprep.subr.mxu0 0.0
  %1898 = vmatpush1.msra.mxu0 0.0
  %1899 = vmatprep.subr.mxu0 0.0
  %1900 = vmatpush1.msra.mxu0 0.0
  %1901 = vmatprep.subr.mxu0 0.0
  %1902 = vmatpush1.msra.mxu0 0.0
  %1903 = vmatprep.subr.mxu0 0.0
  %1904 = vmatpush1.msra.mxu0 0.0
  %1905 = vmatprep.mubr.f32.mxu0 0.0
  %1906 = vmatmul.mubr.f32.gmra.mrb[0].mxu0 %v1836
  %v1907 = vpop.f32.mrb[0].mxu0
  %v1908 = vadd.f32 %v422, %v1907
  %v1909 = vpop.f32.mrb[0].mxu0
  %1910 = vmatprep.mubr.f32.mxu0 0.0
  %1911 = vmatmul.mubr.f32.gmra.mrb[0].mxu0 %v1839
  %v1912 = vpop.f32.mrb[0].mxu0
  %v1913 = vadd.f32 %v422, %v1912
  %v1914 = vpop.f32.mrb[0].mxu0
  %1915 = vdwg.mxu0
  %v1916 = vxor.u32 %v1908, 2147483648
  %v1917 = vxor.u32 %v1913, 2147483648
  %v1918 = vmul.f32 %v1916, 1.442695
  %v1919 = vpow.pop %v1918
  %v1920 = vmul.f32 %v1917, 1.442695
  %v1921 = vpow.pop %v1920
  %v1922 = vadd.f32 %v1919, 1.0
  %v1923 = vadd.f32 %v1921, 1.0
  %v1924 = vrcp.pop %v1922
  %v1925 = vmul.f32 1.0, %v1924
  %v1926 = vrcp.pop %v1923
  %v1927 = vmul.f32 1.0, %v1926
  %v1928 = vmul.f32 %v1925, 2.0
  %v1929 = vmul.f32 %v1927, 2.0
  %v1930 = vsub.f32 %v1928, 1.0
  %v1931 = vsub.f32 %v1929, 1.0
  %v1932 = vmul.f32 %v1925, %v1670
  %v1933 = vmul.f32 %v1927, %v1671
  %1936 = vrot.lane.b32.xlu0 %v1930, 112
  %v1937 = vpop.permute.xlu0 %1936
  %1938 = vrot.lane.b32.xlu0 %v1931, 112
  %v1939 = vpop.permute.xlu0 %1938
  %v1942 = vmul.f32 %v1925, %v1937
  %v1943 = vmul.f32 %v1927, %v1939
  %1946 = vrot.lane.b32.xlu0 %v1942, 8
  %v1947 = vpop.permute.xlu0 %1946
  %1948 = vrot.lane.b32.xlu0 %v1943, 8
  %v1949 = vpop.permute.xlu0 %1948
  %v1952 = vadd.f32 %v1932, %v1947
  %v1953 = vadd.f32 %v1933, %v1949
  %v1954 = vtanh.pop %v1952
  %v1955 = vtanh.pop %v1953
  %1958 = vrot.lane.b32.xlu0 %v1954, 16
  %v1959 = vpop.permute.xlu0 %1958
  %1960 = vrot.lane.b32.xlu0 %v1955, 16
  %v1961 = vpop.permute.xlu0 %1960
  %v1964 = vmul.f32 %v1925, %v1959
  %v1965 = vmul.f32 %v1927, %v1961
  %v1966 = vld [vmem:[#allocation2 + $0x60] sm:$0xff]
  %v1967 = vld [vmem:[#allocation2 + $0x68] sm:$0xff]
  %v1968 = vsel %vm277, %v1820, 0
  %v1970 = vsel %vm277, %v1822, 0
  %1972 = vmatprep.subr.mxu0 0.0
  %1973 = vmatpush1.msra.mxu0 %v31
  %1974 = vmatprep.subr.mxu0 0.0
  %1975 = vmatpush1.msra.mxu0 0.0
  %1976 = vmatprep.subr.mxu0 0.0
  %1977 = vmatpush1.msra.mxu0 0.0
  %1978 = vmatprep.subr.mxu0 0.0
  %1979 = vmatpush1.msra.mxu0 0.0
  %1980 = vmatprep.subr.mxu0 0.0
  %1981 = vmatpush1.msra.mxu0 0.0
  %1982 = vmatprep.subr.mxu0 0.0
  %1983 = vmatpush1.msra.mxu0 0.0
  %1984 = vmatprep.subr.mxu0 0.0
  %1985 = vmatpush1.msra.mxu0 0.0
  %1986 = vmatprep.subr.mxu0 0.0
  %1987 = vmatpush1.msra.mxu0 0.0
  %1988 = vmatprep.subr.mxu0 0.0
  %1989 = vmatpush1.msra.mxu0 0.0
  %1990 = vmatprep.subr.mxu0 0.0
  %1991 = vmatpush1.msra.mxu0 0.0
  %1992 = vmatprep.subr.mxu0 0.0
  %1993 = vmatpush1.msra.mxu0 0.0
  %1994 = vmatprep.subr.mxu0 0.0
  %1995 = vmatpush1.msra.mxu0 0.0
  %1996 = vmatprep.subr.mxu0 0.0
  %1997 = vmatpush1.msra.mxu0 0.0
  %1998 = vmatprep.subr.mxu0 0.0
  %1999 = vmatpush1.msra.mxu0 0.0
  %2000 = vmatprep.subr.mxu0 0.0
  %2001 = vmatpush1.msra.mxu0 0.0
  %2002 = vmatprep.subr.mxu0 0.0
  %2003 = vmatpush1.msra.mxu0 0.0
  %2004 = vmatprep.subr.mxu0 0.0
  %2005 = vmatpush1.msra.mxu0 0.0
  %2006 = vmatprep.subr.mxu0 0.0
  %2007 = vmatpush1.msra.mxu0 0.0
  %2008 = vmatprep.subr.mxu0 0.0
  %2009 = vmatpush1.msra.mxu0 0.0
  %2010 = vmatprep.subr.mxu0 0.0
  %2011 = vmatpush1.msra.mxu0 0.0
  %2012 = vmatprep.subr.mxu0 0.0
  %2013 = vmatpush1.msra.mxu0 0.0
  %2014 = vmatprep.subr.mxu0 0.0
  %2015 = vmatpush1.msra.mxu0 0.0
  %2016 = vmatprep.subr.mxu0 0.0
  %2017 = vmatpush1.msra.mxu0 0.0
  %2018 = vmatprep.subr.mxu0 0.0
  %2019 = vmatpush1.msra.mxu0 0.0
  %2020 = vmatprep.subr.mxu0 0.0
  %2021 = vmatpush1.msra.mxu0 0.0
  %2022 = vmatprep.subr.mxu0 0.0
  %2023 = vmatpush1.msra.mxu0 0.0
  %2024 = vmatprep.subr.mxu0 0.0
  %2025 = vmatpush1.msra.mxu0 0.0
  %2026 = vmatprep.subr.mxu0 0.0
  %2027 = vmatpush1.msra.mxu0 0.0
  %2028 = vmatprep.subr.mxu0 0.0
  %2029 = vmatpush1.msra.mxu0 0.0
  %2030 = vmatprep.subr.mxu0 0.0
  %2031 = vmatpush1.msra.mxu0 0.0
  %2032 = vmatprep.subr.mxu0 0.0
  %2033 = vmatpush1.msra.mxu0 0.0
  %2034 = vmatprep.subr.mxu0 0.0
  %2035 = vmatpush1.msra.mxu0 0.0
  %2036 = vmatprep.mubr.f32.mxu0 0.0
  %2037 = vmatmul.mubr.f32.gmra.mrb[0].mxu0 %v1968
  %v2038 = vpop.f32.mrb[0].mxu0
  %v2039 = vadd.f32 0.0, %v2038
  %v2040 = vpop.f32.mrb[0].mxu0
  %2041 = vmatprep.mubr.f32.mxu0 0.0
  %2042 = vmatmul.mubr.f32.gmra.mrb[0].mxu0 %v1970
  %v2043 = vpop.f32.mrb[0].mxu0
  %v2044 = vadd.f32 0.0, %v2043
  %v2045 = vpop.f32.mrb[0].mxu0
  %2046 = vdwg.mxu0
  %v2047 = vadd.f32 %v1966, %v2039
  %v2048 = vadd.f32 %v1967, %v2044
  %v2049 = vxor.u32 %v2047, 2147483648
  %v2050 = vxor.u32 %v2048, 2147483648
  %v2051 = vmul.f32 %v2049, 1.442695
  %v2052 = vpow.pop %v2051
  %v2053 = vmul.f32 %v2050, 1.442695
  %v2054 = vpow.pop %v2053
  %v2055 = vadd.f32 %v2052, 1.0
  %v2056 = vadd.f32 %v2054, 1.0
  %v2057 = vrcp.pop %v2055
  %v2058 = vmul.f32 1.0, %v2057
  %v2059 = vrcp.pop %v2056
  %v2060 = vmul.f32 1.0, %v2059
  %v2061 = vmul.f32 %v2058, 2.0
  %v2062 = vmul.f32 %v2060, 2.0
  %v2063 = vsub.f32 %v2061, 1.0
  %v2064 = vsub.f32 %v2062, 1.0
  %v2065 = vmul.f32 %v2058, %v1803
  %v2066 = vmul.f32 %v2060, %v1804
  %2069 = vrot.lane.b32.xlu0 %v2063, 112
  %v2070 = vpop.permute.xlu0 %2069
  %2071 = vrot.lane.b32.xlu0 %v2064, 112
  %v2072 = vpop.permute.xlu0 %2071
  %v2075 = vmul.f32 %v2058, %v2070
  %v2076 = vmul.f32 %v2060, %v2072
  %2079 = vrot.lane.b32.xlu0 %v2075, 8
  %v2080 = vpop.permute.xlu0 %2079
  %2081 = vrot.lane.b32.xlu0 %v2076, 8
  %v2082 = vpop.permute.xlu0 %2081
  %v2085 = vadd.f32 %v2065, %v2080
  %v2086 = vadd.f32 %v2066, %v2082
  %v2087 = vtanh.pop %v2085
  %v2088 = vtanh.pop %v2086
  %2091 = vrot.lane.b32.xlu0 %v2087, 16
  %v2092 = vpop.permute.xlu0 %2091
  %2093 = vrot.lane.b32.xlu0 %v2088, 16
  %v2094 = vpop.permute.xlu0 %2093
  %v2097 = vmul.f32 %v2058, %v2092
  %v2098 = vmul.f32 %v2060, %v2094
  %2101 = vrot.lane.b32.xlu0 %v2097, 104
  %v2102 = vpop.permute.xlu0 %2101
  %2103 = vrot.lane.b32.xlu0 %v2098, 104
  %v2104 = vpop.permute.xlu0 %2103
  %2109 = vrot.lane.b32.xlu0 %v1964, 112
  %v2110 = vpop.permute.xlu0 %2109
  %2111 = vrot.lane.b32.xlu0 %v1965, 112
  %v2112 = vpop.permute.xlu0 %2111
  %v2115 = vsel %vm277, %v2102, %v2110
  %v2116 = vsel %vm277, %v2104, %v2112
  %v2118 = vsel %vm424, %v2115, 0
  %v2121 = vsel %vm424, %v2116, 0
  %2123 = vmatprep.subr.mxu0 0.0
  %2124 = vmatpush1.msra.mxu0 %v32
  %2125 = vmatprep.subr.mxu0 0.0
  %2126 = vmatpush1.msra.mxu0 %v33
  %2127 = vmatprep.subr.mxu0 0.0
  %2128 = vmatpush1.msra.mxu0 0.0
  %2129 = vmatprep.subr.mxu0 0.0
  %2130 = vmatpush1.msra.mxu0 0.0
  %2131 = vmatprep.subr.mxu0 0.0
  %2132 = vmatpush1.msra.mxu0 0.0
  %2133 = vmatprep.subr.mxu0 0.0
  %2134 = vmatpush1.msra.mxu0 0.0
  %2135 = vmatprep.subr.mxu0 0.0
  %2136 = vmatpush1.msra.mxu0 0.0
  %2137 = vmatprep.subr.mxu0 0.0
  %2138 = vmatpush1.msra.mxu0 0.0
  %2139 = vmatprep.subr.mxu0 0.0
  %2140 = vmatpush1.msra.mxu0 0.0
  %2141 = vmatprep.subr.mxu0 0.0
  %2142 = vmatpush1.msra.mxu0 0.0
  %2143 = vmatprep.subr.mxu0 0.0
  %2144 = vmatpush1.msra.mxu0 0.0
  %2145 = vmatprep.subr.mxu0 0.0
  %2146 = vmatpush1.msra.mxu0 0.0
  %2147 = vmatprep.subr.mxu0 0.0
  %2148 = vmatpush1.msra.mxu0 0.0
  %2149 = vmatprep.subr.mxu0 0.0
  %2150 = vmatpush1.msra.mxu0 0.0
  %2151 = vmatprep.subr.mxu0 0.0
  %2152 = vmatpush1.msra.mxu0 0.0
  %2153 = vmatprep.subr.mxu0 0.0
  %2154 = vmatpush1.msra.mxu0 0.0
  %2155 = vmatprep.subr.mxu0 0.0
  %2156 = vmatpush1.msra.mxu0 0.0
  %2157 = vmatprep.subr.mxu0 0.0
  %2158 = vmatpush1.msra.mxu0 0.0
  %2159 = vmatprep.subr.mxu0 0.0
  %2160 = vmatpush1.msra.mxu0 0.0
  %2161 = vmatprep.subr.mxu0 0.0
  %2162 = vmatpush1.msra.mxu0 0.0
  %2163 = vmatprep.subr.mxu0 0.0
  %2164 = vmatpush1.msra.mxu0 0.0
  %2165 = vmatprep.subr.mxu0 0.0
  %2166 = vmatpush1.msra.mxu0 0.0
  %2167 = vmatprep.subr.mxu0 0.0
  %2168 = vmatpush1.msra.mxu0 0.0
  %2169 = vmatprep.subr.mxu0 0.0
  %2170 = vmatpush1.msra.mxu0 0.0
  %2171 = vmatprep.subr.mxu0 0.0
  %2172 = vmatpush1.msra.mxu0 0.0
  %2173 = vmatprep.subr.mxu0 0.0
  %2174 = vmatpush1.msra.mxu0 0.0
  %2175 = vmatprep.subr.mxu0 0.0
  %2176 = vmatpush1.msra.mxu0 0.0
  %2177 = vmatprep.subr.mxu0 0.0
  %2178 = vmatpush1.msra.mxu0 0.0
  %2179 = vmatprep.subr.mxu0 0.0
  %2180 = vmatpush1.msra.mxu0 0.0
  %2181 = vmatprep.subr.mxu0 0.0
  %2182 = vmatpush1.msra.mxu0 0.0
  %2183 = vmatprep.subr.mxu0 0.0
  %2184 = vmatpush1.msra.mxu0 0.0
  %2185 = vmatprep.subr.mxu0 0.0
  %2186 = vmatpush1.msra.mxu0 0.0
  %2187 = vmatprep.mubr.f32.mxu0 0.0
  %2188 = vmatmul.mubr.f32.gmra.mrb[0].mxu0 %v2118
  %v2189 = vpop.f32.mrb[0].mxu0
  %v2190 = vadd.f32 %v422, %v2189
  %v2191 = vpop.f32.mrb[0].mxu0
  %2192 = vmatprep.mubr.f32.mxu0 0.0
  %2193 = vmatmul.mubr.f32.gmra.mrb[0].mxu0 %v2121
  %v2194 = vpop.f32.mrb[0].mxu0
  %v2195 = vadd.f32 %v422, %v2194
  %v2196 = vpop.f32.mrb[0].mxu0
  %2197 = vdwg.mxu0
  %v2198 = vxor.u32 %v2190, 2147483648
  %v2199 = vxor.u32 %v2195, 2147483648
  %v2200 = vmul.f32 %v2198, 1.442695
  %v2201 = vpow.pop %v2200
  %v2202 = vmul.f32 %v2199, 1.442695
  %v2203 = vpow.pop %v2202
  %v2204 = vadd.f32 %v2201, 1.0
  %v2205 = vadd.f32 %v2203, 1.0
  %v2206 = vrcp.pop %v2204
  %v2207 = vmul.f32 1.0, %v2206
  %v2208 = vrcp.pop %v2205
  %v2209 = vmul.f32 1.0, %v2208
  %v2210 = vmul.f32 %v2207, 2.0
  %v2211 = vmul.f32 %v2209, 2.0
  %v2212 = vsub.f32 %v2210, 1.0
  %v2213 = vsub.f32 %v2211, 1.0
  %v2214 = vmul.f32 %v2207, %v1952
  %v2215 = vmul.f32 %v2209, %v1953
  %2218 = vrot.lane.b32.xlu0 %v2212, 112
  %v2219 = vpop.permute.xlu0 %2218
  %2220 = vrot.lane.b32.xlu0 %v2213, 112
  %v2221 = vpop.permute.xlu0 %2220
  %v2224 = vmul.f32 %v2207, %v2219
  %v2225 = vmul.f32 %v2209, %v2221
  %2228 = vrot.lane.b32.xlu0 %v2224, 8
  %v2229 = vpop.permute.xlu0 %2228
  %2230 = vrot.lane.b32.xlu0 %v2225, 8
  %v2231 = vpop.permute.xlu0 %2230
  %v2234 = vadd.f32 %v2214, %v2229
  %v2235 = vadd.f32 %v2215, %v2231
  %v2236 = vtanh.pop %v2234
  %v2237 = vtanh.pop %v2235
  %2240 = vrot.lane.b32.xlu0 %v2236, 16
  %v2241 = vpop.permute.xlu0 %2240
  %2242 = vrot.lane.b32.xlu0 %v2237, 16
  %v2243 = vpop.permute.xlu0 %2242
  %v2246 = vmul.f32 %v2207, %v2241
  %v2247 = vmul.f32 %v2209, %v2243
  %v2248 = vld [vmem:[#allocation2 + $0x70] sm:$0xff]
  %v2249 = vld [vmem:[#allocation2 + $0x78] sm:$0xff]
  %v2250 = vsel %vm277, %v2102, 0
  %v2252 = vsel %vm277, %v2104, 0
  %2254 = vmatprep.subr.mxu0 0.0
  %2255 = vmatpush1.msra.mxu0 %v31
  %2256 = vmatprep.subr.mxu0 0.0
  %2257 = vmatpush1.msra.mxu0 0.0
  %2258 = vmatprep.subr.mxu0 0.0
  %2259 = vmatpush1.msra.mxu0 0.0
  %2260 = vmatprep.subr.mxu0 0.0
  %2261 = vmatpush1.msra.mxu0 0.0
  %2262 = vmatprep.subr.mxu0 0.0
  %2263 = vmatpush1.msra.mxu0 0.0
  %2264 = vmatprep.subr.mxu0 0.0
  %2265 = vmatpush1.msra.mxu0 0.0
  %2266 = vmatprep.subr.mxu0 0.0
  %2267 = vmatpush1.msra.mxu0 0.0
  %2268 = vmatprep.subr.mxu0 0.0
  %2269 = vmatpush1.msra.mxu0 0.0
  %2270 = vmatprep.subr.mxu0 0.0
  %2271 = vmatpush1.msra.mxu0 0.0
  %2272 = vmatprep.subr.mxu0 0.0
  %2273 = vmatpush1.msra.mxu0 0.0
  %2274 = vmatprep.subr.mxu0 0.0
  %2275 = vmatpush1.msra.mxu0 0.0
  %2276 = vmatprep.subr.mxu0 0.0
  %2277 = vmatpush1.msra.mxu0 0.0
  %2278 = vmatprep.subr.mxu0 0.0
  %2279 = vmatpush1.msra.mxu0 0.0
  %2280 = vmatprep.subr.mxu0 0.0
  %2281 = vmatpush1.msra.mxu0 0.0
  %2282 = vmatprep.subr.mxu0 0.0
  %2283 = vmatpush1.msra.mxu0 0.0
  %2284 = vmatprep.subr.mxu0 0.0
  %2285 = vmatpush1.msra.mxu0 0.0
  %2286 = vmatprep.subr.mxu0 0.0
  %2287 = vmatpush1.msra.mxu0 0.0
  %2288 = vmatprep.subr.mxu0 0.0
  %2289 = vmatpush1.msra.mxu0 0.0
  %2290 = vmatprep.subr.mxu0 0.0
  %2291 = vmatpush1.msra.mxu0 0.0
  %2292 = vmatprep.subr.mxu0 0.0
  %2293 = vmatpush1.msra.mxu0 0.0
  %2294 = vmatprep.subr.mxu0 0.0
  %2295 = vmatpush1.msra.mxu0 0.0
  %2296 = vmatprep.subr.mxu0 0.0
  %2297 = vmatpush1.msra.mxu0 0.0
  %2298 = vmatprep.subr.mxu0 0.0
  %2299 = vmatpush1.msra.mxu0 0.0
  %2300 = vmatprep.subr.mxu0 0.0
  %2301 = vmatpush1.msra.mxu0 0.0
  %2302 = vmatprep.subr.mxu0 0.0
  %2303 = vmatpush1.msra.mxu0 0.0
  %2304 = vmatprep.subr.mxu0 0.0
  %2305 = vmatpush1.msra.mxu0 0.0
  %2306 = vmatprep.subr.mxu0 0.0
  %2307 = vmatpush1.msra.mxu0 0.0
  %2308 = vmatprep.subr.mxu0 0.0
  %2309 = vmatpush1.msra.mxu0 0.0
  %2310 = vmatprep.subr.mxu0 0.0
  %2311 = vmatpush1.msra.mxu0 0.0
  %2312 = vmatprep.subr.mxu0 0.0
  %2313 = vmatpush1.msra.mxu0 0.0
  %2314 = vmatprep.subr.mxu0 0.0
  %2315 = vmatpush1.msra.mxu0 0.0
  %2316 = vmatprep.subr.mxu0 0.0
  %2317 = vmatpush1.msra.mxu0 0.0
  %2318 = vmatprep.mubr.f32.mxu0 0.0
  %2319 = vmatmul.mubr.f32.gmra.mrb[0].mxu0 %v2250
  %v2320 = vpop.f32.mrb[0].mxu0
  %v2321 = vadd.f32 0.0, %v2320
  %v2322 = vpop.f32.mrb[0].mxu0
  %2323 = vmatprep.mubr.f32.mxu0 0.0
  %2324 = vmatmul.mubr.f32.gmra.mrb[0].mxu0 %v2252
  %v2325 = vpop.f32.mrb[0].mxu0
  %v2326 = vadd.f32 0.0, %v2325
  %v2327 = vpop.f32.mrb[0].mxu0
  %2328 = vdwg.mxu0
  %v2329 = vadd.f32 %v2248, %v2321
  %v2330 = vadd.f32 %v2249, %v2326
  %v2331 = vxor.u32 %v2329, 2147483648
  %v2332 = vxor.u32 %v2330, 2147483648
  %v2333 = vmul.f32 %v2331, 1.442695
  %v2334 = vpow.pop %v2333
  %v2335 = vmul.f32 %v2332, 1.442695
  %v2336 = vpow.pop %v2335
  %v2337 = vadd.f32 %v2334, 1.0
  %v2338 = vadd.f32 %v2336, 1.0
  %v2339 = vrcp.pop %v2337
  %v2340 = vmul.f32 1.0, %v2339
  %v2341 = vrcp.pop %v2338
  %v2342 = vmul.f32 1.0, %v2341
  %v2343 = vmul.f32 %v2340, 2.0
  %v2344 = vmul.f32 %v2342, 2.0
  %v2345 = vsub.f32 %v2343, 1.0
  %v2346 = vsub.f32 %v2344, 1.0
  %v2347 = vmul.f32 %v2340, %v2085
  %v2348 = vmul.f32 %v2342, %v2086
  %2351 = vrot.lane.b32.xlu0 %v2345, 112
  %v2352 = vpop.permute.xlu0 %2351
  %2353 = vrot.lane.b32.xlu0 %v2346, 112
  %v2354 = vpop.permute.xlu0 %2353
  %v2357 = vmul.f32 %v2340, %v2352
  %v2358 = vmul.f32 %v2342, %v2354
  %2361 = vrot.lane.b32.xlu0 %v2357, 8
  %v2362 = vpop.permute.xlu0 %2361
  %2363 = vrot.lane.b32.xlu0 %v2358, 8
  %v2364 = vpop.permute.xlu0 %2363
  %v2367 = vadd.f32 %v2347, %v2362
  %v2368 = vadd.f32 %v2348, %v2364
  %v2369 = vtanh.pop %v2367
  %v2370 = vtanh.pop %v2368
  %2373 = vrot.lane.b32.xlu0 %v2369, 16
  %v2374 = vpop.permute.xlu0 %2373
  %2375 = vrot.lane.b32.xlu0 %v2370, 16
  %v2376 = vpop.permute.xlu0 %2375
  %v2379 = vmul.f32 %v2340, %v2374
  %v2380 = vmul.f32 %v2342, %v2376
  %2383 = vrot.lane.b32.xlu0 %v2379, 104
  %v2384 = vpop.permute.xlu0 %2383
  %2385 = vrot.lane.b32.xlu0 %v2380, 104
  %v2386 = vpop.permute.xlu0 %2385
  %2391 = vrot.lane.b32.xlu0 %v2246, 112
  %v2392 = vpop.permute.xlu0 %2391
  %2393 = vrot.lane.b32.xlu0 %v2247, 112
  %v2394 = vpop.permute.xlu0 %2393
  %v2397 = vsel %vm277, %v2384, %v2392
  %v2398 = vsel %vm277, %v2386, %v2394
  %v2400 = vsel %vm424, %v2397, 0
  %v2403 = vsel %vm424, %v2398, 0
  %2405 = vmatprep.subr.mxu0 0.0
  %2406 = vmatpush1.msra.mxu0 %v32
  %2407 = vmatprep.subr.mxu0 0.0
  %2408 = vmatpush1.msra.mxu0 %v33
  %2409 = vmatprep.subr.mxu0 0.0
  %2410 = vmatpush1.msra.mxu0 0.0
  %2411 = vmatprep.subr.mxu0 0.0
  %2412 = vmatpush1.msra.mxu0 0.0
  %2413 = vmatprep.subr.mxu0 0.0
  %2414 = vmatpush1.msra.mxu0 0.0
  %2415 = vmatprep.subr.mxu0 0.0
  %2416 = vmatpush1.msra.mxu0 0.0
  %2417 = vmatprep.subr.mxu0 0.0
  %2418 = vmatpush1.msra.mxu0 0.0
  %2419 = vmatprep.subr.mxu0 0.0
  %2420 = vmatpush1.msra.mxu0 0.0
  %2421 = vmatprep.subr.mxu0 0.0
  %2422 = vmatpush1.msra.mxu0 0.0
  %2423 = vmatprep.subr.mxu0 0.0
  %2424 = vmatpush1.msra.mxu0 0.0
  %2425 = vmatprep.subr.mxu0 0.0
  %2426 = vmatpush1.msra.mxu0 0.0
  %2427 = vmatprep.subr.mxu0 0.0
  %2428 = vmatpush1.msra.mxu0 0.0
  %2429 = vmatprep.subr.mxu0 0.0
  %2430 = vmatpush1.msra.mxu0 0.0
  %2431 = vmatprep.subr.mxu0 0.0
  %2432 = vmatpush1.msra.mxu0 0.0
  %2433 = vmatprep.subr.mxu0 0.0
  %2434 = vmatpush1.msra.mxu0 0.0
  %2435 = vmatprep.subr.mxu0 0.0
  %2436 = vmatpush1.msra.mxu0 0.0
  %2437 = vmatprep.subr.mxu0 0.0
  %2438 = vmatpush1.msra.mxu0 0.0
  %2439 = vmatprep.subr.mxu0 0.0
  %2440 = vmatpush1.msra.mxu0 0.0
  %2441 = vmatprep.subr.mxu0 0.0
  %2442 = vmatpush1.msra.mxu0 0.0
  %2443 = vmatprep.subr.mxu0 0.0
  %2444 = vmatpush1.msra.mxu0 0.0
  %2445 = vmatprep.subr.mxu0 0.0
  %2446 = vmatpush1.msra.mxu0 0.0
  %2447 = vmatprep.subr.mxu0 0.0
  %2448 = vmatpush1.msra.mxu0 0.0
  %2449 = vmatprep.subr.mxu0 0.0
  %2450 = vmatpush1.msra.mxu0 0.0
  %2451 = vmatprep.subr.mxu0 0.0
  %2452 = vmatpush1.msra.mxu0 0.0
  %2453 = vmatprep.subr.mxu0 0.0
  %2454 = vmatpush1.msra.mxu0 0.0
  %2455 = vmatprep.subr.mxu0 0.0
  %2456 = vmatpush1.msra.mxu0 0.0
  %2457 = vmatprep.subr.mxu0 0.0
  %2458 = vmatpush1.msra.mxu0 0.0
  %2459 = vmatprep.subr.mxu0 0.0
  %2460 = vmatpush1.msra.mxu0 0.0
  %2461 = vmatprep.subr.mxu0 0.0
  %2462 = vmatpush1.msra.mxu0 0.0
  %2463 = vmatprep.subr.mxu0 0.0
  %2464 = vmatpush1.msra.mxu0 0.0
  %2465 = vmatprep.subr.mxu0 0.0
  %2466 = vmatpush1.msra.mxu0 0.0
  %2467 = vmatprep.subr.mxu0 0.0
  %2468 = vmatpush1.msra.mxu0 0.0
  %2469 = vmatprep.mubr.f32.mxu0 0.0
  %2470 = vmatmul.mubr.f32.gmra.mrb[0].mxu0 %v2400
  %v2471 = vpop.f32.mrb[0].mxu0
  %v2472 = vadd.f32 %v422, %v2471
  %v2473 = vpop.f32.mrb[0].mxu0
  %2474 = vmatprep.mubr.f32.mxu0 0.0
  %2475 = vmatmul.mubr.f32.gmra.mrb[0].mxu0 %v2403
  %v2476 = vpop.f32.mrb[0].mxu0
  %v2477 = vadd.f32 %v422, %v2476
  %v2478 = vpop.f32.mrb[0].mxu0
  %2479 = vdwg.mxu0
  %v2480 = vxor.u32 %v2472, 2147483648
  %v2481 = vxor.u32 %v2477, 2147483648
  %v2482 = vmul.f32 %v2480, 1.442695
  %v2483 = vpow.pop %v2482
  %v2484 = vmul.f32 %v2481, 1.442695
  %v2485 = vpow.pop %v2484
  %v2486 = vadd.f32 %v2483, 1.0
  %v2487 = vadd.f32 %v2485, 1.0
  %v2488 = vrcp.pop %v2486
  %v2489 = vmul.f32 1.0, %v2488
  %v2490 = vrcp.pop %v2487
  %v2491 = vmul.f32 1.0, %v2490
  %v2492 = vmul.f32 %v2489, 2.0
  %v2493 = vmul.f32 %v2491, 2.0
  %v2494 = vsub.f32 %v2492, 1.0
  %v2495 = vsub.f32 %v2493, 1.0
  %v2496 = vmul.f32 %v2489, %v2234
  %v2497 = vmul.f32 %v2491, %v2235
  %2500 = vrot.lane.b32.xlu0 %v2494, 112
  %v2501 = vpop.permute.xlu0 %2500
  %2502 = vrot.lane.b32.xlu0 %v2495, 112
  %v2503 = vpop.permute.xlu0 %2502
  %v2506 = vmul.f32 %v2489, %v2501
  %v2507 = vmul.f32 %v2491, %v2503
  %2510 = vrot.lane.b32.xlu0 %v2506, 8
  %v2511 = vpop.permute.xlu0 %2510
  %2512 = vrot.lane.b32.xlu0 %v2507, 8
  %v2513 = vpop.permute.xlu0 %2512
  %v2516 = vadd.f32 %v2496, %v2511
  %v2517 = vadd.f32 %v2497, %v2513
  %v2518 = vtanh.pop %v2516
  %v2519 = vtanh.pop %v2517
  %2522 = vrot.lane.b32.xlu0 %v2518, 16
  %v2523 = vpop.permute.xlu0 %2522
  %2524 = vrot.lane.b32.xlu0 %v2519, 16
  %v2525 = vpop.permute.xlu0 %2524
  %v2528 = vmul.f32 %v2489, %v2523
  %v2529 = vmul.f32 %v2491, %v2525
  %v2530 = vsel %vm277, %v2384, 0
  %v2532 = vsel %vm277, %v2386, 0
  %2534 = vmatprep.subr.mxu0 0.0
  %2535 = vmatpush1.msra.mxu0 %v31
  %2536 = vmatprep.subr.mxu0 0.0
  %2537 = vmatpush1.msra.mxu0 0.0
  %2538 = vmatprep.subr.mxu0 0.0
  %2539 = vmatpush1.msra.mxu0 0.0
  %2540 = vmatprep.subr.mxu0 0.0
  %2541 = vmatpush1.msra.mxu0 0.0
  %2542 = vmatprep.subr.mxu0 0.0
  %2543 = vmatpush1.msra.mxu0 0.0
  %2544 = vmatprep.subr.mxu0 0.0
  %2545 = vmatpush1.msra.mxu0 0.0
  %2546 = vmatprep.subr.mxu0 0.0
  %2547 = vmatpush1.msra.mxu0 0.0
  %2548 = vmatprep.subr.mxu0 0.0
  %2549 = vmatpush1.msra.mxu0 0.0
  %2550 = vmatprep.subr.mxu0 0.0
  %2551 = vmatpush1.msra.mxu0 0.0
  %2552 = vmatprep.subr.mxu0 0.0
  %2553 = vmatpush1.msra.mxu0 0.0
  %2554 = vmatprep.subr.mxu0 0.0
  %2555 = vmatpush1.msra.mxu0 0.0
  %2556 = vmatprep.subr.mxu0 0.0
  %2557 = vmatpush1.msra.mxu0 0.0
  %2558 = vmatprep.subr.mxu0 0.0
  %2559 = vmatpush1.msra.mxu0 0.0
  %2560 = vmatprep.subr.mxu0 0.0
  %2561 = vmatpush1.msra.mxu0 0.0
  %2562 = vmatprep.subr.mxu0 0.0
  %2563 = vmatpush1.msra.mxu0 0.0
  %2564 = vmatprep.subr.mxu0 0.0
  %2565 = vmatpush1.msra.mxu0 0.0
  %2566 = vmatprep.subr.mxu0 0.0
  %2567 = vmatpush1.msra.mxu0 0.0
  %2568 = vmatprep.subr.mxu0 0.0
  %2569 = vmatpush1.msra.mxu0 0.0
  %2570 = vmatprep.subr.mxu0 0.0
  %2571 = vmatpush1.msra.mxu0 0.0
  %2572 = vmatprep.subr.mxu0 0.0
  %2573 = vmatpush1.msra.mxu0 0.0
  %2574 = vmatprep.subr.mxu0 0.0
  %2575 = vmatpush1.msra.mxu0 0.0
  %2576 = vmatprep.subr.mxu0 0.0
  %2577 = vmatpush1.msra.mxu0 0.0
  %2578 = vmatprep.subr.mxu0 0.0
  %2579 = vmatpush1.msra.mxu0 0.0
  %2580 = vmatprep.subr.mxu0 0.0
  %2581 = vmatpush1.msra.mxu0 0.0
  %2582 = vmatprep.subr.mxu0 0.0
  %2583 = vmatpush1.msra.mxu0 0.0
  %2584 = vmatprep.subr.mxu0 0.0
  %2585 = vmatpush1.msra.mxu0 0.0
  %2586 = vmatprep.subr.mxu0 0.0
  %2587 = vmatpush1.msra.mxu0 0.0
  %2588 = vmatprep.subr.mxu0 0.0
  %2589 = vmatpush1.msra.mxu0 0.0
  %2590 = vmatprep.subr.mxu0 0.0
  %2591 = vmatpush1.msra.mxu0 0.0
  %2592 = vmatprep.subr.mxu0 0.0
  %2593 = vmatpush1.msra.mxu0 0.0
  %2594 = vmatprep.subr.mxu0 0.0
  %2595 = vmatpush1.msra.mxu0 0.0
  %2596 = vmatprep.subr.mxu0 0.0
  %2597 = vmatpush1.msra.mxu0 0.0
  %2598 = vmatprep.mubr.f32.mxu0 0.0
  %2599 = vmatmul.mubr.f32.gmra.mrb[0].mxu0 %v2530
  %v2600 = vpop.f32.mrb[0].mxu0
  %v2601 = vadd.f32 0.0, %v2600
  %v2602 = vpop.f32.mrb[0].mxu0
  %2603 = vmatprep.mubr.f32.mxu0 0.0
  %2604 = vmatmul.mubr.f32.gmra.mrb[0].mxu0 %v2532
  %v2605 = vpop.f32.mrb[0].mxu0
  %v2606 = vadd.f32 0.0, %v2605
  %v2607 = vpop.f32.mrb[0].mxu0
  %2608 = vdwg.mxu0
  %v2609 = vadd.f32 %v1402, %v2601
  %v2610 = vadd.f32 %v1403, %v2606
  %v2611 = vxor.u32 %v2609, 2147483648
  %v2612 = vxor.u32 %v2610, 2147483648
  %v2613 = vmul.f32 %v2611, 1.442695
  %v2614 = vpow.pop %v2613
  %v2615 = vmul.f32 %v2612, 1.442695
  %v2616 = vpow.pop %v2615
  %v2617 = vadd.f32 %v2614, 1.0
  %v2618 = vadd.f32 %v2616, 1.0
  %v2619 = vrcp.pop %v2617
  %v2620 = vmul.f32 1.0, %v2619
  %v2621 = vrcp.pop %v2618
  %v2622 = vmul.f32 1.0, %v2621
  %v2623 = vmul.f32 %v2620, 2.0
  %v2624 = vmul.f32 %v2622, 2.0
  %v2625 = vsub.f32 %v2623, 1.0
  %v2626 = vsub.f32 %v2624, 1.0
  %v2627 = vmul.f32 %v2620, %v2367
  %v2628 = vmul.f32 %v2622, %v2368
  %2631 = vrot.lane.b32.xlu0 %v2625, 112
  %v2632 = vpop.permute.xlu0 %2631
  %2633 = vrot.lane.b32.xlu0 %v2626, 112
  %v2634 = vpop.permute.xlu0 %2633
  %v2637 = vmul.f32 %v2620, %v2632
  %v2638 = vmul.f32 %v2622, %v2634
  %2641 = vrot.lane.b32.xlu0 %v2637, 8
  %v2642 = vpop.permute.xlu0 %2641
  %2643 = vrot.lane.b32.xlu0 %v2638, 8
  %v2644 = vpop.permute.xlu0 %2643
  %v2647 = vadd.f32 %v2627, %v2642
  %v2648 = vadd.f32 %v2628, %v2644
  %v2649 = vtanh.pop %v2647
  %v2650 = vtanh.pop %v2648
  %2653 = vrot.lane.b32.xlu0 %v2649, 16
  %v2654 = vpop.permute.xlu0 %2653
  %2655 = vrot.lane.b32.xlu0 %v2650, 16
  %v2656 = vpop.permute.xlu0 %2655
  %v2659 = vmul.f32 %v2620, %v2654
  %v2660 = vmul.f32 %v2622, %v2656
  %2663 = vrot.lane.b32.xlu0 %v2659, 104
  %v2664 = vpop.permute.xlu0 %2663
  %2665 = vrot.lane.b32.xlu0 %v2660, 104
  %v2666 = vpop.permute.xlu0 %2665
  %2671 = vrot.lane.b32.xlu0 %v2528, 112
  %v2672 = vpop.permute.xlu0 %2671
  %2673 = vrot.lane.b32.xlu0 %v2529, 112
  %v2674 = vpop.permute.xlu0 %2673
  %v2677 = vsel %vm277, %v2664, %v2672
  %v2678 = vsel %vm277, %v2666, %v2674
  %v2680 = vsel %vm424, %v2677, 0
  %v2683 = vsel %vm424, %v2678, 0
  %2685 = vmatprep.subr.mxu0 0.0
  %2686 = vmatpush1.msra.mxu0 %v32
  %2687 = vmatprep.subr.mxu0 0.0
  %2688 = vmatpush1.msra.mxu0 %v33
  %2689 = vmatprep.subr.mxu0 0.0
  %2690 = vmatpush1.msra.mxu0 0.0
  %2691 = vmatprep.subr.mxu0 0.0
  %2692 = vmatpush1.msra.mxu0 0.0
  %2693 = vmatprep.subr.mxu0 0.0
  %2694 = vmatpush1.msra.mxu0 0.0
  %2695 = vmatprep.subr.mxu0 0.0
  %2696 = vmatpush1.msra.mxu0 0.0
  %2697 = vmatprep.subr.mxu0 0.0
  %2698 = vmatpush1.msra.mxu0 0.0
  %2699 = vmatprep.subr.mxu0 0.0
  %2700 = vmatpush1.msra.mxu0 0.0
  %2701 = vmatprep.subr.mxu0 0.0
  %2702 = vmatpush1.msra.mxu0 0.0
  %2703 = vmatprep.subr.mxu0 0.0
  %2704 = vmatpush1.msra.mxu0 0.0
  %2705 = vmatprep.subr.mxu0 0.0
  %2706 = vmatpush1.msra.mxu0 0.0
  %2707 = vmatprep.subr.mxu0 0.0
  %2708 = vmatpush1.msra.mxu0 0.0
  %2709 = vmatprep.subr.mxu0 0.0
  %2710 = vmatpush1.msra.mxu0 0.0
  %2711 = vmatprep.subr.mxu0 0.0
  %2712 = vmatpush1.msra.mxu0 0.0
  %2713 = vmatprep.subr.mxu0 0.0
  %2714 = vmatpush1.msra.mxu0 0.0
  %2715 = vmatprep.subr.mxu0 0.0
  %2716 = vmatpush1.msra.mxu0 0.0
  %2717 = vmatprep.subr.mxu0 0.0
  %2718 = vmatpush1.msra.mxu0 0.0
  %2719 = vmatprep.subr.mxu0 0.0
  %2720 = vmatpush1.msra.mxu0 0.0
  %2721 = vmatprep.subr.mxu0 0.0
  %2722 = vmatpush1.msra.mxu0 0.0
  %2723 = vmatprep.subr.mxu0 0.0
  %2724 = vmatpush1.msra.mxu0 0.0
  %2725 = vmatprep.subr.mxu0 0.0
  %2726 = vmatpush1.msra.mxu0 0.0
  %2727 = vmatprep.subr.mxu0 0.0
  %2728 = vmatpush1.msra.mxu0 0.0
  %2729 = vmatprep.subr.mxu0 0.0
  %2730 = vmatpush1.msra.mxu0 0.0
  %2731 = vmatprep.subr.mxu0 0.0
  %2732 = vmatpush1.msra.mxu0 0.0
  %2733 = vmatprep.subr.mxu0 0.0
  %2734 = vmatpush1.msra.mxu0 0.0
  %2735 = vmatprep.subr.mxu0 0.0
  %2736 = vmatpush1.msra.mxu0 0.0
  %2737 = vmatprep.subr.mxu0 0.0
  %2738 = vmatpush1.msra.mxu0 0.0
  %2739 = vmatprep.subr.mxu0 0.0
  %2740 = vmatpush1.msra.mxu0 0.0
  %2741 = vmatprep.subr.mxu0 0.0
  %2742 = vmatpush1.msra.mxu0 0.0
  %2743 = vmatprep.subr.mxu0 0.0
  %2744 = vmatpush1.msra.mxu0 0.0
  %2745 = vmatprep.subr.mxu0 0.0
  %2746 = vmatpush1.msra.mxu0 0.0
  %2747 = vmatprep.subr.mxu0 0.0
  %2748 = vmatpush1.msra.mxu0 0.0
  %2749 = vmatprep.mubr.f32.mxu0 0.0
  %2750 = vmatmul.mubr.f32.gmra.mrb[0].mxu0 %v2680
  %v2751 = vpop.f32.mrb[0].mxu0
  %v2752 = vadd.f32 %v422, %v2751
  %v2753 = vpop.f32.mrb[0].mxu0
  %2754 = vmatprep.mubr.f32.mxu0 0.0
  %2755 = vmatmul.mubr.f32.gmra.mrb[0].mxu0 %v2683
  %v2756 = vpop.f32.mrb[0].mxu0
  %v2757 = vadd.f32 %v422, %v2756
  %v2758 = vpop.f32.mrb[0].mxu0
  %2759 = vdwg.mxu0
  %v2760 = vxor.u32 %v2752, 2147483648
  %v2761 = vxor.u32 %v2757, 2147483648
  %v2762 = vmul.f32 %v2760, 1.442695
  %v2763 = vpow.pop %v2762
  %v2764 = vmul.f32 %v2761, 1.442695
  %v2765 = vpow.pop %v2764
  %v2766 = vadd.f32 %v2763, 1.0
  %v2767 = vadd.f32 %v2765, 1.0
  %v2768 = vrcp.pop %v2766
  %v2769 = vmul.f32 1.0, %v2768
  %v2770 = vrcp.pop %v2767
  %v2771 = vmul.f32 1.0, %v2770
  %v2772 = vmul.f32 %v2769, 2.0
  %v2773 = vmul.f32 %v2771, 2.0
  %v2774 = vsub.f32 %v2772, 1.0
  %v2775 = vsub.f32 %v2773, 1.0
  %v2776 = vmul.f32 %v2769, %v2516
  %v2777 = vmul.f32 %v2771, %v2517
  %2780 = vrot.lane.b32.xlu0 %v2774, 112
  %v2781 = vpop.permute.xlu0 %2780
  %2782 = vrot.lane.b32.xlu0 %v2775, 112
  %v2783 = vpop.permute.xlu0 %2782
  %v2786 = vmul.f32 %v2769, %v2781
  %v2787 = vmul.f32 %v2771, %v2783
  %2790 = vrot.lane.b32.xlu0 %v2786, 8
  %v2791 = vpop.permute.xlu0 %2790
  %2792 = vrot.lane.b32.xlu0 %v2787, 8
  %v2793 = vpop.permute.xlu0 %2792
  %v2796 = vadd.f32 %v2776, %v2791
  %v2797 = vadd.f32 %v2777, %v2793
  %v2798 = vtanh.pop %v2796
  %v2799 = vtanh.pop %v2797
  %2802 = vrot.lane.b32.xlu0 %v2798, 16
  %v2803 = vpop.permute.xlu0 %2802
  %2804 = vrot.lane.b32.xlu0 %v2799, 16
  %v2805 = vpop.permute.xlu0 %2804
  %v2808 = vmul.f32 %v2769, %v2803
  %v2809 = vmul.f32 %v2771, %v2805
  %v2810 = vld [vmem:[%s6] sm:$0x1]
  %v2812 = vlaneseq
  %v2813 = vshrl.u32 %v2812, 7
  %v2814 = vsub.s32 0, %v2813
  %v2815 = vrot.slane %v2810, %v2814
  %2816 = vrot.lane.b32.xlu0 %v2815, 24
  %v2817 = vpop.permute.xlu0 %2816
  %v2819 = vmul.f32 %v2808, %v2817
  %v2820 = vmul.f32 %v2809, %v2817
  %2823 = vrot.lane.b32.xlu0 %v2819, 104
  %v2824 = vpop.permute.xlu0 %2823
  %2825 = vrot.lane.b32.xlu0 %v2820, 104
  %v2826 = vpop.permute.xlu0 %2825
  %v2829 = vsel %vm277, %v2824, 0.0
  %2830 = vadd.xlane.f32.xlu0 %v2829
  %v2831 = vpop.xlane.xlu0 %2830
  %v2832 = vsel %vm277, %v2826, 0.0
  %2833 = vadd.xlane.f32.xlu0 %v2832
  %v2834 = vpop.xlane.xlu0 %2833
  %v2835 = vld [vmem:[#allocation3] sm:$0x1]
  %v2837 = vlaneseq
  %v2838 = vshrl.u32 %v2837, 7
  %v2839 = vsub.s32 0, %v2838
  %v2840 = vrot.slane %v2835, %v2839
  %v2842 = vadd.f32 %v2831, %v2840
  %v2843 = vadd.f32 %v2834, %v2840
  %vm2844 = vcmask 7168
  %2845 = vst.msk [vmem:[%s8] sm:$0xff] %vm2844, %v2842
  %2846 = vst.msk [vmem:[%s8 + $0x8] sm:$0xff] %vm2844, %v2843
  // Predicated region
  $region34: #{tpu_custom_call.1} parent=0 // pred_check
    _
  $region35: #{tpu_custom_call.1} parent=0 // pred_check_branch
    %2848 = sbr.rel (0) target = $region37
  $region36: #{tpu_custom_call.1} parent=0 // pred_region
    _
  $region37: #{tpu_custom_call.1} parent=0 // pred_fallthru
    _
  // Predicated region
  $region38: #{tpu_custom_call.1} parent=0 // pred_check
    _
  $region39: #{tpu_custom_call.1} parent=0 // pred_check_branch
    %2850 = sbr.rel (0) target = $region41
  $region40: #{tpu_custom_call.1} parent=0 // pred_region
    _
  $region41: #{tpu_custom_call.1} parent=0 // pred_fallthru
    _

</llo_original>
